<compile_context>
chip_gen: v7x
topology: tpu7x:2x2x1
jax: 0.10.0
libtpu: 0.0.40
codegen_flags: <defaults>
</compile_context>

<pallas_src>
import jax
import jax.numpy as jnp
from jax import lax
from jax.experimental import pallas as pl
from jax.experimental.pallas import tpu as pltpu


def _dwconv3x3_kernel(x_ref, w_ref, b_ref, o_ref, pad_ref):
    """Depthwise 3x3, stride 1, pad 1 on one NHWC (1, H, W, Ct) tile.

    x_ref:   (1, H, W, Ct)      input tile
    w_ref:   (3, 3, Ct)         per-channel 3x3 taps
    b_ref:   (1, Ct)            per-channel bias
    o_ref:   (1, H, W, Ct)      output tile (written exactly once)
    pad_ref: (H+2, W+2, Ct) f32 VMEM scratch holding the zero-bordered tile
    """
    H, W = o_ref.shape[1], o_ref.shape[2]
    Ct = o_ref.shape[3]

    # Zero the 1-pixel halo border (two rows + two columns; negligible traffic),
    # then drop the input tile into the centre of the padded scratch.  All edge
    # handling (SAME padding) falls out of the zero halo.
    zrow = jnp.zeros((1, W + 2, Ct), jnp.float32)
    zcol = jnp.zeros((H, 1, Ct), jnp.float32)
    pad_ref[0:1, :, :] = zrow
    pad_ref[H + 1:H + 2, :, :] = zrow
    pad_ref[1:H + 1, 0:1, :] = zcol
    pad_ref[1:H + 1, W + 1:W + 2, :] = zcol
    pad_ref[1:H + 1, 1:W + 1, :] = x_ref[0].astype(jnp.float32)

    wt = w_ref[...].astype(jnp.float32)     # (3, 3, Ct)
    bias = b_ref[0].astype(jnp.float32)     # (Ct,)

    # out[h, w, c] = sum_{kh, kw} w[kh, kw, c] * pad[h + kh, w + kw, c] + b[c]
    # Accumulate in registers/VMEM temporaries; store the output once.
    acc = None
    for kh in range(3):
        for kw in range(3):
            term = pad_ref[kh:kh + H, kw:kw + W, :] * wt[kh, kw]
            acc = term if acc is None else acc + term
    acc = acc + bias

    o_ref[0] = acc.astype(o_ref.dtype)      # single lane-dense full-tile store


def _pick_ct(C, H, W, itemsize, budget_bytes=4 << 20):
    """Largest lane-dense channel tile that divides C and fits the block budget."""
    if C % 128 == 0:
        cands = [c for c in (512, 384, 256, 128) if C % c == 0]
        for c in cands:
            if H * W * c * itemsize <= budget_bytes:
                return c
        return cands[-1]
    # C = 64 / 320 / ... : full-C block (equal-to-array-dim is a legal BlockSpec).
    return C


def dwconv(x_tokens, H, W, w_oihw, bias):
    """DWConv forward.

    x_tokens: (B, N, C) tokens, N = H*W (row-major).
    w_oihw:   (C, 1, 3, 3) PyTorch-layout depthwise Conv2d weight.
    bias:     (C,)
    returns:  (B, N, C) in x_tokens.dtype
    """
    B, N, C = x_tokens.shape
    assert N == H * W, "token count must equal H*W"

    x_nhwc = x_tokens.reshape(B, H, W, C)              # free (contiguous) reshape
    w_hwc = jnp.transpose(w_oihw[:, 0], (1, 2, 0))     # (3, 3, C)
    b2 = bias.reshape(1, C)

    itemsize = jnp.dtype(x_tokens.dtype).itemsize
    Ct = _pick_ct(C, H, W, itemsize)

    # Channels outermost, batch innermost: weight/bias block indices repeat
    # across consecutive steps (no re-DMA); both axes are parallel.
    grid = (C // Ct, B)

    # VMEM budget: double-buffered in/out blocks + padded scratch + temporaries.
    in_b = H * W * Ct * itemsize
    out_b = H * W * Ct * itemsize
    pad_b = (H + 2) * (W + 2) * Ct * 4
    need = 2 * (in_b + out_b) + pad_b + 3 * (H * W * Ct * 4) + (1 << 20)
    try:
        cap = int(getattr(pltpu.get_tpu_info(), "vmem_capacity_bytes", 64 << 20))
    except Exception:
        cap = 64 << 20
    vmem_limit = int(min(int(0.9 * cap), max(32 << 20, need)))

    out = pl.pallas_call(
        _dwconv3x3_kernel,
        out_shape=jax.ShapeDtypeStruct((B, H, W, C), x_tokens.dtype),
        grid=grid,
        in_specs=[
            pl.BlockSpec((1, H, W, Ct), lambda ci, bi: (bi, 0, 0, ci)),
            pl.BlockSpec((3, 3, Ct), lambda ci, bi: (0, 0, ci)),
            pl.BlockSpec((1, Ct), lambda ci, bi: (0, ci)),
        ],
        out_specs=pl.BlockSpec((1, H, W, Ct), lambda ci, bi: (bi, 0, 0, ci)),
        scratch_shapes=[pltpu.VMEM((H + 2, W + 2, Ct), jnp.float32)],
        compiler_params=pltpu.CompilerParams(
            dimension_semantics=("parallel", "parallel"),
            vmem_limit_bytes=vmem_limit),
    )(x_nhwc, w_hwc, b2)

    return out.reshape(B, N, C)


def _reference(x, H, W, w, b):
    B, N, C = x.shape
    x_nchw = x.reshape(B, H, W, C).transpose(0, 3, 1, 2)
    ref = lax.conv_general_dilated(
        x_nchw, w, window_strides=(1, 1), padding=((1, 1), (1, 1)),
        feature_group_count=C,
        dimension_numbers=("NCHW", "OIHW", "NCHW"),
        precision=lax.Precision.HIGHEST)
    ref = ref + b.reshape(1, C, 1, 1)
    return ref.reshape(B, C, N).transpose(0, 2, 1)


def _check(key, B, C, H, W):
    kx, kw, kb = jax.random.split(key, 3)
    N = H * W
    x = jax.random.normal(kx, (B, N, C), dtype=jnp.float32)
    w = jax.random.normal(kw, (C, 1, 3, 3), dtype=jnp.float32) * (1.0 / 3.0)
    b = jax.random.normal(kb, (C,), dtype=jnp.float32) * 0.1

    fwd = jax.jit(dwconv, static_argnums=(1, 2))
    y = jax.block_until_ready(fwd(x, H, W, w, b))
    ref = _reference(x, H, W, w, b)

    assert y.shape == (B, N, C), y.shape
    assert bool(jnp.all(jnp.isfinite(y)))
    max_err = float(jnp.max(jnp.abs(y - ref)))
    assert bool(jnp.allclose(y, ref, atol=1e-4, rtol=1e-4)), max_err


if __name__ == "__main__":
    key = jax.random.PRNGKey(0)
    k1, k2 = jax.random.split(key, 2)

    # Lane-dense multi-group channel tile path (Ct = 256).
    _check(k1, B=2, C=256, H=16, W=16)
    # PVTv2-like non-multiple-of-128 channels and odd spatial (full-C block).
    _check(k2, B=2, C=64, H=7, W=7)

    print("KERNEL_OK")
</pallas_src>

<mosaic_0001>
module attributes {stable_mosaic.version = 11 : i64} {
  func.func @_dwconv3x3_kernel(%arg0: i32, %arg1: i32, %arg2: memref<1x16x16x256xf32, #tpu.memory_space<vmem>>, %arg3: memref<3x3x256xf32, #tpu.memory_space<vmem>>, %arg4: memref<1x256xf32, #tpu.memory_space<vmem>>, %arg5: memref<1x16x16x256xf32, #tpu.memory_space<vmem>>, %arg6: memref<18x18x256xf32, #tpu.memory_space<vmem>>) attributes {dimension_semantics = [#tpu.dimension_semantics<parallel>, #tpu.dimension_semantics<parallel>], iteration_bounds = array<i64: 1, 2>, scalar_prefetch = 0 : i64, scratch_operands = 1 : i64, tpu.core_type = #tpu.core_type<tc>, window_params = [{transform_indices = @transform_0, window_bounds = array<i64: 1, 16, 16, 256>}, {transform_indices = @transform_1, window_bounds = array<i64: 3, 3, 256>}, {transform_indices = @transform_2, window_bounds = array<i64: 1, 256>}, {transform_indices = @transform_3, window_bounds = array<i64: 1, 16, 16, 256>}]} {
    %cst = arith.constant 0.000000e+00 : f32
    %0 = vector.broadcast %cst : f32 to vector<1x18x256xf32>
    %cst_0 = arith.constant 0.000000e+00 : f32
    %1 = vector.broadcast %cst_0 : f32 to vector<16x1x256xf32>
    %c0 = arith.constant 0 : index
    %c0_1 = arith.constant 0 : index
    %c0_2 = arith.constant 0 : index
    %2 = vector.load %arg6[%c0, %c0_1, %c0_2] : memref<18x18x256xf32, #tpu.memory_space<vmem>>, vector<1x18x256xf32>
    tpu.vector_store %arg6[%c0, %c0_1, %c0_2], %0 {strides = array<i32>} : memref<18x18x256xf32, #tpu.memory_space<vmem>>, vector<1x18x256xf32>,
    %c17 = arith.constant 17 : index
    %c0_3 = arith.constant 0 : index
    %c0_4 = arith.constant 0 : index
    %3 = vector.load %arg6[%c17, %c0_3, %c0_4] : memref<18x18x256xf32, #tpu.memory_space<vmem>>, vector<1x18x256xf32>
    tpu.vector_store %arg6[%c17, %c0_3, %c0_4], %0 {strides = array<i32>} : memref<18x18x256xf32, #tpu.memory_space<vmem>>, vector<1x18x256xf32>,
    %c1 = arith.constant 1 : index
    %c0_5 = arith.constant 0 : index
    %c0_6 = arith.constant 0 : index
    %4 = vector.load %arg6[%c1, %c0_5, %c0_6] : memref<18x18x256xf32, #tpu.memory_space<vmem>>, vector<16x1x256xf32>
    tpu.vector_store %arg6[%c1, %c0_5, %c0_6], %1 {strides = array<i32>} : memref<18x18x256xf32, #tpu.memory_space<vmem>>, vector<16x1x256xf32>,
    %c1_7 = arith.constant 1 : index
    %c17_8 = arith.constant 17 : index
    %c0_9 = arith.constant 0 : index
    %5 = vector.load %arg6[%c1_7, %c17_8, %c0_9] : memref<18x18x256xf32, #tpu.memory_space<vmem>>, vector<16x1x256xf32>
    tpu.vector_store %arg6[%c1_7, %c17_8, %c0_9], %1 {strides = array<i32>} : memref<18x18x256xf32, #tpu.memory_space<vmem>>, vector<16x1x256xf32>,
    %c0_10 = arith.constant 0 : index
    %c0_11 = arith.constant 0 : index
    %c0_12 = arith.constant 0 : index
    %c0_13 = arith.constant 0 : index
    %6 = vector.load %arg2[%c0_10, %c0_11, %c0_12, %c0_13] : memref<1x16x16x256xf32, #tpu.memory_space<vmem>>, vector<1x16x16x256xf32>
    %7 = vector.shape_cast %6 : vector<1x16x16x256xf32> to vector<16x16x256xf32>
    %c1_14 = arith.constant 1 : index
    %c1_15 = arith.constant 1 : index
    %c0_16 = arith.constant 0 : index
    %8 = vector.load %arg6[%c1_14, %c1_15, %c0_16] : memref<18x18x256xf32, #tpu.memory_space<vmem>>, vector<16x16x256xf32>
    tpu.vector_store %arg6[%c1_14, %c1_15, %c0_16], %7 {strides = array<i32>} : memref<18x18x256xf32, #tpu.memory_space<vmem>>, vector<16x16x256xf32>,
    %c0_17 = arith.constant 0 : index
    %c0_18 = arith.constant 0 : index
    %c0_19 = arith.constant 0 : index
    %9 = vector.load %arg3[%c0_17, %c0_18, %c0_19] : memref<3x3x256xf32, #tpu.memory_space<vmem>>, vector<3x3x256xf32>
    %c0_20 = arith.constant 0 : index
    %c0_21 = arith.constant 0 : index
    %10 = vector.load %arg4[%c0_20, %c0_21] : memref<1x256xf32, #tpu.memory_space<vmem>>, vector<1x256xf32>
    %11 = vector.shape_cast %10 : vector<1x256xf32> to vector<256xf32>
    %c0_22 = arith.constant 0 : index
    %c0_23 = arith.constant 0 : index
    %c0_24 = arith.constant 0 : index
    %12 = vector.load %arg6[%c0_22, %c0_23, %c0_24] : memref<18x18x256xf32, #tpu.memory_space<vmem>>, vector<16x16x256xf32>
    %13 = vector.extract_strided_slice %9 {offsets = [0, 0, 0], sizes = [1, 1, 256], strides = [1, 1, 1]} : vector<3x3x256xf32> to vector<1x1x256xf32>
    %14 = vector.shape_cast %13 : vector<1x1x256xf32> to vector<256xf32>
    %15 = vector.shape_cast %14 : vector<256xf32> to vector<1x1x256xf32>
    %16 = vector.broadcast %15 : vector<1x1x256xf32> to vector<16x16x256xf32>
    %17 = arith.mulf %12, %16 : vector<16x16x256xf32>
    %c0_25 = arith.constant 0 : index
    %c1_26 = arith.constant 1 : index
    %c0_27 = arith.constant 0 : index
    %18 = vector.load %arg6[%c0_25, %c1_26, %c0_27] : memref<18x18x256xf32, #tpu.memory_space<vmem>>, vector<16x16x256xf32>
    %19 = vector.extract_strided_slice %9 {offsets = [0, 1, 0], sizes = [1, 1, 256], strides = [1, 1, 1]} : vector<3x3x256xf32> to vector<1x1x256xf32>
    %20 = vector.shape_cast %19 : vector<1x1x256xf32> to vector<256xf32>
    %21 = vector.shape_cast %20 : vector<256xf32> to vector<1x1x256xf32>
    %22 = vector.broadcast %21 : vector<1x1x256xf32> to vector<16x16x256xf32>
    %23 = arith.mulf %18, %22 : vector<16x16x256xf32>
    %24 = arith.addf %17, %23 : vector<16x16x256xf32>
    %c0_28 = arith.constant 0 : index
    %c2 = arith.constant 2 : index
    %c0_29 = arith.constant 0 : index
    %25 = vector.load %arg6[%c0_28, %c2, %c0_29] : memref<18x18x256xf32, #tpu.memory_space<vmem>>, vector<16x16x256xf32>
    %26 = vector.extract_strided_slice %9 {offsets = [0, 2, 0], sizes = [1, 1, 256], strides = [1, 1, 1]} : vector<3x3x256xf32> to vector<1x1x256xf32>
    %27 = vector.shape_cast %26 : vector<1x1x256xf32> to vector<256xf32>
    %28 = vector.shape_cast %27 : vector<256xf32> to vector<1x1x256xf32>
    %29 = vector.broadcast %28 : vector<1x1x256xf32> to vector<16x16x256xf32>
    %30 = arith.mulf %25, %29 : vector<16x16x256xf32>
    %31 = arith.addf %24, %30 : vector<16x16x256xf32>
    %c1_30 = arith.constant 1 : index
    %c0_31 = arith.constant 0 : index
    %c0_32 = arith.constant 0 : index
    %32 = vector.load %arg6[%c1_30, %c0_31, %c0_32] : memref<18x18x256xf32, #tpu.memory_space<vmem>>, vector<16x16x256xf32>
    %33 = vector.extract_strided_slice %9 {offsets = [1, 0, 0], sizes = [1, 1, 256], strides = [1, 1, 1]} : vector<3x3x256xf32> to vector<1x1x256xf32>
    %34 = vector.shape_cast %33 : vector<1x1x256xf32> to vector<256xf32>
    %35 = vector.shape_cast %34 : vector<256xf32> to vector<1x1x256xf32>
    %36 = vector.broadcast %35 : vector<1x1x256xf32> to vector<16x16x256xf32>
    %37 = arith.mulf %32, %36 : vector<16x16x256xf32>
    %38 = arith.addf %31, %37 : vector<16x16x256xf32>
    %c1_33 = arith.constant 1 : index
    %c1_34 = arith.constant 1 : index
    %c0_35 = arith.constant 0 : index
    %39 = vector.load %arg6[%c1_33, %c1_34, %c0_35] : memref<18x18x256xf32, #tpu.memory_space<vmem>>, vector<16x16x256xf32>
    %40 = vector.extract_strided_slice %9 {offsets = [1, 1, 0], sizes = [1, 1, 256], strides = [1, 1, 1]} : vector<3x3x256xf32> to vector<1x1x256xf32>
    %41 = vector.shape_cast %40 : vector<1x1x256xf32> to vector<256xf32>
    %42 = vector.shape_cast %41 : vector<256xf32> to vector<1x1x256xf32>
    %43 = vector.broadcast %42 : vector<1x1x256xf32> to vector<16x16x256xf32>
    %44 = arith.mulf %39, %43 : vector<16x16x256xf32>
    %45 = arith.addf %38, %44 : vector<16x16x256xf32>
    %c1_36 = arith.constant 1 : index
    %c2_37 = arith.constant 2 : index
    %c0_38 = arith.constant 0 : index
    %46 = vector.load %arg6[%c1_36, %c2_37, %c0_38] : memref<18x18x256xf32, #tpu.memory_space<vmem>>, vector<16x16x256xf32>
    %47 = vector.extract_strided_slice %9 {offsets = [1, 2, 0], sizes = [1, 1, 256], strides = [1, 1, 1]} : vector<3x3x256xf32> to vector<1x1x256xf32>
    %48 = vector.shape_cast %47 : vector<1x1x256xf32> to vector<256xf32>
    %49 = vector.shape_cast %48 : vector<256xf32> to vector<1x1x256xf32>
    %50 = vector.broadcast %49 : vector<1x1x256xf32> to vector<16x16x256xf32>
    %51 = arith.mulf %46, %50 : vector<16x16x256xf32>
    %52 = arith.addf %45, %51 : vector<16x16x256xf32>
    %c2_39 = arith.constant 2 : index
    %c0_40 = arith.constant 0 : index
    %c0_41 = arith.constant 0 : index
    %53 = vector.load %arg6[%c2_39, %c0_40, %c0_41] : memref<18x18x256xf32, #tpu.memory_space<vmem>>, vector<16x16x256xf32>
    %54 = vector.extract_strided_slice %9 {offsets = [2, 0, 0], sizes = [1, 1, 256], strides = [1, 1, 1]} : vector<3x3x256xf32> to vector<1x1x256xf32>
    %55 = vector.shape_cast %54 : vector<1x1x256xf32> to vector<256xf32>
    %56 = vector.shape_cast %55 : vector<256xf32> to vector<1x1x256xf32>
    %57 = vector.broadcast %56 : vector<1x1x256xf32> to vector<16x16x256xf32>
    %58 = arith.mulf %53, %57 : vector<16x16x256xf32>
    %59 = arith.addf %52, %58 : vector<16x16x256xf32>
    %c2_42 = arith.constant 2 : index
    %c1_43 = arith.constant 1 : index
    %c0_44 = arith.constant 0 : index
    %60 = vector.load %arg6[%c2_42, %c1_43, %c0_44] : memref<18x18x256xf32, #tpu.memory_space<vmem>>, vector<16x16x256xf32>
    %61 = vector.extract_strided_slice %9 {offsets = [2, 1, 0], sizes = [1, 1, 256], strides = [1, 1, 1]} : vector<3x3x256xf32> to vector<1x1x256xf32>
    %62 = vector.shape_cast %61 : vector<1x1x256xf32> to vector<256xf32>
    %63 = vector.shape_cast %62 : vector<256xf32> to vector<1x1x256xf32>
    %64 = vector.broadcast %63 : vector<1x1x256xf32> to vector<16x16x256xf32>
    %65 = arith.mulf %60, %64 : vector<16x16x256xf32>
    %66 = arith.addf %59, %65 : vector<16x16x256xf32>
    %c2_45 = arith.constant 2 : index
    %c2_46 = arith.constant 2 : index
    %c0_47 = arith.constant 0 : index
    %67 = vector.load %arg6[%c2_45, %c2_46, %c0_47] : memref<18x18x256xf32, #tpu.memory_space<vmem>>, vector<16x16x256xf32>
    %68 = vector.extract_strided_slice %9 {offsets = [2, 2, 0], sizes = [1, 1, 256], strides = [1, 1, 1]} : vector<3x3x256xf32> to vector<1x1x256xf32>
    %69 = vector.shape_cast %68 : vector<1x1x256xf32> to vector<256xf32>
    %70 = vector.shape_cast %69 : vector<256xf32> to vector<1x1x256xf32>
    %71 = vector.broadcast %70 : vector<1x1x256xf32> to vector<16x16x256xf32>
    %72 = arith.mulf %67, %71 : vector<16x16x256xf32>
    %73 = arith.addf %66, %72 : vector<16x16x256xf32>
    %74 = vector.shape_cast %11 : vector<256xf32> to vector<1x1x256xf32>
    %75 = vector.broadcast %74 : vector<1x1x256xf32> to vector<16x16x256xf32>
    %76 = arith.addf %73, %75 : vector<16x16x256xf32>
    %c0_48 = arith.constant 0 : index
    %c0_49 = arith.constant 0 : index
    %c0_50 = arith.constant 0 : index
    %c0_51 = arith.constant 0 : index
    %77 = vector.load %arg5[%c0_48, %c0_49, %c0_50, %c0_51] : memref<1x16x16x256xf32, #tpu.memory_space<vmem>>, vector<1x16x16x256xf32>
    %78 = vector.shape_cast %77 : vector<1x16x16x256xf32> to vector<16x16x256xf32>
    %79 = vector.shape_cast %76 : vector<16x16x256xf32> to vector<1x16x16x256xf32>
    tpu.vector_store %arg5[%c0_48, %c0_49, %c0_50, %c0_51], %79 {strides = array<i32>} : memref<1x16x16x256xf32, #tpu.memory_space<vmem>>, vector<1x16x16x256xf32>,
    return
  }
  func.func @transform_0(%arg0: i32, %arg1: i32) -> (i32, i32, i32, i32) {
    %c0_i32 = arith.constant 0 : i32
    %c0_i32_0 = arith.constant 0 : i32
    %c0_i32_1 = arith.constant 0 : i32
    return %arg1, %c0_i32, %c0_i32_0, %arg0 : i32, i32, i32, i32
  }
  func.func @transform_1(%arg0: i32, %arg1: i32) -> (i32, i32, i32) {
    %c0_i32 = arith.constant 0 : i32
    %c0_i32_0 = arith.constant 0 : i32
    %c0_i32_1 = arith.constant 0 : i32
    return %c0_i32, %c0_i32_0, %arg0 : i32, i32, i32
  }
  func.func @transform_2(%arg0: i32, %arg1: i32) -> (i32, i32) {
    %c0_i32 = arith.constant 0 : i32
    %c0_i32_0 = arith.constant 0 : i32
    return %c0_i32, %arg0 : i32, i32
  }
  func.func @transform_3(%arg0: i32, %arg1: i32) -> (i32, i32, i32, i32) {
    %c0_i32 = arith.constant 0 : i32
    %c0_i32_0 = arith.constant 0 : i32
    %c0_i32_1 = arith.constant 0 : i32
    return %arg1, %c0_i32, %c0_i32_0, %arg0 : i32, i32, i32, i32
  }
}

</mosaic_0001>

<llo_original>
// kernel: dwconv.1
$region0: #{dwconv.1}
  #allocation0 [shape = 'u32[]', space=smem, size = 0x4, offset = 0x4, fixed_abs, tag = 'smem constant byte address 0x4 - core index']
  #allocation1 [shape = 'u32[144,128]{1,0:T(1,128)}', space=vmem, size = 0x12000, scoped, tag = 'internal scratch']
  #allocation2 [shape = 'f32[18,18,256]{2,1,0:T(8,128)}', space=vmem, size = 0x6c000, scoped, tag = 'scratch operand']
  %s0 = inlined_call_operand.hbm [shape: f32[2,16,16,256], index: 0, kind: input, shape index: {}]
  %s1 = inlined_call_operand.vmem [shape: f32[3,3,256], index: 1, kind: input, shape index: {}]
  %s2 = inlined_call_operand.vmem [shape: f32[1,256], index: 2, kind: input, shape index: {}]
  %s3 = inlined_call_operand.hbm [shape: f32[2,16,16,256], index: 3, kind: output, shape index: {}]
  %s4 = sld [smem:[#allocation0]]
  $region49: #{dwconv.1} parent=0
    _
  %s6 = ssub.s32 1, %s4
  %s7 = scalar_select 0, %s6, %s4
  $region1: #{dwconv.1} parent=0
    #allocation3 [shape = 'u8[524288]{0}', space=vmem, size = 0x80000, scoped, tag = 'input window, operand 0']
    #allocation4 [shape = 's32[2]{0}', space=sflag, size = 0x8, scoped, tag = 'scoped memory for dwconv.1']
    #allocation5 [shape = 's32[2]{0}', space=sflag, size = 0x8, scoped, tag = 'scoped memory for dwconv.1']
    #allocation6 [shape = 'u8[524288]{0}', space=vmem, size = 0x80000, scoped, tag = 'output window, operand 0']
    %8 = vsyncpa [#allocation4], 0
    %s9 = scalar_lea.sflag [#allocation4], 1
    %10 = vsyncpa %s9, 0
    %11 = vsyncpa [#allocation5], 0
    %s12 = scalar_lea.sflag [#allocation5], 1
    %13 = vsyncpa %s12, 0
    loop: start=0, step=1, limit=4
    $region2: #{dwconv.1} parent=1 // loop_pre_header
      _
    $region3: #{dwconv.1} parent=1 // loop_header
      %s15 = sphi 0, %s19
      %p16 = scmp.ge.s32.totalorder %s15, 4
      %s22 = sphi 0, %s34
      %s23 = sphi 0, %s30
      %s24 = sphi 0, %s22
      %s25 = sphi 0, %s23
      %s26 = sphi 0, %s24
      %s27 = sphi 0, %s25
      %s39 = sphi 0, %s41
      %s42 = sphi 0, %s39
      %s43 = sphi 0, %s42
      %s59 = sphi 0, %s43
      %s65 = sphi 0, %s67
      %s68 = sphi 0, %s65
      %s69 = sphi 0, %s68
      %s85 = sphi 0, %s69
      %s91 = sphi 0, %s93
      %s94 = sphi 0, %s91
      %s95 = sphi 0, %s94
      %s111 = sphi 0, %s95
      %s119 = sphi 0, %s121
      %s122 = sphi 0, %s119
      %s123 = sphi 0, %s122
      %s139 = sphi 0, %s123
    $region4: #{dwconv.1} parent=1 // loop_header_branch
      %18 = sbr.rel (%p16) target = $region8
    $region5: #{dwconv.1} parent=1 // loop_body
      %s20 = ssub.s32 %s15, 1
      %s21 = ssub.s32 %s15, 2
      %s28 = sadd.s32 1, %s23
      %p29 = scmp.ge.s32.totalorder %s28, 2
      %s30 = scalar_select %p29, 0, %s28
      %s31 = sadd.s32 1, %s22
      %s32 = scalar_select %p29, %s31, %s22
      %p33 = scmp.ge.s32.totalorder %s32, 1
      %s34 = scalar_select %p33, 0, %s32
      %s35 = ssub.s32 %s23, %s30
      %s36 = ssub.s32 %s22, %s34
      %s37 = sor.u32 %s35, %s36
      %p38 = scmp.eq.s32.totalorder %s37, 0
      %s40 = sadd.s32 %s39, 1
      %s41 = scalar_select %p38, %s39, %s40
      %p44 = pneg %p38
      %p45 = scmp.eq.s32.totalorder %s15, 1
      %p46 = por %p44, %p45
      %p47 = scmp.ne.s32.totalorder %s39, %s42
      %p48 = scmp.eq.s32.totalorder %s15, 0
      %p49 = por %p47, %p48
      %p50 = scmp.ne.s32.totalorder %s39, %s42
      %p51 = scmp.eq.s32.totalorder %s20, 1
      %p52 = por %p50, %p51
      %p53 = scmp.ne.s32.totalorder %s42, %s43
      %p54 = scmp.eq.s32.totalorder %s20, 0
      %p55 = por %p53, %p54
      %p56 = scmp.ne.s32.totalorder %s42, %s43
      %p57 = scmp.eq.s32.totalorder %s21, 1
      %p58 = por %p56, %p57
      %p60 = scmp.ne.s32.totalorder %s43, %s59
      %p61 = scmp.eq.s32.totalorder %s21, 0
      %p62 = por %p60, %p61
      %s63 = ssub.s32 %s22, %s34
      %p64 = scmp.eq.s32.totalorder %s63, 0
      %s66 = sadd.s32 %s65, 1
      %s67 = scalar_select %p64, %s65, %s66
      %p70 = pneg %p64
      %p71 = scmp.eq.s32.totalorder %s15, 1
      %p72 = por %p70, %p71
      %p73 = scmp.ne.s32.totalorder %s65, %s68
      %p74 = scmp.eq.s32.totalorder %s15, 0
      %p75 = por %p73, %p74
      %p76 = scmp.ne.s32.totalorder %s65, %s68
      %p77 = scmp.eq.s32.totalorder %s20, 1
      %p78 = por %p76, %p77
      %p79 = scmp.ne.s32.totalorder %s68, %s69
      %p80 = scmp.eq.s32.totalorder %s20, 0
      %p81 = por %p79, %p80
      %p82 = scmp.ne.s32.totalorder %s68, %s69
      %p83 = scmp.eq.s32.totalorder %s21, 1
      %p84 = por %p82, %p83
      %p86 = scmp.ne.s32.totalorder %s69, %s85
      %p87 = scmp.eq.s32.totalorder %s21, 0
      %p88 = por %p86, %p87
      %s89 = ssub.s32 %s22, %s34
      %p90 = scmp.eq.s32.totalorder %s89, 0
      %s92 = sadd.s32 %s91, 1
      %s93 = scalar_select %p90, %s91, %s92
      %p96 = pneg %p90
      %p97 = scmp.eq.s32.totalorder %s15, 1
      %p98 = por %p96, %p97
      %p99 = scmp.ne.s32.totalorder %s91, %s94
      %p100 = scmp.eq.s32.totalorder %s15, 0
      %p101 = por %p99, %p100
      %p102 = scmp.ne.s32.totalorder %s91, %s94
      %p103 = scmp.eq.s32.totalorder %s20, 1
      %p104 = por %p102, %p103
      %p105 = scmp.ne.s32.totalorder %s94, %s95
      %p106 = scmp.eq.s32.totalorder %s20, 0
      %p107 = por %p105, %p106
      %p108 = scmp.ne.s32.totalorder %s94, %s95
      %p109 = scmp.eq.s32.totalorder %s21, 1
      %p110 = por %p108, %p109
      %p112 = scmp.ne.s32.totalorder %s95, %s111
      %p113 = scmp.eq.s32.totalorder %s21, 0
      %p114 = por %p112, %p113
      %s115 = ssub.s32 %s23, %s30
      %s116 = ssub.s32 %s22, %s34
      %s117 = sor.u32 %s115, %s116
      %p118 = scmp.eq.s32.totalorder %s117, 0
      %s120 = sadd.s32 %s119, 1
      %s121 = scalar_select %p118, %s119, %s120
      %p124 = pneg %p118
      %p125 = scmp.eq.s32.totalorder %s15, 1
      %p126 = por %p124, %p125
      %p127 = scmp.ne.s32.totalorder %s119, %s122
      %p128 = scmp.eq.s32.totalorder %s15, 0
      %p129 = por %p127, %p128
      %p130 = scmp.ne.s32.totalorder %s119, %s122
      %p131 = scmp.eq.s32.totalorder %s20, 1
      %p132 = por %p130, %p131
      %p133 = scmp.ne.s32.totalorder %s122, %s123
      %p134 = scmp.eq.s32.totalorder %s20, 0
      %p135 = por %p133, %p134
      %p136 = scmp.ne.s32.totalorder %s122, %s123
      %p137 = scmp.eq.s32.totalorder %s21, 1
      %p138 = por %p136, %p137
      %p140 = scmp.ne.s32.totalorder %s123, %s139
      %p141 = scmp.eq.s32.totalorder %s21, 0
      %p142 = por %p140, %p141
      %p143 = scmp.le.s32.totalorder 1, %s15
      %p144 = scmp.lt.s32.totalorder %s15, 3
      %p145 = pnand %p143, %p144
      %p146 = pneg %p145
      // Predicated region
      $region9: #{dwconv.1} parent=5 // pred_check
        _
      $region10: #{dwconv.1} parent=5 // pred_check_branch
        %148 = sbr.rel (%p145) target = $region12
      $region11: #{dwconv.1} parent=5 // pred_region
        %s149 = ssub.s32 %s15, 1
        // Predicated region
        $region13: #{dwconv.1} parent=11 // pred_check
          %p150 = pneg %p81
        $region14: #{dwconv.1} parent=11 // pred_check_branch
          %152 = sbr.rel (%p150) target = $region16
        $region15: #{dwconv.1} parent=11 // pred_region
          %s153 = smul.u32 2, %s24
          %p154 = scmp.lt.s32.totalorder %s153, 1
          %s155 = scalar_select %p154, %s153, 1
          %s156 = smul.addr %s155, 4
          %s157 = scalar_lea.vmem %s1, %s156
          %s158 = smul.u32 2, %s24
        $region16: #{dwconv.1} parent=11 // pred_fallthru
          _
        // Predicated region
        $region17: #{dwconv.1} parent=11 // pred_check
          %p159 = pneg %p107
        $region18: #{dwconv.1} parent=11 // pred_check_branch
          %161 = sbr.rel (%p159) target = $region20
        $region19: #{dwconv.1} parent=11 // pred_region
          %s162 = smul.u32 2, %s24
          %p163 = scmp.lt.s32.totalorder %s162, 1
          %s164 = scalar_select %p163, %s162, 1
          %s165 = scalar_lea.vmem %s2, %s164
          %s166 = smul.u32 2, %s24
        $region20: #{dwconv.1} parent=11 // pred_fallthru
          _
      $region12: #{dwconv.1} parent=5 // pred_fallthru
        _
      %p167 = scmp.lt.s32.totalorder %s15, 2
      // Predicated region
      $region21: #{dwconv.1} parent=5 // pred_check
        %p168 = pneg %p167
      $region22: #{dwconv.1} parent=5 // pred_check_branch
        %170 = sbr.rel (%p168) target = $region24
      $region23: #{dwconv.1} parent=5 // pred_region
        // Predicated region
        $region25: #{dwconv.1} parent=23 // pred_check
          %p171 = pneg %p49
        $region26: #{dwconv.1} parent=23 // pred_check_branch
          %173 = sbr.rel (%p171) target = $region28
        $region27: #{dwconv.1} parent=23 // pred_region
          %s174 = sand.u32 %s39, 1
          %s175 = scalar_lea.sflag [#allocation4], %s174
          %s176 = sand.u32 %s39, 1
          %s177 = smul.addr %s176, 512
          %s178 = scalar_lea.vmem [#allocation3], %s177
          %s179 = smul.u32 2, %s22
          %s181 = ssub.s32 8192, 8192
          %182 = vsyncadd %s175, %s181
          %s183 = smul.addr %s23, 64
          %s184 = sadd.s32 %s179, %s183
          %s185 = smul.addr %s184, 128
          %s186 = scalar_lea.hbm %s0, %s185
          %s187 = sshll.u32 %s178, 4
          %s188 = int_to_ptr.vmem [resolvable:$true] %s187
          %193 = dma.hbm_to_vmem [thread:$0]  %s186, 8192, %s188, %s175, 256, 256, 16
        $region28: #{dwconv.1} parent=23 // pred_fallthru
          _
      $region24: #{dwconv.1} parent=5 // pred_fallthru
        _
      %p194 = scmp.le.s32.totalorder 1, %s15
      %p195 = scmp.lt.s32.totalorder %s15, 3
      %p196 = pnand %p194, %p195
      %p197 = pneg %p196
      // Predicated region
      $region29: #{dwconv.1} parent=5 // pred_check
        _
      $region30: #{dwconv.1} parent=5 // pred_check_branch
        %199 = sbr.rel (%p196) target = $region32
      $region31: #{dwconv.1} parent=5 // pred_region
        %s200 = ssub.s32 %s15, 1
        %s201 = sand.u32 %s42, 1
        %s202 = scalar_lea.sflag [#allocation4], %s201
        %s203 = sand.u32 %s42, 1
        %s204 = smul.addr %s203, 512
        %s205 = scalar_lea.vmem [#allocation3], %s204
        // Predicated region
        $region33: #{dwconv.1} parent=31 // pred_check
          %p206 = pneg %p55
        $region34: #{dwconv.1} parent=31 // pred_check_branch
          %208 = sbr.rel (%p206) target = $region36
        $region35: #{dwconv.1} parent=31 // pred_region
          %209 = dma.done %s202, 8192
        $region36: #{dwconv.1} parent=31 // pred_fallthru
          _
        %s210 = sand.u32 %s42, 1
        %s211 = scalar_lea.sflag [#allocation4], %s210
        %s212 = sand.u32 %s42, 1
        %s213 = smul.addr %s212, 512
        %s214 = scalar_lea.vmem [#allocation3], %s213
        %p215 = pneg %p55
        %p216 = pneg %p52
        %s217 = smul.u32 2, %s24
        %p218 = scmp.lt.s32.totalorder %s217, 1
        %s219 = scalar_select %p218, %s217, 1
        %s220 = smul.addr %s219, 4
        %s221 = scalar_lea.vmem %s1, %s220
        %p222 = pneg %p81
        %p223 = pneg %p78
        %s224 = smul.u32 2, %s24
        %p225 = scmp.lt.s32.totalorder %s224, 1
        %s226 = scalar_select %p225, %s224, 1
        %s227 = scalar_lea.vmem %s2, %s226
        %p228 = pneg %p107
        %p229 = pneg %p104
        %p230 = pneg %p135
        %p231 = pneg %p132
        %s232 = sand.u32 %s122, 1
        %s233 = scalar_lea.sflag [#allocation5], %s232
        %s234 = sand.u32 %s122, 1
        %s235 = smul.addr %s234, 512
        %s236 = scalar_lea.vmem [#allocation6], %s235
        %s237 = smul.u32 2, %s24
        %s238 = smul.u32 2, %s24
        %p239 = scmp.lt.s32.totalorder %s238, 1
        %s240 = scalar_select %p239, %s238, 1
        %s241 = smul.addr %s240, 4
        %s242 = scalar_lea.vmem %s1, %s241
        %s243 = smul.u32 2, %s24
        %s244 = smul.u32 2, %s24
        %p245 = scmp.lt.s32.totalorder %s244, 1
        %s246 = scalar_select %p245, %s244, 1
        %s247 = scalar_lea.vmem %s2, %s246
        %s248 = smul.u32 2, %s24
        %s249 = smul.u32 2, %s24
        %250 = vst [vmem:[#allocation2] sm:$0xff] 0.0
        %251 = vst [vmem:[#allocation2 + $0x8] sm:$0xff] 0.0
        %252 = vst [vmem:[#allocation2 + $0x10] sm:$0xff] 0.0
        %253 = vst [vmem:[#allocation2 + $0x18] sm:$0xff] 0.0
        %254 = vst [vmem:[#allocation2 + $0x20] sm:$0x3] 0.0
        %255 = vst [vmem:[#allocation2 + $0x28] sm:$0x3] 0.0
        %s256 = scalar_lea.vmem [#allocation2], 816
        %257 = vst [vmem:[%s256] sm:$0xff] 0.0
        %258 = vst [vmem:[%s256 + $0x8] sm:$0xff] 0.0
        %259 = vst [vmem:[%s256 + $0x10] sm:$0xff] 0.0
        %260 = vst [vmem:[%s256 + $0x18] sm:$0xff] 0.0
        %261 = vst [vmem:[%s256 + $0x20] sm:$0x3] 0.0
        %262 = vst [vmem:[%s256 + $0x28] sm:$0x3] 0.0
        %s263 = scalar_lea.vmem [#allocation2], 48
        %v264 = vlaneseq
        %vm265 = vcmp.ge.s32.totalorder %v264, 0
        %vm266 = vcmp.lt.s32.totalorder %v264, 256
        %vm267 = vmand %vm265, %vm266
        %268 = vst.msk [vmem:[%s263] ss:$8 sm:$0x3] %vm267, 0.0
        %269 = vst.msk [vmem:[%s263] ss:$8 sm:$0x0] %vm267, 0.0
        %s270 = scalar_lea.vmem %s263, 48 [#allocation2]
        %271 = vst.msk [vmem:[%s270] ss:$8 sm:$0x3] %vm267, 0.0
        %272 = vst.msk [vmem:[%s270] ss:$8 sm:$0x0] %vm267, 0.0
        %s273 = scalar_lea.vmem %s263, 96 [#allocation2]
        %274 = vst.msk [vmem:[%s273] ss:$8 sm:$0x3] %vm267, 0.0
        %275 = vst.msk [vmem:[%s273] ss:$8 sm:$0x0] %vm267, 0.0
        %s276 = scalar_lea.vmem %s263, 144 [#allocation2]
        %277 = vst.msk [vmem:[%s276] ss:$8 sm:$0x3] %vm267, 0.0
        %278 = vst.msk [vmem:[%s276] ss:$8 sm:$0x0] %vm267, 0.0
        %s279 = scalar_lea.vmem %s263, 192 [#allocation2]
        %280 = vst.msk [vmem:[%s279] ss:$8 sm:$0x3] %vm267, 0.0
        %281 = vst.msk [vmem:[%s279] ss:$8 sm:$0x0] %vm267, 0.0
        %s282 = scalar_lea.vmem %s263, 240 [#allocation2]
        %283 = vst.msk [vmem:[%s282] ss:$8 sm:$0x3] %vm267, 0.0
        %284 = vst.msk [vmem:[%s282] ss:$8 sm:$0x0] %vm267, 0.0
        %s285 = scalar_lea.vmem %s263, 288 [#allocation2]
        %286 = vst.msk [vmem:[%s285] ss:$8 sm:$0x3] %vm267, 0.0
        %287 = vst.msk [vmem:[%s285] ss:$8 sm:$0x0] %vm267, 0.0
        %s288 = scalar_lea.vmem %s263, 336 [#allocation2]
        %289 = vst.msk [vmem:[%s288] ss:$8 sm:$0x3] %vm267, 0.0
        %290 = vst.msk [vmem:[%s288] ss:$8 sm:$0x0] %vm267, 0.0
        %s291 = scalar_lea.vmem %s263, 384 [#allocation2]
        %292 = vst.msk [vmem:[%s291] ss:$8 sm:$0x3] %vm267, 0.0
        %293 = vst.msk [vmem:[%s291] ss:$8 sm:$0x0] %vm267, 0.0
        %s294 = scalar_lea.vmem %s263, 432 [#allocation2]
        %295 = vst.msk [vmem:[%s294] ss:$8 sm:$0x3] %vm267, 0.0
        %296 = vst.msk [vmem:[%s294] ss:$8 sm:$0x0] %vm267, 0.0
        %s297 = scalar_lea.vmem %s263, 480 [#allocation2]
        %298 = vst.msk [vmem:[%s297] ss:$8 sm:$0x3] %vm267, 0.0
        %299 = vst.msk [vmem:[%s297] ss:$8 sm:$0x0] %vm267, 0.0
        %s300 = scalar_lea.vmem %s263, 528 [#allocation2]
        %301 = vst.msk [vmem:[%s300] ss:$8 sm:$0x3] %vm267, 0.0
        %302 = vst.msk [vmem:[%s300] ss:$8 sm:$0x0] %vm267, 0.0
        %s303 = scalar_lea.vmem %s263, 576 [#allocation2]
        %304 = vst.msk [vmem:[%s303] ss:$8 sm:$0x3] %vm267, 0.0
        %305 = vst.msk [vmem:[%s303] ss:$8 sm:$0x0] %vm267, 0.0
        %s306 = scalar_lea.vmem %s263, 624 [#allocation2]
        %307 = vst.msk [vmem:[%s306] ss:$8 sm:$0x3] %vm267, 0.0
        %308 = vst.msk [vmem:[%s306] ss:$8 sm:$0x0] %vm267, 0.0
        %s309 = scalar_lea.vmem %s263, 672 [#allocation2]
        %310 = vst.msk [vmem:[%s309] ss:$8 sm:$0x3] %vm267, 0.0
        %311 = vst.msk [vmem:[%s309] ss:$8 sm:$0x0] %vm267, 0.0
        %s312 = scalar_lea.vmem %s263, 720 [#allocation2]
        %313 = vst.msk [vmem:[%s312] ss:$8 sm:$0x3] %vm267, 0.0
        %314 = vst.msk [vmem:[%s312] ss:$8 sm:$0x0] %vm267, 0.0
        %s315 = scalar_lea.vmem %s263, 33 [#allocation2]
        %316 = vst.msk [vmem:[%s315] ss:$8 sm:$0x3] %vm267, 0.0
        %317 = vst.msk [vmem:[%s315] ss:$8 sm:$0x0] %vm267, 0.0
        %s318 = scalar_lea.vmem %s263, 81 [#allocation2]
        %319 = vst.msk [vmem:[%s318] ss:$8 sm:$0x3] %vm267, 0.0
        %320 = vst.msk [vmem:[%s318] ss:$8 sm:$0x0] %vm267, 0.0
        %s321 = scalar_lea.vmem %s263, 129 [#allocation2]
        %322 = vst.msk [vmem:[%s321] ss:$8 sm:$0x3] %vm267, 0.0
        %323 = vst.msk [vmem:[%s321] ss:$8 sm:$0x0] %vm267, 0.0
        %s324 = scalar_lea.vmem %s263, 177 [#allocation2]
        %325 = vst.msk [vmem:[%s324] ss:$8 sm:$0x3] %vm267, 0.0
        %326 = vst.msk [vmem:[%s324] ss:$8 sm:$0x0] %vm267, 0.0
        %s327 = scalar_lea.vmem %s263, 225 [#allocation2]
        %328 = vst.msk [vmem:[%s327] ss:$8 sm:$0x3] %vm267, 0.0
        %329 = vst.msk [vmem:[%s327] ss:$8 sm:$0x0] %vm267, 0.0
        %s330 = scalar_lea.vmem %s263, 273 [#allocation2]
        %331 = vst.msk [vmem:[%s330] ss:$8 sm:$0x3] %vm267, 0.0
        %332 = vst.msk [vmem:[%s330] ss:$8 sm:$0x0] %vm267, 0.0
        %s333 = scalar_lea.vmem %s263, 321 [#allocation2]
        %334 = vst.msk [vmem:[%s333] ss:$8 sm:$0x3] %vm267, 0.0
        %335 = vst.msk [vmem:[%s333] ss:$8 sm:$0x0] %vm267, 0.0
        %s336 = scalar_lea.vmem %s263, 369 [#allocation2]
        %337 = vst.msk [vmem:[%s336] ss:$8 sm:$0x3] %vm267, 0.0
        %338 = vst.msk [vmem:[%s336] ss:$8 sm:$0x0] %vm267, 0.0
        %s339 = scalar_lea.vmem %s263, 417 [#allocation2]
        %340 = vst.msk [vmem:[%s339] ss:$8 sm:$0x3] %vm267, 0.0
        %341 = vst.msk [vmem:[%s339] ss:$8 sm:$0x0] %vm267, 0.0
        %s342 = scalar_lea.vmem %s263, 465 [#allocation2]
        %343 = vst.msk [vmem:[%s342] ss:$8 sm:$0x3] %vm267, 0.0
        %344 = vst.msk [vmem:[%s342] ss:$8 sm:$0x0] %vm267, 0.0
        %s345 = scalar_lea.vmem %s263, 513 [#allocation2]
        %346 = vst.msk [vmem:[%s345] ss:$8 sm:$0x3] %vm267, 0.0
        %347 = vst.msk [vmem:[%s345] ss:$8 sm:$0x0] %vm267, 0.0
        %s348 = scalar_lea.vmem %s263, 561 [#allocation2]
        %349 = vst.msk [vmem:[%s348] ss:$8 sm:$0x3] %vm267, 0.0
        %350 = vst.msk [vmem:[%s348] ss:$8 sm:$0x0] %vm267, 0.0
        %s351 = scalar_lea.vmem %s263, 609 [#allocation2]
        %352 = vst.msk [vmem:[%s351] ss:$8 sm:$0x3] %vm267, 0.0
        %353 = vst.msk [vmem:[%s351] ss:$8 sm:$0x0] %vm267, 0.0
        %s354 = scalar_lea.vmem %s263, 657 [#allocation2]
        %355 = vst.msk [vmem:[%s354] ss:$8 sm:$0x3] %vm267, 0.0
        %356 = vst.msk [vmem:[%s354] ss:$8 sm:$0x0] %vm267, 0.0
        %s357 = scalar_lea.vmem %s263, 705 [#allocation2]
        %358 = vst.msk [vmem:[%s357] ss:$8 sm:$0x3] %vm267, 0.0
        %359 = vst.msk [vmem:[%s357] ss:$8 sm:$0x0] %vm267, 0.0
        %s360 = scalar_lea.vmem %s263, 753 [#allocation2]
        %361 = vst.msk [vmem:[%s360] ss:$8 sm:$0x3] %vm267, 0.0
        %362 = vst.msk [vmem:[%s360] ss:$8 sm:$0x0] %vm267, 0.0
        %v363 = vld [vmem:[%s205] sm:$0xff]
        %v364 = vld [vmem:[%s205 + $0x8] sm:$0xff]
        %v365 = vld [vmem:[%s205 + $0x10] sm:$0xff]
        %v366 = vld [vmem:[%s205 + $0x18] sm:$0xff]
        %v367 = vld [vmem:[%s205 + $0x20] sm:$0xff]
        %v368 = vld [vmem:[%s205 + $0x28] sm:$0xff]
        %v369 = vld [vmem:[%s205 + $0x30] sm:$0xff]
        %v370 = vld [vmem:[%s205 + $0x38] sm:$0xff]
        %v371 = vld [vmem:[%s205 + $0x40] sm:$0xff]
        %v372 = vld [vmem:[%s205 + $0x48] sm:$0xff]
        %v373 = vld [vmem:[%s205 + $0x50] sm:$0xff]
        %v374 = vld [vmem:[%s205 + $0x58] sm:$0xff]
        %v375 = vld [vmem:[%s205 + $0x60] sm:$0xff]
        %v376 = vld [vmem:[%s205 + $0x68] sm:$0xff]
        %v377 = vld [vmem:[%s205 + $0x70] sm:$0xff]
        %v378 = vld [vmem:[%s205 + $0x78] sm:$0xff]
        %v379 = vld [vmem:[%s205 + $0x80] sm:$0xff]
        %v380 = vld [vmem:[%s205 + $0x88] sm:$0xff]
        %v381 = vld [vmem:[%s205 + $0x90] sm:$0xff]
        %v382 = vld [vmem:[%s205 + $0x98] sm:$0xff]
        %v383 = vld [vmem:[%s205 + $0xa0] sm:$0xff]
        %v384 = vld [vmem:[%s205 + $0xa8] sm:$0xff]
        %v385 = vld [vmem:[%s205 + $0xb0] sm:$0xff]
        %v386 = vld [vmem:[%s205 + $0xb8] sm:$0xff]
        %v387 = vld [vmem:[%s205 + $0xc0] sm:$0xff]
        %v388 = vld [vmem:[%s205 + $0xc8] sm:$0xff]
        %v389 = vld [vmem:[%s205 + $0xd0] sm:$0xff]
        %v390 = vld [vmem:[%s205 + $0xd8] sm:$0xff]
        %v391 = vld [vmem:[%s205 + $0xe0] sm:$0xff]
        %v392 = vld [vmem:[%s205 + $0xe8] sm:$0xff]
        %v393 = vld [vmem:[%s205 + $0xf0] sm:$0xff]
        %v394 = vld [vmem:[%s205 + $0xf8] sm:$0xff]
        %v395 = vld [vmem:[%s205 + $0x100] sm:$0xff]
        %v396 = vld [vmem:[%s205 + $0x108] sm:$0xff]
        %v397 = vld [vmem:[%s205 + $0x110] sm:$0xff]
        %v398 = vld [vmem:[%s205 + $0x118] sm:$0xff]
        %v399 = vld [vmem:[%s205 + $0x120] sm:$0xff]
        %v400 = vld [vmem:[%s205 + $0x128] sm:$0xff]
        %v401 = vld [vmem:[%s205 + $0x130] sm:$0xff]
        %v402 = vld [vmem:[%s205 + $0x138] sm:$0xff]
        %v403 = vld [vmem:[%s205 + $0x140] sm:$0xff]
        %v404 = vld [vmem:[%s205 + $0x148] sm:$0xff]
        %v405 = vld [vmem:[%s205 + $0x150] sm:$0xff]
        %v406 = vld [vmem:[%s205 + $0x158] sm:$0xff]
        %v407 = vld [vmem:[%s205 + $0x160] sm:$0xff]
        %v408 = vld [vmem:[%s205 + $0x168] sm:$0xff]
        %v409 = vld [vmem:[%s205 + $0x170] sm:$0xff]
        %v410 = vld [vmem:[%s205 + $0x178] sm:$0xff]
        %v411 = vld [vmem:[%s205 + $0x180] sm:$0xff]
        %v412 = vld [vmem:[%s205 + $0x188] sm:$0xff]
        %v413 = vld [vmem:[%s205 + $0x190] sm:$0xff]
        %v414 = vld [vmem:[%s205 + $0x198] sm:$0xff]
        %v415 = vld [vmem:[%s205 + $0x1a0] sm:$0xff]
        %v416 = vld [vmem:[%s205 + $0x1a8] sm:$0xff]
        %v417 = vld [vmem:[%s205 + $0x1b0] sm:$0xff]
        %v418 = vld [vmem:[%s205 + $0x1b8] sm:$0xff]
        %v419 = vld [vmem:[%s205 + $0x1c0] sm:$0xff]
        %v420 = vld [vmem:[%s205 + $0x1c8] sm:$0xff]
        %v421 = vld [vmem:[%s205 + $0x1d0] sm:$0xff]
        %v422 = vld [vmem:[%s205 + $0x1d8] sm:$0xff]
        %v423 = vld [vmem:[%s205 + $0x1e0] sm:$0xff]
        %v424 = vld [vmem:[%s205 + $0x1e8] sm:$0xff]
        %v425 = vld [vmem:[%s205 + $0x1f0] sm:$0xff]
        %v426 = vld [vmem:[%s205 + $0x1f8] sm:$0xff]
        %vm491 = vcmask 1040384
        %v492 = vrot.slane %v363, 7
        %v493 = vrot.slane %v364, 7
        %v494 = vrot.slane %v365, 7
        %v495 = vsel %vm491, %v492, %v494
        %v496 = vrot.slane %v366, 7
        %v497 = vsel %vm491, %v493, %v496
        %v498 = vrot.slane %v367, 7
        %v499 = vrot.slane %v368, 7
        %v500 = vrot.slane %v369, 7
        %v501 = vsel %vm491, %v498, %v500
        %v502 = vrot.slane %v370, 7
        %v503 = vsel %vm491, %v499, %v502
        %v504 = vrot.slane %v371, 7
        %v505 = vrot.slane %v372, 7
        %v506 = vrot.slane %v373, 7
        %v507 = vsel %vm491, %v504, %v506
        %v508 = vrot.slane %v374, 7
        %v509 = vsel %vm491, %v505, %v508
        %v510 = vrot.slane %v375, 7
        %v511 = vrot.slane %v376, 7
        %v512 = vrot.slane %v377, 7
        %v513 = vsel %vm491, %v510, %v512
        %v514 = vrot.slane %v378, 7
        %v515 = vsel %vm491, %v511, %v514
        %v516 = vrot.slane %v379, 7
        %v517 = vrot.slane %v380, 7
        %v518 = vrot.slane %v381, 7
        %v519 = vsel %vm491, %v516, %v518
        %v520 = vrot.slane %v382, 7
        %v521 = vsel %vm491, %v517, %v520
        %v522 = vrot.slane %v383, 7
        %v523 = vrot.slane %v384, 7
        %v524 = vrot.slane %v385, 7
        %v525 = vsel %vm491, %v522, %v524
        %v526 = vrot.slane %v386, 7
        %v527 = vsel %vm491, %v523, %v526
        %v528 = vrot.slane %v387, 7
        %v529 = vrot.slane %v388, 7
        %v530 = vrot.slane %v389, 7
        %v531 = vsel %vm491, %v528, %v530
        %v532 = vrot.slane %v390, 7
        %v533 = vsel %vm491, %v529, %v532
        %v534 = vrot.slane %v391, 7
        %v535 = vrot.slane %v392, 7
        %v536 = vrot.slane %v393, 7
        %v537 = vsel %vm491, %v534, %v536
        %v538 = vrot.slane %v394, 7
        %v539 = vsel %vm491, %v535, %v538
        %v540 = vrot.slane %v395, 7
        %v541 = vrot.slane %v396, 7
        %v542 = vrot.slane %v397, 7
        %v543 = vsel %vm491, %v540, %v542
        %v544 = vrot.slane %v398, 7
        %v545 = vsel %vm491, %v541, %v544
        %v546 = vrot.slane %v399, 7
        %v547 = vrot.slane %v400, 7
        %v548 = vrot.slane %v401, 7
        %v549 = vsel %vm491, %v546, %v548
        %v550 = vrot.slane %v402, 7
        %v551 = vsel %vm491, %v547, %v550
        %v552 = vrot.slane %v403, 7
        %v553 = vrot.slane %v404, 7
        %v554 = vrot.slane %v405, 7
        %v555 = vsel %vm491, %v552, %v554
        %v556 = vrot.slane %v406, 7
        %v557 = vsel %vm491, %v553, %v556
        %v558 = vrot.slane %v407, 7
        %v559 = vrot.slane %v408, 7
        %v560 = vrot.slane %v409, 7
        %v561 = vsel %vm491, %v558, %v560
        %v562 = vrot.slane %v410, 7
        %v563 = vsel %vm491, %v559, %v562
        %v564 = vrot.slane %v411, 7
        %v565 = vrot.slane %v412, 7
        %v566 = vrot.slane %v413, 7
        %v567 = vsel %vm491, %v564, %v566
        %v568 = vrot.slane %v414, 7
        %v569 = vsel %vm491, %v565, %v568
        %v570 = vrot.slane %v415, 7
        %v571 = vrot.slane %v416, 7
        %v572 = vrot.slane %v417, 7
        %v573 = vsel %vm491, %v570, %v572
        %v574 = vrot.slane %v418, 7
        %v575 = vsel %vm491, %v571, %v574
        %v576 = vrot.slane %v419, 7
        %v577 = vrot.slane %v420, 7
        %v578 = vrot.slane %v421, 7
        %v579 = vsel %vm491, %v576, %v578
        %v580 = vrot.slane %v422, 7
        %v581 = vsel %vm491, %v577, %v580
        %v582 = vrot.slane %v423, 7
        %v583 = vrot.slane %v424, 7
        %v584 = vrot.slane %v425, 7
        %v585 = vsel %vm491, %v582, %v584
        %v586 = vrot.slane %v426, 7
        %v587 = vsel %vm491, %v583, %v586
        %684 = vst [vmem:[%s263] sm:$0xfe] %v492
        %685 = vst [vmem:[%s263 + $0x8] sm:$0xfe] %v493
        %686 = vst [vmem:[%s263 + $0x10] sm:$0xff] %v495
        %687 = vst [vmem:[%s263 + $0x18] sm:$0xff] %v497
        %688 = vst [vmem:[%s263 + $0x20] sm:$0x1] %v494
        %689 = vst [vmem:[%s263 + $0x28] sm:$0x1] %v496
        %690 = vst [vmem:[%s263 + $0x30] sm:$0xfe] %v498
        %691 = vst [vmem:[%s263 + $0x38] sm:$0xfe] %v499
        %692 = vst [vmem:[%s263 + $0x40] sm:$0xff] %v501
        %693 = vst [vmem:[%s263 + $0x48] sm:$0xff] %v503
        %694 = vst [vmem:[%s263 + $0x50] sm:$0x1] %v500
        %695 = vst [vmem:[%s263 + $0x58] sm:$0x1] %v502
        %696 = vst [vmem:[%s263 + $0x60] sm:$0xfe] %v504
        %697 = vst [vmem:[%s263 + $0x68] sm:$0xfe] %v505
        %698 = vst [vmem:[%s263 + $0x70] sm:$0xff] %v507
        %699 = vst [vmem:[%s263 + $0x78] sm:$0xff] %v509
        %700 = vst [vmem:[%s263 + $0x80] sm:$0x1] %v506
        %701 = vst [vmem:[%s263 + $0x88] sm:$0x1] %v508
        %702 = vst [vmem:[%s263 + $0x90] sm:$0xfe] %v510
        %703 = vst [vmem:[%s263 + $0x98] sm:$0xfe] %v511
        %704 = vst [vmem:[%s263 + $0xa0] sm:$0xff] %v513
        %705 = vst [vmem:[%s263 + $0xa8] sm:$0xff] %v515
        %706 = vst [vmem:[%s263 + $0xb0] sm:$0x1] %v512
        %707 = vst [vmem:[%s263 + $0xb8] sm:$0x1] %v514
        %708 = vst [vmem:[%s263 + $0xc0] sm:$0xfe] %v516
        %709 = vst [vmem:[%s263 + $0xc8] sm:$0xfe] %v517
        %710 = vst [vmem:[%s263 + $0xd0] sm:$0xff] %v519
        %711 = vst [vmem:[%s263 + $0xd8] sm:$0xff] %v521
        %712 = vst [vmem:[%s263 + $0xe0] sm:$0x1] %v518
        %713 = vst [vmem:[%s263 + $0xe8] sm:$0x1] %v520
        %714 = vst [vmem:[%s263 + $0xf0] sm:$0xfe] %v522
        %715 = vst [vmem:[%s263 + $0xf8] sm:$0xfe] %v523
        %716 = vst [vmem:[%s263 + $0x100] sm:$0xff] %v525
        %717 = vst [vmem:[%s263 + $0x108] sm:$0xff] %v527
        %718 = vst [vmem:[%s263 + $0x110] sm:$0x1] %v524
        %719 = vst [vmem:[%s263 + $0x118] sm:$0x1] %v526
        %720 = vst [vmem:[%s263 + $0x120] sm:$0xfe] %v528
        %721 = vst [vmem:[%s263 + $0x128] sm:$0xfe] %v529
        %722 = vst [vmem:[%s263 + $0x130] sm:$0xff] %v531
        %723 = vst [vmem:[%s263 + $0x138] sm:$0xff] %v533
        %724 = vst [vmem:[%s263 + $0x140] sm:$0x1] %v530
        %725 = vst [vmem:[%s263 + $0x148] sm:$0x1] %v532
        %726 = vst [vmem:[%s263 + $0x150] sm:$0xfe] %v534
        %727 = vst [vmem:[%s263 + $0x158] sm:$0xfe] %v535
        %728 = vst [vmem:[%s263 + $0x160] sm:$0xff] %v537
        %729 = vst [vmem:[%s263 + $0x168] sm:$0xff] %v539
        %730 = vst [vmem:[%s263 + $0x170] sm:$0x1] %v536
        %731 = vst [vmem:[%s263 + $0x178] sm:$0x1] %v538
        %732 = vst [vmem:[%s263 + $0x180] sm:$0xfe] %v540
        %733 = vst [vmem:[%s263 + $0x188] sm:$0xfe] %v541
        %734 = vst [vmem:[%s263 + $0x190] sm:$0xff] %v543
        %735 = vst [vmem:[%s263 + $0x198] sm:$0xff] %v545
        %736 = vst [vmem:[%s263 + $0x1a0] sm:$0x1] %v542
        %737 = vst [vmem:[%s263 + $0x1a8] sm:$0x1] %v544
        %738 = vst [vmem:[%s263 + $0x1b0] sm:$0xfe] %v546
        %739 = vst [vmem:[%s263 + $0x1b8] sm:$0xfe] %v547
        %740 = vst [vmem:[%s263 + $0x1c0] sm:$0xff] %v549
        %741 = vst [vmem:[%s263 + $0x1c8] sm:$0xff] %v551
        %742 = vst [vmem:[%s263 + $0x1d0] sm:$0x1] %v548
        %743 = vst [vmem:[%s263 + $0x1d8] sm:$0x1] %v550
        %744 = vst [vmem:[%s263 + $0x1e0] sm:$0xfe] %v552
        %745 = vst [vmem:[%s263 + $0x1e8] sm:$0xfe] %v553
        %746 = vst [vmem:[%s263 + $0x1f0] sm:$0xff] %v555
        %747 = vst [vmem:[%s263 + $0x1f8] sm:$0xff] %v557
        %748 = vst [vmem:[%s263 + $0x200] sm:$0x1] %v554
        %749 = vst [vmem:[%s263 + $0x208] sm:$0x1] %v556
        %750 = vst [vmem:[%s263 + $0x210] sm:$0xfe] %v558
        %751 = vst [vmem:[%s263 + $0x218] sm:$0xfe] %v559
        %752 = vst [vmem:[%s263 + $0x220] sm:$0xff] %v561
        %753 = vst [vmem:[%s263 + $0x228] sm:$0xff] %v563
        %754 = vst [vmem:[%s263 + $0x230] sm:$0x1] %v560
        %755 = vst [vmem:[%s263 + $0x238] sm:$0x1] %v562
        %756 = vst [vmem:[%s263 + $0x240] sm:$0xfe] %v564
        %757 = vst [vmem:[%s263 + $0x248] sm:$0xfe] %v565
        %758 = vst [vmem:[%s263 + $0x250] sm:$0xff] %v567
        %759 = vst [vmem:[%s263 + $0x258] sm:$0xff] %v569
        %760 = vst [vmem:[%s263 + $0x260] sm:$0x1] %v566
        %761 = vst [vmem:[%s263 + $0x268] sm:$0x1] %v568
        %762 = vst [vmem:[%s263 + $0x270] sm:$0xfe] %v570
        %763 = vst [vmem:[%s263 + $0x278] sm:$0xfe] %v571
        %764 = vst [vmem:[%s263 + $0x280] sm:$0xff] %v573
        %765 = vst [vmem:[%s263 + $0x288] sm:$0xff] %v575
        %766 = vst [vmem:[%s263 + $0x290] sm:$0x1] %v572
        %767 = vst [vmem:[%s263 + $0x298] sm:$0x1] %v574
        %768 = vst [vmem:[%s263 + $0x2a0] sm:$0xfe] %v576
        %769 = vst [vmem:[%s263 + $0x2a8] sm:$0xfe] %v577
        %770 = vst [vmem:[%s263 + $0x2b0] sm:$0xff] %v579
        %771 = vst [vmem:[%s263 + $0x2b8] sm:$0xff] %v581
        %772 = vst [vmem:[%s263 + $0x2c0] sm:$0x1] %v578
        %773 = vst [vmem:[%s263 + $0x2c8] sm:$0x1] %v580
        %774 = vst [vmem:[%s263 + $0x2d0] sm:$0xfe] %v582
        %775 = vst [vmem:[%s263 + $0x2d8] sm:$0xfe] %v583
        %776 = vst [vmem:[%s263 + $0x2e0] sm:$0xff] %v585
        %777 = vst [vmem:[%s263 + $0x2e8] sm:$0xff] %v587
        %778 = vst [vmem:[%s263 + $0x2f0] sm:$0x1] %v584
        %779 = vst [vmem:[%s263 + $0x2f8] sm:$0x1] %v586
        %v780 = vld [vmem:[%s242] sm:$0x77]
        %v781 = vld [vmem:[%s242 + $0x8] sm:$0x77]
        %v782 = vld [vmem:[%s242 + $0x10] sm:$0x77]
        %v783 = vld [vmem:[%s247] sm:$0x3]
        %v784 = vld [vmem:[#allocation2] sm:$0xff]
        %v785 = vld [vmem:[#allocation2 + $0x8] sm:$0xff]
        %v786 = vld [vmem:[#allocation2 + $0x10] sm:$0xff]
        %v787 = vld [vmem:[#allocation2 + $0x18] sm:$0xff]
        %v788 = vld [vmem:[#allocation2 + $0x30] sm:$0xff]
        %v789 = vld [vmem:[#allocation2 + $0x38] sm:$0xff]
        %v790 = vld [vmem:[#allocation2 + $0x40] sm:$0xff]
        %v791 = vld [vmem:[#allocation2 + $0x48] sm:$0xff]
        %v792 = vld [vmem:[#allocation2 + $0x60] sm:$0xff]
        %v793 = vld [vmem:[#allocation2 + $0x68] sm:$0xff]
        %v794 = vld [vmem:[#allocation2 + $0x70] sm:$0xff]
        %v795 = vld [vmem:[#allocation2 + $0x78] sm:$0xff]
        %v796 = vld [vmem:[#allocation2 + $0x90] sm:$0xff]
        %v797 = vld [vmem:[#allocation2 + $0x98] sm:$0xff]
        %v798 = vld [vmem:[#allocation2 + $0xa0] sm:$0xff]
        %v799 = vld [vmem:[#allocation2 + $0xa8] sm:$0xff]
        %v800 = vld [vmem:[#allocation2 + $0xc0] sm:$0xff]
        %v801 = vld [vmem:[#allocation2 + $0xc8] sm:$0xff]
        %v802 = vld [vmem:[#allocation2 + $0xd0] sm:$0xff]
        %v803 = vld [vmem:[#allocation2 + $0xd8] sm:$0xff]
        %v804 = vld [vmem:[#allocation2 + $0xf0] sm:$0xff]
        %v805 = vld [vmem:[#allocation2 + $0xf8] sm:$0xff]
        %v806 = vld [vmem:[#allocation2 + $0x100] sm:$0xff]
        %v807 = vld [vmem:[#allocation2 + $0x108] sm:$0xff]
        %v808 = vld [vmem:[#allocation2 + $0x120] sm:$0xff]
        %v809 = vld [vmem:[#allocation2 + $0x128] sm:$0xff]
        %v810 = vld [vmem:[#allocation2 + $0x130] sm:$0xff]
        %v811 = vld [vmem:[#allocation2 + $0x138] sm:$0xff]
        %v812 = vld [vmem:[#allocation2 + $0x150] sm:$0xff]
        %v813 = vld [vmem:[#allocation2 + $0x158] sm:$0xff]
        %v814 = vld [vmem:[#allocation2 + $0x160] sm:$0xff]
        %v815 = vld [vmem:[#allocation2 + $0x168] sm:$0xff]
        %v816 = vld [vmem:[#allocation2 + $0x180] sm:$0xff]
        %v817 = vld [vmem:[#allocation2 + $0x188] sm:$0xff]
        %v818 = vld [vmem:[#allocation2 + $0x190] sm:$0xff]
        %v819 = vld [vmem:[#allocation2 + $0x198] sm:$0xff]
        %v820 = vld [vmem:[#allocation2 + $0x1b0] sm:$0xff]
        %v821 = vld [vmem:[#allocation2 + $0x1b8] sm:$0xff]
        %v822 = vld [vmem:[#allocation2 + $0x1c0] sm:$0xff]
        %v823 = vld [vmem:[#allocation2 + $0x1c8] sm:$0xff]
        %v824 = vld [vmem:[#allocation2 + $0x1e0] sm:$0xff]
        %v825 = vld [vmem:[#allocation2 + $0x1e8] sm:$0xff]
        %v826 = vld [vmem:[#allocation2 + $0x1f0] sm:$0xff]
        %v827 = vld [vmem:[#allocation2 + $0x1f8] sm:$0xff]
        %v828 = vld [vmem:[#allocation2 + $0x210] sm:$0xff]
        %v829 = vld [vmem:[#allocation2 + $0x218] sm:$0xff]
        %v830 = vld [vmem:[#allocation2 + $0x220] sm:$0xff]
        %v831 = vld [vmem:[#allocation2 + $0x228] sm:$0xff]
        %v832 = vld [vmem:[#allocation2 + $0x240] sm:$0xff]
        %v833 = vld [vmem:[#allocation2 + $0x248] sm:$0xff]
        %v834 = vld [vmem:[#allocation2 + $0x250] sm:$0xff]
        %v835 = vld [vmem:[#allocation2 + $0x258] sm:$0xff]
        %v836 = vld [vmem:[#allocation2 + $0x270] sm:$0xff]
        %v837 = vld [vmem:[#allocation2 + $0x278] sm:$0xff]
        %v838 = vld [vmem:[#allocation2 + $0x280] sm:$0xff]
        %v839 = vld [vmem:[#allocation2 + $0x288] sm:$0xff]
        %v840 = vld [vmem:[#allocation2 + $0x2a0] sm:$0xff]
        %v841 = vld [vmem:[#allocation2 + $0x2a8] sm:$0xff]
        %v842 = vld [vmem:[#allocation2 + $0x2b0] sm:$0xff]
        %v843 = vld [vmem:[#allocation2 + $0x2b8] sm:$0xff]
        %v844 = vld [vmem:[#allocation2 + $0x2d0] sm:$0xff]
        %v845 = vld [vmem:[#allocation2 + $0x2d8] sm:$0xff]
        %v846 = vld [vmem:[#allocation2 + $0x2e0] sm:$0xff]
        %v847 = vld [vmem:[#allocation2 + $0x2e8] sm:$0xff]
        %v849 = vlaneseq
        %v850 = vshrl.u32 %v849, 7
        %v851 = vsub.s32 0, %v850
        %v852 = vrot.slane %v780, %v851
        %v853 = vlaneseq
        %v854 = vshrl.u32 %v853, 7
        %v855 = vsub.s32 4, %v854
        %v856 = vrot.slane %v780, %v855
        %v859 = vlaneseq
        %v860 = vshrl.u32 %v859, 7
        %v861 = vsub.s32 0, %v860
        %v862 = vrot.slane %v852, %v861
        %v863 = vlaneseq
        %v864 = vshrl.u32 %v863, 7
        %v865 = vsub.s32 0, %v864
        %v866 = vrot.slane %v856, %v865
        %v867 = vmul.f32 %v784, %v862
        %v868 = vmul.f32 %v785, %v866
        %v869 = vmul.f32 %v786, %v862
        %v870 = vmul.f32 %v787, %v866
        %v871 = vmul.f32 %v788, %v862
        %v872 = vmul.f32 %v789, %v866
        %v873 = vmul.f32 %v790, %v862
        %v874 = vmul.f32 %v791, %v866
        %v875 = vmul.f32 %v792, %v862
        %v876 = vmul.f32 %v793, %v866
        %v877 = vmul.f32 %v794, %v862
        %v878 = vmul.f32 %v795, %v866
        %v879 = vmul.f32 %v796, %v862
        %v880 = vmul.f32 %v797, %v866
        %v881 = vmul.f32 %v798, %v862
        %v882 = vmul.f32 %v799, %v866
        %v883 = vmul.f32 %v800, %v862
        %v884 = vmul.f32 %v801, %v866
        %v885 = vmul.f32 %v802, %v862
        %v886 = vmul.f32 %v803, %v866
        %v887 = vmul.f32 %v804, %v862
        %v888 = vmul.f32 %v805, %v866
        %v889 = vmul.f32 %v806, %v862
        %v890 = vmul.f32 %v807, %v866
        %v891 = vmul.f32 %v808, %v862
        %v892 = vmul.f32 %v809, %v866
        %v893 = vmul.f32 %v810, %v862
        %v894 = vmul.f32 %v811, %v866
        %v895 = vmul.f32 %v812, %v862
        %v896 = vmul.f32 %v813, %v866
        %v897 = vmul.f32 %v814, %v862
        %v898 = vmul.f32 %v815, %v866
        %v899 = vmul.f32 %v816, %v862
        %v900 = vmul.f32 %v817, %v866
        %v901 = vmul.f32 %v818, %v862
        %v902 = vmul.f32 %v819, %v866
        %v903 = vmul.f32 %v820, %v862
        %v904 = vmul.f32 %v821, %v866
        %v905 = vmul.f32 %v822, %v862
        %v906 = vmul.f32 %v823, %v866
        %v907 = vmul.f32 %v824, %v862
        %v908 = vmul.f32 %v825, %v866
        %v909 = vmul.f32 %v826, %v862
        %v910 = vmul.f32 %v827, %v866
        %v911 = vmul.f32 %v828, %v862
        %v912 = vmul.f32 %v829, %v866
        %v913 = vmul.f32 %v830, %v862
        %v914 = vmul.f32 %v831, %v866
        %v915 = vmul.f32 %v832, %v862
        %v916 = vmul.f32 %v833, %v866
        %v917 = vmul.f32 %v834, %v862
        %v918 = vmul.f32 %v835, %v866
        %v919 = vmul.f32 %v836, %v862
        %v920 = vmul.f32 %v837, %v866
        %v921 = vmul.f32 %v838, %v862
        %v922 = vmul.f32 %v839, %v866
        %v923 = vmul.f32 %v840, %v862
        %v924 = vmul.f32 %v841, %v866
        %v925 = vmul.f32 %v842, %v862
        %v926 = vmul.f32 %v843, %v866
        %v927 = vmul.f32 %v844, %v862
        %v928 = vmul.f32 %v845, %v866
        %v929 = vmul.f32 %v846, %v862
        %v930 = vmul.f32 %v847, %v866
        %v931 = vld [vmem:[#allocation2] sm:$0xfe]
        %v932 = vld [vmem:[#allocation2 + $0x8] sm:$0xfe]
        %v933 = vld [vmem:[#allocation2 + $0x20] sm:$0x1]
        %v934 = vld [vmem:[#allocation2 + $0x28] sm:$0x1]
        %v935 = vld [vmem:[#allocation2 + $0x30] sm:$0xfe]
        %v936 = vld [vmem:[#allocation2 + $0x38] sm:$0xfe]
        %v937 = vld [vmem:[#allocation2 + $0x50] sm:$0x1]
        %v938 = vld [vmem:[#allocation2 + $0x58] sm:$0x1]
        %v939 = vld [vmem:[#allocation2 + $0x60] sm:$0xfe]
        %v940 = vld [vmem:[#allocation2 + $0x68] sm:$0xfe]
        %v941 = vld [vmem:[#allocation2 + $0x80] sm:$0x1]
        %v942 = vld [vmem:[#allocation2 + $0x88] sm:$0x1]
        %v943 = vld [vmem:[#allocation2 + $0x90] sm:$0xfe]
        %v944 = vld [vmem:[#allocation2 + $0x98] sm:$0xfe]
        %v945 = vld [vmem:[#allocation2 + $0xb0] sm:$0x1]
        %v946 = vld [vmem:[#allocation2 + $0xb8] sm:$0x1]
        %v947 = vld [vmem:[#allocation2 + $0xc0] sm:$0xfe]
        %v948 = vld [vmem:[#allocation2 + $0xc8] sm:$0xfe]
        %v949 = vld [vmem:[#allocation2 + $0xe0] sm:$0x1]
        %v950 = vld [vmem:[#allocation2 + $0xe8] sm:$0x1]
        %v951 = vld [vmem:[#allocation2 + $0xf0] sm:$0xfe]
        %v952 = vld [vmem:[#allocation2 + $0xf8] sm:$0xfe]
        %v953 = vld [vmem:[#allocation2 + $0x110] sm:$0x1]
        %v954 = vld [vmem:[#allocation2 + $0x118] sm:$0x1]
        %v955 = vld [vmem:[#allocation2 + $0x120] sm:$0xfe]
        %v956 = vld [vmem:[#allocation2 + $0x128] sm:$0xfe]
        %v957 = vld [vmem:[#allocation2 + $0x140] sm:$0x1]
        %v958 = vld [vmem:[#allocation2 + $0x148] sm:$0x1]
        %v959 = vld [vmem:[#allocation2 + $0x150] sm:$0xfe]
        %v960 = vld [vmem:[#allocation2 + $0x158] sm:$0xfe]
        %v961 = vld [vmem:[#allocation2 + $0x170] sm:$0x1]
        %v962 = vld [vmem:[#allocation2 + $0x178] sm:$0x1]
        %v963 = vld [vmem:[#allocation2 + $0x180] sm:$0xfe]
        %v964 = vld [vmem:[#allocation2 + $0x188] sm:$0xfe]
        %v965 = vld [vmem:[#allocation2 + $0x1a0] sm:$0x1]
        %v966 = vld [vmem:[#allocation2 + $0x1a8] sm:$0x1]
        %v967 = vld [vmem:[#allocation2 + $0x1b0] sm:$0xfe]
        %v968 = vld [vmem:[#allocation2 + $0x1b8] sm:$0xfe]
        %v969 = vld [vmem:[#allocation2 + $0x1d0] sm:$0x1]
        %v970 = vld [vmem:[#allocation2 + $0x1d8] sm:$0x1]
        %v971 = vld [vmem:[#allocation2 + $0x1e0] sm:$0xfe]
        %v972 = vld [vmem:[#allocation2 + $0x1e8] sm:$0xfe]
        %v973 = vld [vmem:[#allocation2 + $0x200] sm:$0x1]
        %v974 = vld [vmem:[#allocation2 + $0x208] sm:$0x1]
        %v975 = vld [vmem:[#allocation2 + $0x210] sm:$0xfe]
        %v976 = vld [vmem:[#allocation2 + $0x218] sm:$0xfe]
        %v977 = vld [vmem:[#allocation2 + $0x230] sm:$0x1]
        %v978 = vld [vmem:[#allocation2 + $0x238] sm:$0x1]
        %v979 = vld [vmem:[#allocation2 + $0x240] sm:$0xfe]
        %v980 = vld [vmem:[#allocation2 + $0x248] sm:$0xfe]
        %v981 = vld [vmem:[#allocation2 + $0x260] sm:$0x1]
        %v982 = vld [vmem:[#allocation2 + $0x268] sm:$0x1]
        %v983 = vld [vmem:[#allocation2 + $0x270] sm:$0xfe]
        %v984 = vld [vmem:[#allocation2 + $0x278] sm:$0xfe]
        %v985 = vld [vmem:[#allocation2 + $0x290] sm:$0x1]
        %v986 = vld [vmem:[#allocation2 + $0x298] sm:$0x1]
        %v987 = vld [vmem:[#allocation2 + $0x2a0] sm:$0xfe]
        %v988 = vld [vmem:[#allocation2 + $0x2a8] sm:$0xfe]
        %v989 = vld [vmem:[#allocation2 + $0x2c0] sm:$0x1]
        %v990 = vld [vmem:[#allocation2 + $0x2c8] sm:$0x1]
        %v991 = vld [vmem:[#allocation2 + $0x2d0] sm:$0xfe]
        %v992 = vld [vmem:[#allocation2 + $0x2d8] sm:$0xfe]
        %v993 = vld [vmem:[#allocation2 + $0x2f0] sm:$0x1]
        %v994 = vld [vmem:[#allocation2 + $0x2f8] sm:$0x1]
        %v995 = vlaneseq
        %v996 = vshrl.u32 %v995, 7
        %v997 = vsub.s32 1, %v996
        %v998 = vrot.slane %v780, %v997
        %v999 = vlaneseq
        %v1000 = vshrl.u32 %v999, 7
        %v1001 = vsub.s32 5, %v1000
        %v1002 = vrot.slane %v780, %v1001
        %v1005 = vlaneseq
        %v1006 = vshrl.u32 %v1005, 7
        %v1007 = vsub.s32 1, %v1006
        %v1008 = vrot.slane %v998, %v1007
        %v1009 = vlaneseq
        %v1010 = vshrl.u32 %v1009, 7
        %v1011 = vsub.s32 1, %v1010
        %v1012 = vrot.slane %v1002, %v1011
        %v1013 = vmul.f32 %v931, %v1008
        %v1014 = vmul.f32 %v932, %v1012
        %v1015 = vmul.f32 %v786, %v1008
        %v1016 = vmul.f32 %v787, %v1012
        %v1017 = vmul.f32 %v933, %v1008
        %v1018 = vmul.f32 %v934, %v1012
        %v1019 = vmul.f32 %v935, %v1008
        %v1020 = vmul.f32 %v936, %v1012
        %v1021 = vmul.f32 %v790, %v1008
        %v1022 = vmul.f32 %v791, %v1012
        %v1023 = vmul.f32 %v937, %v1008
        %v1024 = vmul.f32 %v938, %v1012
        %v1025 = vmul.f32 %v939, %v1008
        %v1026 = vmul.f32 %v940, %v1012
        %v1027 = vmul.f32 %v794, %v1008
        %v1028 = vmul.f32 %v795, %v1012
        %v1029 = vmul.f32 %v941, %v1008
        %v1030 = vmul.f32 %v942, %v1012
        %v1031 = vmul.f32 %v943, %v1008
        %v1032 = vmul.f32 %v944, %v1012
        %v1033 = vmul.f32 %v798, %v1008
        %v1034 = vmul.f32 %v799, %v1012
        %v1035 = vmul.f32 %v945, %v1008
        %v1036 = vmul.f32 %v946, %v1012
        %v1037 = vmul.f32 %v947, %v1008
        %v1038 = vmul.f32 %v948, %v1012
        %v1039 = vmul.f32 %v802, %v1008
        %v1040 = vmul.f32 %v803, %v1012
        %v1041 = vmul.f32 %v949, %v1008
        %v1042 = vmul.f32 %v950, %v1012
        %v1043 = vmul.f32 %v951, %v1008
        %v1044 = vmul.f32 %v952, %v1012
        %v1045 = vmul.f32 %v806, %v1008
        %v1046 = vmul.f32 %v807, %v1012
        %v1047 = vmul.f32 %v953, %v1008
        %v1048 = vmul.f32 %v954, %v1012
        %v1049 = vmul.f32 %v955, %v1008
        %v1050 = vmul.f32 %v956, %v1012
        %v1051 = vmul.f32 %v810, %v1008
        %v1052 = vmul.f32 %v811, %v1012
        %v1053 = vmul.f32 %v957, %v1008
        %v1054 = vmul.f32 %v958, %v1012
        %v1055 = vmul.f32 %v959, %v1008
        %v1056 = vmul.f32 %v960, %v1012
        %v1057 = vmul.f32 %v814, %v1008
        %v1058 = vmul.f32 %v815, %v1012
        %v1059 = vmul.f32 %v961, %v1008
        %v1060 = vmul.f32 %v962, %v1012
        %v1061 = vmul.f32 %v963, %v1008
        %v1062 = vmul.f32 %v964, %v1012
        %v1063 = vmul.f32 %v818, %v1008
        %v1064 = vmul.f32 %v819, %v1012
        %v1065 = vmul.f32 %v965, %v1008
        %v1066 = vmul.f32 %v966, %v1012
        %v1067 = vmul.f32 %v967, %v1008
        %v1068 = vmul.f32 %v968, %v1012
        %v1069 = vmul.f32 %v822, %v1008
        %v1070 = vmul.f32 %v823, %v1012
        %v1071 = vmul.f32 %v969, %v1008
        %v1072 = vmul.f32 %v970, %v1012
        %v1073 = vmul.f32 %v971, %v1008
        %v1074 = vmul.f32 %v972, %v1012
        %v1075 = vmul.f32 %v826, %v1008
        %v1076 = vmul.f32 %v827, %v1012
        %v1077 = vmul.f32 %v973, %v1008
        %v1078 = vmul.f32 %v974, %v1012
        %v1079 = vmul.f32 %v975, %v1008
        %v1080 = vmul.f32 %v976, %v1012
        %v1081 = vmul.f32 %v830, %v1008
        %v1082 = vmul.f32 %v831, %v1012
        %v1083 = vmul.f32 %v977, %v1008
        %v1084 = vmul.f32 %v978, %v1012
        %v1085 = vmul.f32 %v979, %v1008
        %v1086 = vmul.f32 %v980, %v1012
        %v1087 = vmul.f32 %v834, %v1008
        %v1088 = vmul.f32 %v835, %v1012
        %v1089 = vmul.f32 %v981, %v1008
        %v1090 = vmul.f32 %v982, %v1012
        %v1091 = vmul.f32 %v983, %v1008
        %v1092 = vmul.f32 %v984, %v1012
        %v1093 = vmul.f32 %v838, %v1008
        %v1094 = vmul.f32 %v839, %v1012
        %v1095 = vmul.f32 %v985, %v1008
        %v1096 = vmul.f32 %v986, %v1012
        %v1097 = vmul.f32 %v987, %v1008
        %v1098 = vmul.f32 %v988, %v1012
        %v1099 = vmul.f32 %v842, %v1008
        %v1100 = vmul.f32 %v843, %v1012
        %v1101 = vmul.f32 %v989, %v1008
        %v1102 = vmul.f32 %v990, %v1012
        %v1103 = vmul.f32 %v991, %v1008
        %v1104 = vmul.f32 %v992, %v1012
        %v1105 = vmul.f32 %v846, %v1008
        %v1106 = vmul.f32 %v847, %v1012
        %v1107 = vmul.f32 %v993, %v1008
        %v1108 = vmul.f32 %v994, %v1012
        %vm1205 = vcmask 1046528
        %v1206 = vrot.slane %v1013, 1
        %v1207 = vrot.slane %v1015, 1
        %v1208 = vsel %vm1205, %v1206, %v1207
        %v1209 = vrot.slane %v1014, 1
        %v1210 = vrot.slane %v1016, 1
        %v1211 = vsel %vm1205, %v1209, %v1210
        %v1212 = vrot.slane %v1017, 1
        %v1213 = vsel %vm1205, %v1207, %v1212
        %v1214 = vrot.slane %v1018, 1
        %v1215 = vsel %vm1205, %v1210, %v1214
        %v1216 = vrot.slane %v1019, 1
        %v1217 = vrot.slane %v1021, 1
        %v1218 = vsel %vm1205, %v1216, %v1217
        %v1219 = vrot.slane %v1020, 1
        %v1220 = vrot.slane %v1022, 1
        %v1221 = vsel %vm1205, %v1219, %v1220
        %v1222 = vrot.slane %v1023, 1
        %v1223 = vsel %vm1205, %v1217, %v1222
        %v1224 = vrot.slane %v1024, 1
        %v1225 = vsel %vm1205, %v1220, %v1224
        %v1226 = vrot.slane %v1025, 1
        %v1227 = vrot.slane %v1027, 1
        %v1228 = vsel %vm1205, %v1226, %v1227
        %v1229 = vrot.slane %v1026, 1
        %v1230 = vrot.slane %v1028, 1
        %v1231 = vsel %vm1205, %v1229, %v1230
        %v1232 = vrot.slane %v1029, 1
        %v1233 = vsel %vm1205, %v1227, %v1232
        %v1234 = vrot.slane %v1030, 1
        %v1235 = vsel %vm1205, %v1230, %v1234
        %v1236 = vrot.slane %v1031, 1
        %v1237 = vrot.slane %v1033, 1
        %v1238 = vsel %vm1205, %v1236, %v1237
        %v1239 = vrot.slane %v1032, 1
        %v1240 = vrot.slane %v1034, 1
        %v1241 = vsel %vm1205, %v1239, %v1240
        %v1242 = vrot.slane %v1035, 1
        %v1243 = vsel %vm1205, %v1237, %v1242
        %v1244 = vrot.slane %v1036, 1
        %v1245 = vsel %vm1205, %v1240, %v1244
        %v1246 = vrot.slane %v1037, 1
        %v1247 = vrot.slane %v1039, 1
        %v1248 = vsel %vm1205, %v1246, %v1247
        %v1249 = vrot.slane %v1038, 1
        %v1250 = vrot.slane %v1040, 1
        %v1251 = vsel %vm1205, %v1249, %v1250
        %v1252 = vrot.slane %v1041, 1
        %v1253 = vsel %vm1205, %v1247, %v1252
        %v1254 = vrot.slane %v1042, 1
        %v1255 = vsel %vm1205, %v1250, %v1254
        %v1256 = vrot.slane %v1043, 1
        %v1257 = vrot.slane %v1045, 1
        %v1258 = vsel %vm1205, %v1256, %v1257
        %v1259 = vrot.slane %v1044, 1
        %v1260 = vrot.slane %v1046, 1
        %v1261 = vsel %vm1205, %v1259, %v1260
        %v1262 = vrot.slane %v1047, 1
        %v1263 = vsel %vm1205, %v1257, %v1262
        %v1264 = vrot.slane %v1048, 1
        %v1265 = vsel %vm1205, %v1260, %v1264
        %v1266 = vrot.slane %v1049, 1
        %v1267 = vrot.slane %v1051, 1
        %v1268 = vsel %vm1205, %v1266, %v1267
        %v1269 = vrot.slane %v1050, 1
        %v1270 = vrot.slane %v1052, 1
        %v1271 = vsel %vm1205, %v1269, %v1270
        %v1272 = vrot.slane %v1053, 1
        %v1273 = vsel %vm1205, %v1267, %v1272
        %v1274 = vrot.slane %v1054, 1
        %v1275 = vsel %vm1205, %v1270, %v1274
        %v1276 = vrot.slane %v1055, 1
        %v1277 = vrot.slane %v1057, 1
        %v1278 = vsel %vm1205, %v1276, %v1277
        %v1279 = vrot.slane %v1056, 1
        %v1280 = vrot.slane %v1058, 1
        %v1281 = vsel %vm1205, %v1279, %v1280
        %v1282 = vrot.slane %v1059, 1
        %v1283 = vsel %vm1205, %v1277, %v1282
        %v1284 = vrot.slane %v1060, 1
        %v1285 = vsel %vm1205, %v1280, %v1284
        %v1286 = vrot.slane %v1061, 1
        %v1287 = vrot.slane %v1063, 1
        %v1288 = vsel %vm1205, %v1286, %v1287
        %v1289 = vrot.slane %v1062, 1
        %v1290 = vrot.slane %v1064, 1
        %v1291 = vsel %vm1205, %v1289, %v1290
        %v1292 = vrot.slane %v1065, 1
        %v1293 = vsel %vm1205, %v1287, %v1292
        %v1294 = vrot.slane %v1066, 1
        %v1295 = vsel %vm1205, %v1290, %v1294
        %v1296 = vrot.slane %v1067, 1
        %v1297 = vrot.slane %v1069, 1
        %v1298 = vsel %vm1205, %v1296, %v1297
        %v1299 = vrot.slane %v1068, 1
        %v1300 = vrot.slane %v1070, 1
        %v1301 = vsel %vm1205, %v1299, %v1300
        %v1302 = vrot.slane %v1071, 1
        %v1303 = vsel %vm1205, %v1297, %v1302
        %v1304 = vrot.slane %v1072, 1
        %v1305 = vsel %vm1205, %v1300, %v1304
        %v1306 = vrot.slane %v1073, 1
        %v1307 = vrot.slane %v1075, 1
        %v1308 = vsel %vm1205, %v1306, %v1307
        %v1309 = vrot.slane %v1074, 1
        %v1310 = vrot.slane %v1076, 1
        %v1311 = vsel %vm1205, %v1309, %v1310
        %v1312 = vrot.slane %v1077, 1
        %v1313 = vsel %vm1205, %v1307, %v1312
        %v1314 = vrot.slane %v1078, 1
        %v1315 = vsel %vm1205, %v1310, %v1314
        %v1316 = vrot.slane %v1079, 1
        %v1317 = vrot.slane %v1081, 1
        %v1318 = vsel %vm1205, %v1316, %v1317
        %v1319 = vrot.slane %v1080, 1
        %v1320 = vrot.slane %v1082, 1
        %v1321 = vsel %vm1205, %v1319, %v1320
        %v1322 = vrot.slane %v1083, 1
        %v1323 = vsel %vm1205, %v1317, %v1322
        %v1324 = vrot.slane %v1084, 1
        %v1325 = vsel %vm1205, %v1320, %v1324
        %v1326 = vrot.slane %v1085, 1
        %v1327 = vrot.slane %v1087, 1
        %v1328 = vsel %vm1205, %v1326, %v1327
        %v1329 = vrot.slane %v1086, 1
        %v1330 = vrot.slane %v1088, 1
        %v1331 = vsel %vm1205, %v1329, %v1330
        %v1332 = vrot.slane %v1089, 1
        %v1333 = vsel %vm1205, %v1327, %v1332
        %v1334 = vrot.slane %v1090, 1
        %v1335 = vsel %vm1205, %v1330, %v1334
        %v1336 = vrot.slane %v1091, 1
        %v1337 = vrot.slane %v1093, 1
        %v1338 = vsel %vm1205, %v1336, %v1337
        %v1339 = vrot.slane %v1092, 1
        %v1340 = vrot.slane %v1094, 1
        %v1341 = vsel %vm1205, %v1339, %v1340
        %v1342 = vrot.slane %v1095, 1
        %v1343 = vsel %vm1205, %v1337, %v1342
        %v1344 = vrot.slane %v1096, 1
        %v1345 = vsel %vm1205, %v1340, %v1344
        %v1346 = vrot.slane %v1097, 1
        %v1347 = vrot.slane %v1099, 1
        %v1348 = vsel %vm1205, %v1346, %v1347
        %v1349 = vrot.slane %v1098, 1
        %v1350 = vrot.slane %v1100, 1
        %v1351 = vsel %vm1205, %v1349, %v1350
        %v1352 = vrot.slane %v1101, 1
        %v1353 = vsel %vm1205, %v1347, %v1352
        %v1354 = vrot.slane %v1102, 1
        %v1355 = vsel %vm1205, %v1350, %v1354
        %v1356 = vrot.slane %v1103, 1
        %v1357 = vrot.slane %v1105, 1
        %v1358 = vsel %vm1205, %v1356, %v1357
        %v1359 = vrot.slane %v1104, 1
        %v1360 = vrot.slane %v1106, 1
        %v1361 = vsel %vm1205, %v1359, %v1360
        %v1362 = vrot.slane %v1107, 1
        %v1363 = vsel %vm1205, %v1357, %v1362
        %v1364 = vrot.slane %v1108, 1
        %v1365 = vsel %vm1205, %v1360, %v1364
        %v1430 = vadd.f32 %v867, %v1208
        %v1431 = vadd.f32 %v868, %v1211
        %v1432 = vadd.f32 %v869, %v1213
        %v1433 = vadd.f32 %v870, %v1215
        %v1434 = vadd.f32 %v871, %v1218
        %v1435 = vadd.f32 %v872, %v1221
        %v1436 = vadd.f32 %v873, %v1223
        %v1437 = vadd.f32 %v874, %v1225
        %v1438 = vadd.f32 %v875, %v1228
        %v1439 = vadd.f32 %v876, %v1231
        %v1440 = vadd.f32 %v877, %v1233
        %v1441 = vadd.f32 %v878, %v1235
        %v1442 = vadd.f32 %v879, %v1238
        %v1443 = vadd.f32 %v880, %v1241
        %v1444 = vadd.f32 %v881, %v1243
        %v1445 = vadd.f32 %v882, %v1245
        %v1446 = vadd.f32 %v883, %v1248
        %v1447 = vadd.f32 %v884, %v1251
        %v1448 = vadd.f32 %v885, %v1253
        %v1449 = vadd.f32 %v886, %v1255
        %v1450 = vadd.f32 %v887, %v1258
        %v1451 = vadd.f32 %v888, %v1261
        %v1452 = vadd.f32 %v889, %v1263
        %v1453 = vadd.f32 %v890, %v1265
        %v1454 = vadd.f32 %v891, %v1268
        %v1455 = vadd.f32 %v892, %v1271
        %v1456 = vadd.f32 %v893, %v1273
        %v1457 = vadd.f32 %v894, %v1275
        %v1458 = vadd.f32 %v895, %v1278
        %v1459 = vadd.f32 %v896, %v1281
        %v1460 = vadd.f32 %v897, %v1283
        %v1461 = vadd.f32 %v898, %v1285
        %v1462 = vadd.f32 %v899, %v1288
        %v1463 = vadd.f32 %v900, %v1291
        %v1464 = vadd.f32 %v901, %v1293
        %v1465 = vadd.f32 %v902, %v1295
        %v1466 = vadd.f32 %v903, %v1298
        %v1467 = vadd.f32 %v904, %v1301
        %v1468 = vadd.f32 %v905, %v1303
        %v1469 = vadd.f32 %v906, %v1305
        %v1470 = vadd.f32 %v907, %v1308
        %v1471 = vadd.f32 %v908, %v1311
        %v1472 = vadd.f32 %v909, %v1313
        %v1473 = vadd.f32 %v910, %v1315
        %v1474 = vadd.f32 %v911, %v1318
        %v1475 = vadd.f32 %v912, %v1321
        %v1476 = vadd.f32 %v913, %v1323
        %v1477 = vadd.f32 %v914, %v1325
        %v1478 = vadd.f32 %v915, %v1328
        %v1479 = vadd.f32 %v916, %v1331
        %v1480 = vadd.f32 %v917, %v1333
        %v1481 = vadd.f32 %v918, %v1335
        %v1482 = vadd.f32 %v919, %v1338
        %v1483 = vadd.f32 %v920, %v1341
        %v1484 = vadd.f32 %v921, %v1343
        %v1485 = vadd.f32 %v922, %v1345
        %v1486 = vadd.f32 %v923, %v1348
        %v1487 = vadd.f32 %v924, %v1351
        %v1488 = vadd.f32 %v925, %v1353
        %v1489 = vadd.f32 %v926, %v1355
        %v1490 = vadd.f32 %v927, %v1358
        %v1491 = vadd.f32 %v928, %v1361
        %v1492 = vadd.f32 %v929, %v1363
        %v1493 = vadd.f32 %v930, %v1365
        %v1494 = vld [vmem:[#allocation2] sm:$0xfc]
        %v1495 = vld [vmem:[#allocation2 + $0x8] sm:$0xfc]
        %v1496 = vld [vmem:[#allocation2 + $0x20] sm:$0x3]
        %v1497 = vld [vmem:[#allocation2 + $0x28] sm:$0x3]
        %v1498 = vld [vmem:[#allocation2 + $0x30] sm:$0xfc]
        %v1499 = vld [vmem:[#allocation2 + $0x38] sm:$0xfc]
        %v1500 = vld [vmem:[#allocation2 + $0x50] sm:$0x3]
        %v1501 = vld [vmem:[#allocation2 + $0x58] sm:$0x3]
        %v1502 = vld [vmem:[#allocation2 + $0x60] sm:$0xfc]
        %v1503 = vld [vmem:[#allocation2 + $0x68] sm:$0xfc]
        %v1504 = vld [vmem:[#allocation2 + $0x80] sm:$0x3]
        %v1505 = vld [vmem:[#allocation2 + $0x88] sm:$0x3]
        %v1506 = vld [vmem:[#allocation2 + $0x90] sm:$0xfc]
        %v1507 = vld [vmem:[#allocation2 + $0x98] sm:$0xfc]
        %v1508 = vld [vmem:[#allocation2 + $0xb0] sm:$0x3]
        %v1509 = vld [vmem:[#allocation2 + $0xb8] sm:$0x3]
        %v1510 = vld [vmem:[#allocation2 + $0xc0] sm:$0xfc]
        %v1511 = vld [vmem:[#allocation2 + $0xc8] sm:$0xfc]
        %v1512 = vld [vmem:[#allocation2 + $0xe0] sm:$0x3]
        %v1513 = vld [vmem:[#allocation2 + $0xe8] sm:$0x3]
        %v1514 = vld [vmem:[#allocation2 + $0xf0] sm:$0xfc]
        %v1515 = vld [vmem:[#allocation2 + $0xf8] sm:$0xfc]
        %v1516 = vld [vmem:[#allocation2 + $0x110] sm:$0x3]
        %v1517 = vld [vmem:[#allocation2 + $0x118] sm:$0x3]
        %v1518 = vld [vmem:[#allocation2 + $0x120] sm:$0xfc]
        %v1519 = vld [vmem:[#allocation2 + $0x128] sm:$0xfc]
        %v1520 = vld [vmem:[#allocation2 + $0x140] sm:$0x3]
        %v1521 = vld [vmem:[#allocation2 + $0x148] sm:$0x3]
        %v1522 = vld [vmem:[#allocation2 + $0x150] sm:$0xfc]
        %v1523 = vld [vmem:[#allocation2 + $0x158] sm:$0xfc]
        %v1524 = vld [vmem:[#allocation2 + $0x170] sm:$0x3]
        %v1525 = vld [vmem:[#allocation2 + $0x178] sm:$0x3]
        %v1526 = vld [vmem:[#allocation2 + $0x180] sm:$0xfc]
        %v1527 = vld [vmem:[#allocation2 + $0x188] sm:$0xfc]
        %v1528 = vld [vmem:[#allocation2 + $0x1a0] sm:$0x3]
        %v1529 = vld [vmem:[#allocation2 + $0x1a8] sm:$0x3]
        %v1530 = vld [vmem:[#allocation2 + $0x1b0] sm:$0xfc]
        %v1531 = vld [vmem:[#allocation2 + $0x1b8] sm:$0xfc]
        %v1532 = vld [vmem:[#allocation2 + $0x1d0] sm:$0x3]
        %v1533 = vld [vmem:[#allocation2 + $0x1d8] sm:$0x3]
        %v1534 = vld [vmem:[#allocation2 + $0x1e0] sm:$0xfc]
        %v1535 = vld [vmem:[#allocation2 + $0x1e8] sm:$0xfc]
        %v1536 = vld [vmem:[#allocation2 + $0x200] sm:$0x3]
        %v1537 = vld [vmem:[#allocation2 + $0x208] sm:$0x3]
        %v1538 = vld [vmem:[#allocation2 + $0x210] sm:$0xfc]
        %v1539 = vld [vmem:[#allocation2 + $0x218] sm:$0xfc]
        %v1540 = vld [vmem:[#allocation2 + $0x230] sm:$0x3]
        %v1541 = vld [vmem:[#allocation2 + $0x238] sm:$0x3]
        %v1542 = vld [vmem:[#allocation2 + $0x240] sm:$0xfc]
        %v1543 = vld [vmem:[#allocation2 + $0x248] sm:$0xfc]
        %v1544 = vld [vmem:[#allocation2 + $0x260] sm:$0x3]
        %v1545 = vld [vmem:[#allocation2 + $0x268] sm:$0x3]
        %v1546 = vld [vmem:[#allocation2 + $0x270] sm:$0xfc]
        %v1547 = vld [vmem:[#allocation2 + $0x278] sm:$0xfc]
        %v1548 = vld [vmem:[#allocation2 + $0x290] sm:$0x3]
        %v1549 = vld [vmem:[#allocation2 + $0x298] sm:$0x3]
        %v1550 = vld [vmem:[#allocation2 + $0x2a0] sm:$0xfc]
        %v1551 = vld [vmem:[#allocation2 + $0x2a8] sm:$0xfc]
        %v1552 = vld [vmem:[#allocation2 + $0x2c0] sm:$0x3]
        %v1553 = vld [vmem:[#allocation2 + $0x2c8] sm:$0x3]
        %v1554 = vld [vmem:[#allocation2 + $0x2d0] sm:$0xfc]
        %v1555 = vld [vmem:[#allocation2 + $0x2d8] sm:$0xfc]
        %v1556 = vld [vmem:[#allocation2 + $0x2f0] sm:$0x3]
        %v1557 = vld [vmem:[#allocation2 + $0x2f8] sm:$0x3]
        %v1558 = vlaneseq
        %v1559 = vshrl.u32 %v1558, 7
        %v1560 = vsub.s32 2, %v1559
        %v1561 = vrot.slane %v780, %v1560
        %v1562 = vlaneseq
        %v1563 = vshrl.u32 %v1562, 7
        %v1564 = vsub.s32 6, %v1563
        %v1565 = vrot.slane %v780, %v1564
        %v1568 = vlaneseq
        %v1569 = vshrl.u32 %v1568, 7
        %v1570 = vsub.s32 2, %v1569
        %v1571 = vrot.slane %v1561, %v1570
        %v1572 = vlaneseq
        %v1573 = vshrl.u32 %v1572, 7
        %v1574 = vsub.s32 2, %v1573
        %v1575 = vrot.slane %v1565, %v1574
        %v1576 = vmul.f32 %v1494, %v1571
        %v1577 = vmul.f32 %v1495, %v1575
        %v1578 = vmul.f32 %v786, %v1571
        %v1579 = vmul.f32 %v787, %v1575
        %v1580 = vmul.f32 %v1496, %v1571
        %v1581 = vmul.f32 %v1497, %v1575
        %v1582 = vmul.f32 %v1498, %v1571
        %v1583 = vmul.f32 %v1499, %v1575
        %v1584 = vmul.f32 %v790, %v1571
        %v1585 = vmul.f32 %v791, %v1575
        %v1586 = vmul.f32 %v1500, %v1571
        %v1587 = vmul.f32 %v1501, %v1575
        %v1588 = vmul.f32 %v1502, %v1571
        %v1589 = vmul.f32 %v1503, %v1575
        %v1590 = vmul.f32 %v794, %v1571
        %v1591 = vmul.f32 %v795, %v1575
        %v1592 = vmul.f32 %v1504, %v1571
        %v1593 = vmul.f32 %v1505, %v1575
        %v1594 = vmul.f32 %v1506, %v1571
        %v1595 = vmul.f32 %v1507, %v1575
        %v1596 = vmul.f32 %v798, %v1571
        %v1597 = vmul.f32 %v799, %v1575
        %v1598 = vmul.f32 %v1508, %v1571
        %v1599 = vmul.f32 %v1509, %v1575
        %v1600 = vmul.f32 %v1510, %v1571
        %v1601 = vmul.f32 %v1511, %v1575
        %v1602 = vmul.f32 %v802, %v1571
        %v1603 = vmul.f32 %v803, %v1575
        %v1604 = vmul.f32 %v1512, %v1571
        %v1605 = vmul.f32 %v1513, %v1575
        %v1606 = vmul.f32 %v1514, %v1571
        %v1607 = vmul.f32 %v1515, %v1575
        %v1608 = vmul.f32 %v806, %v1571
        %v1609 = vmul.f32 %v807, %v1575
        %v1610 = vmul.f32 %v1516, %v1571
        %v1611 = vmul.f32 %v1517, %v1575
        %v1612 = vmul.f32 %v1518, %v1571
        %v1613 = vmul.f32 %v1519, %v1575
        %v1614 = vmul.f32 %v810, %v1571
        %v1615 = vmul.f32 %v811, %v1575
        %v1616 = vmul.f32 %v1520, %v1571
        %v1617 = vmul.f32 %v1521, %v1575
        %v1618 = vmul.f32 %v1522, %v1571
        %v1619 = vmul.f32 %v1523, %v1575
        %v1620 = vmul.f32 %v814, %v1571
        %v1621 = vmul.f32 %v815, %v1575
        %v1622 = vmul.f32 %v1524, %v1571
        %v1623 = vmul.f32 %v1525, %v1575
        %v1624 = vmul.f32 %v1526, %v1571
        %v1625 = vmul.f32 %v1527, %v1575
        %v1626 = vmul.f32 %v818, %v1571
        %v1627 = vmul.f32 %v819, %v1575
        %v1628 = vmul.f32 %v1528, %v1571
        %v1629 = vmul.f32 %v1529, %v1575
        %v1630 = vmul.f32 %v1530, %v1571
        %v1631 = vmul.f32 %v1531, %v1575
        %v1632 = vmul.f32 %v822, %v1571
        %v1633 = vmul.f32 %v823, %v1575
        %v1634 = vmul.f32 %v1532, %v1571
        %v1635 = vmul.f32 %v1533, %v1575
        %v1636 = vmul.f32 %v1534, %v1571
        %v1637 = vmul.f32 %v1535, %v1575
        %v1638 = vmul.f32 %v826, %v1571
        %v1639 = vmul.f32 %v827, %v1575
        %v1640 = vmul.f32 %v1536, %v1571
        %v1641 = vmul.f32 %v1537, %v1575
        %v1642 = vmul.f32 %v1538, %v1571
        %v1643 = vmul.f32 %v1539, %v1575
        %v1644 = vmul.f32 %v830, %v1571
        %v1645 = vmul.f32 %v831, %v1575
        %v1646 = vmul.f32 %v1540, %v1571
        %v1647 = vmul.f32 %v1541, %v1575
        %v1648 = vmul.f32 %v1542, %v1571
        %v1649 = vmul.f32 %v1543, %v1575
        %v1650 = vmul.f32 %v834, %v1571
        %v1651 = vmul.f32 %v835, %v1575
        %v1652 = vmul.f32 %v1544, %v1571
        %v1653 = vmul.f32 %v1545, %v1575
        %v1654 = vmul.f32 %v1546, %v1571
        %v1655 = vmul.f32 %v1547, %v1575
        %v1656 = vmul.f32 %v838, %v1571
        %v1657 = vmul.f32 %v839, %v1575
        %v1658 = vmul.f32 %v1548, %v1571
        %v1659 = vmul.f32 %v1549, %v1575
        %v1660 = vmul.f32 %v1550, %v1571
        %v1661 = vmul.f32 %v1551, %v1575
        %v1662 = vmul.f32 %v842, %v1571
        %v1663 = vmul.f32 %v843, %v1575
        %v1664 = vmul.f32 %v1552, %v1571
        %v1665 = vmul.f32 %v1553, %v1575
        %v1666 = vmul.f32 %v1554, %v1571
        %v1667 = vmul.f32 %v1555, %v1575
        %v1668 = vmul.f32 %v846, %v1571
        %v1669 = vmul.f32 %v847, %v1575
        %v1670 = vmul.f32 %v1556, %v1571
        %v1671 = vmul.f32 %v1557, %v1575
        %vm1768 = vcmask 1045504
        %v1769 = vrot.slane %v1576, 2
        %v1770 = vrot.slane %v1578, 2
        %v1771 = vsel %vm1768, %v1769, %v1770
        %v1772 = vrot.slane %v1577, 2
        %v1773 = vrot.slane %v1579, 2
        %v1774 = vsel %vm1768, %v1772, %v1773
        %v1775 = vrot.slane %v1580, 2
        %v1776 = vsel %vm1768, %v1770, %v1775
        %v1777 = vrot.slane %v1581, 2
        %v1778 = vsel %vm1768, %v1773, %v1777
        %v1779 = vrot.slane %v1582, 2
        %v1780 = vrot.slane %v1584, 2
        %v1781 = vsel %vm1768, %v1779, %v1780
        %v1782 = vrot.slane %v1583, 2
        %v1783 = vrot.slane %v1585, 2
        %v1784 = vsel %vm1768, %v1782, %v1783
        %v1785 = vrot.slane %v1586, 2
        %v1786 = vsel %vm1768, %v1780, %v1785
        %v1787 = vrot.slane %v1587, 2
        %v1788 = vsel %vm1768, %v1783, %v1787
        %v1789 = vrot.slane %v1588, 2
        %v1790 = vrot.slane %v1590, 2
        %v1791 = vsel %vm1768, %v1789, %v1790
        %v1792 = vrot.slane %v1589, 2
        %v1793 = vrot.slane %v1591, 2
        %v1794 = vsel %vm1768, %v1792, %v1793
        %v1795 = vrot.slane %v1592, 2
        %v1796 = vsel %vm1768, %v1790, %v1795
        %v1797 = vrot.slane %v1593, 2
        %v1798 = vsel %vm1768, %v1793, %v1797
        %v1799 = vrot.slane %v1594, 2
        %v1800 = vrot.slane %v1596, 2
        %v1801 = vsel %vm1768, %v1799, %v1800
        %v1802 = vrot.slane %v1595, 2
        %v1803 = vrot.slane %v1597, 2
        %v1804 = vsel %vm1768, %v1802, %v1803
        %v1805 = vrot.slane %v1598, 2
        %v1806 = vsel %vm1768, %v1800, %v1805
        %v1807 = vrot.slane %v1599, 2
        %v1808 = vsel %vm1768, %v1803, %v1807
        %v1809 = vrot.slane %v1600, 2
        %v1810 = vrot.slane %v1602, 2
        %v1811 = vsel %vm1768, %v1809, %v1810
        %v1812 = vrot.slane %v1601, 2
        %v1813 = vrot.slane %v1603, 2
        %v1814 = vsel %vm1768, %v1812, %v1813
        %v1815 = vrot.slane %v1604, 2
        %v1816 = vsel %vm1768, %v1810, %v1815
        %v1817 = vrot.slane %v1605, 2
        %v1818 = vsel %vm1768, %v1813, %v1817
        %v1819 = vrot.slane %v1606, 2
        %v1820 = vrot.slane %v1608, 2
        %v1821 = vsel %vm1768, %v1819, %v1820
        %v1822 = vrot.slane %v1607, 2
        %v1823 = vrot.slane %v1609, 2
        %v1824 = vsel %vm1768, %v1822, %v1823
        %v1825 = vrot.slane %v1610, 2
        %v1826 = vsel %vm1768, %v1820, %v1825
        %v1827 = vrot.slane %v1611, 2
        %v1828 = vsel %vm1768, %v1823, %v1827
        %v1829 = vrot.slane %v1612, 2
        %v1830 = vrot.slane %v1614, 2
        %v1831 = vsel %vm1768, %v1829, %v1830
        %v1832 = vrot.slane %v1613, 2
        %v1833 = vrot.slane %v1615, 2
        %v1834 = vsel %vm1768, %v1832, %v1833
        %v1835 = vrot.slane %v1616, 2
        %v1836 = vsel %vm1768, %v1830, %v1835
        %v1837 = vrot.slane %v1617, 2
        %v1838 = vsel %vm1768, %v1833, %v1837
        %v1839 = vrot.slane %v1618, 2
        %v1840 = vrot.slane %v1620, 2
        %v1841 = vsel %vm1768, %v1839, %v1840
        %v1842 = vrot.slane %v1619, 2
        %v1843 = vrot.slane %v1621, 2
        %v1844 = vsel %vm1768, %v1842, %v1843
        %v1845 = vrot.slane %v1622, 2
        %v1846 = vsel %vm1768, %v1840, %v1845
        %v1847 = vrot.slane %v1623, 2
        %v1848 = vsel %vm1768, %v1843, %v1847
        %v1849 = vrot.slane %v1624, 2
        %v1850 = vrot.slane %v1626, 2
        %v1851 = vsel %vm1768, %v1849, %v1850
        %v1852 = vrot.slane %v1625, 2
        %v1853 = vrot.slane %v1627, 2
        %v1854 = vsel %vm1768, %v1852, %v1853
        %v1855 = vrot.slane %v1628, 2
        %v1856 = vsel %vm1768, %v1850, %v1855
        %v1857 = vrot.slane %v1629, 2
        %v1858 = vsel %vm1768, %v1853, %v1857
        %v1859 = vrot.slane %v1630, 2
        %v1860 = vrot.slane %v1632, 2
        %v1861 = vsel %vm1768, %v1859, %v1860
        %v1862 = vrot.slane %v1631, 2
        %v1863 = vrot.slane %v1633, 2
        %v1864 = vsel %vm1768, %v1862, %v1863
        %v1865 = vrot.slane %v1634, 2
        %v1866 = vsel %vm1768, %v1860, %v1865
        %v1867 = vrot.slane %v1635, 2
        %v1868 = vsel %vm1768, %v1863, %v1867
        %v1869 = vrot.slane %v1636, 2
        %v1870 = vrot.slane %v1638, 2
        %v1871 = vsel %vm1768, %v1869, %v1870
        %v1872 = vrot.slane %v1637, 2
        %v1873 = vrot.slane %v1639, 2
        %v1874 = vsel %vm1768, %v1872, %v1873
        %v1875 = vrot.slane %v1640, 2
        %v1876 = vsel %vm1768, %v1870, %v1875
        %v1877 = vrot.slane %v1641, 2
        %v1878 = vsel %vm1768, %v1873, %v1877
        %v1879 = vrot.slane %v1642, 2
        %v1880 = vrot.slane %v1644, 2
        %v1881 = vsel %vm1768, %v1879, %v1880
        %v1882 = vrot.slane %v1643, 2
        %v1883 = vrot.slane %v1645, 2
        %v1884 = vsel %vm1768, %v1882, %v1883
        %v1885 = vrot.slane %v1646, 2
        %v1886 = vsel %vm1768, %v1880, %v1885
        %v1887 = vrot.slane %v1647, 2
        %v1888 = vsel %vm1768, %v1883, %v1887
        %v1889 = vrot.slane %v1648, 2
        %v1890 = vrot.slane %v1650, 2
        %v1891 = vsel %vm1768, %v1889, %v1890
        %v1892 = vrot.slane %v1649, 2
        %v1893 = vrot.slane %v1651, 2
        %v1894 = vsel %vm1768, %v1892, %v1893
        %v1895 = vrot.slane %v1652, 2
        %v1896 = vsel %vm1768, %v1890, %v1895
        %v1897 = vrot.slane %v1653, 2
        %v1898 = vsel %vm1768, %v1893, %v1897
        %v1899 = vrot.slane %v1654, 2
        %v1900 = vrot.slane %v1656, 2
        %v1901 = vsel %vm1768, %v1899, %v1900
        %v1902 = vrot.slane %v1655, 2
        %v1903 = vrot.slane %v1657, 2
        %v1904 = vsel %vm1768, %v1902, %v1903
        %v1905 = vrot.slane %v1658, 2
        %v1906 = vsel %vm1768, %v1900, %v1905
        %v1907 = vrot.slane %v1659, 2
        %v1908 = vsel %vm1768, %v1903, %v1907
        %v1909 = vrot.slane %v1660, 2
        %v1910 = vrot.slane %v1662, 2
        %v1911 = vsel %vm1768, %v1909, %v1910
        %v1912 = vrot.slane %v1661, 2
        %v1913 = vrot.slane %v1663, 2
        %v1914 = vsel %vm1768, %v1912, %v1913
        %v1915 = vrot.slane %v1664, 2
        %v1916 = vsel %vm1768, %v1910, %v1915
        %v1917 = vrot.slane %v1665, 2
        %v1918 = vsel %vm1768, %v1913, %v1917
        %v1919 = vrot.slane %v1666, 2
        %v1920 = vrot.slane %v1668, 2
        %v1921 = vsel %vm1768, %v1919, %v1920
        %v1922 = vrot.slane %v1667, 2
        %v1923 = vrot.slane %v1669, 2
        %v1924 = vsel %vm1768, %v1922, %v1923
        %v1925 = vrot.slane %v1670, 2
        %v1926 = vsel %vm1768, %v1920, %v1925
        %v1927 = vrot.slane %v1671, 2
        %v1928 = vsel %vm1768, %v1923, %v1927
        %v1993 = vadd.f32 %v1430, %v1771
        %v1994 = vadd.f32 %v1431, %v1774
        %v1995 = vadd.f32 %v1432, %v1776
        %v1996 = vadd.f32 %v1433, %v1778
        %v1997 = vadd.f32 %v1434, %v1781
        %v1998 = vadd.f32 %v1435, %v1784
        %v1999 = vadd.f32 %v1436, %v1786
        %v2000 = vadd.f32 %v1437, %v1788
        %v2001 = vadd.f32 %v1438, %v1791
        %v2002 = vadd.f32 %v1439, %v1794
        %v2003 = vadd.f32 %v1440, %v1796
        %v2004 = vadd.f32 %v1441, %v1798
        %v2005 = vadd.f32 %v1442, %v1801
        %v2006 = vadd.f32 %v1443, %v1804
        %v2007 = vadd.f32 %v1444, %v1806
        %v2008 = vadd.f32 %v1445, %v1808
        %v2009 = vadd.f32 %v1446, %v1811
        %v2010 = vadd.f32 %v1447, %v1814
        %v2011 = vadd.f32 %v1448, %v1816
        %v2012 = vadd.f32 %v1449, %v1818
        %v2013 = vadd.f32 %v1450, %v1821
        %v2014 = vadd.f32 %v1451, %v1824
        %v2015 = vadd.f32 %v1452, %v1826
        %v2016 = vadd.f32 %v1453, %v1828
        %v2017 = vadd.f32 %v1454, %v1831
        %v2018 = vadd.f32 %v1455, %v1834
        %v2019 = vadd.f32 %v1456, %v1836
        %v2020 = vadd.f32 %v1457, %v1838
        %v2021 = vadd.f32 %v1458, %v1841
        %v2022 = vadd.f32 %v1459, %v1844
        %v2023 = vadd.f32 %v1460, %v1846
        %v2024 = vadd.f32 %v1461, %v1848
        %v2025 = vadd.f32 %v1462, %v1851
        %v2026 = vadd.f32 %v1463, %v1854
        %v2027 = vadd.f32 %v1464, %v1856
        %v2028 = vadd.f32 %v1465, %v1858
        %v2029 = vadd.f32 %v1466, %v1861
        %v2030 = vadd.f32 %v1467, %v1864
        %v2031 = vadd.f32 %v1468, %v1866
        %v2032 = vadd.f32 %v1469, %v1868
        %v2033 = vadd.f32 %v1470, %v1871
        %v2034 = vadd.f32 %v1471, %v1874
        %v2035 = vadd.f32 %v1472, %v1876
        %v2036 = vadd.f32 %v1473, %v1878
        %v2037 = vadd.f32 %v1474, %v1881
        %v2038 = vadd.f32 %v1475, %v1884
        %v2039 = vadd.f32 %v1476, %v1886
        %v2040 = vadd.f32 %v1477, %v1888
        %v2041 = vadd.f32 %v1478, %v1891
        %v2042 = vadd.f32 %v1479, %v1894
        %v2043 = vadd.f32 %v1480, %v1896
        %v2044 = vadd.f32 %v1481, %v1898
        %v2045 = vadd.f32 %v1482, %v1901
        %v2046 = vadd.f32 %v1483, %v1904
        %v2047 = vadd.f32 %v1484, %v1906
        %v2048 = vadd.f32 %v1485, %v1908
        %v2049 = vadd.f32 %v1486, %v1911
        %v2050 = vadd.f32 %v1487, %v1914
        %v2051 = vadd.f32 %v1488, %v1916
        %v2052 = vadd.f32 %v1489, %v1918
        %v2053 = vadd.f32 %v1490, %v1921
        %v2054 = vadd.f32 %v1491, %v1924
        %v2055 = vadd.f32 %v1492, %v1926
        %v2056 = vadd.f32 %v1493, %v1928
        %v2057 = vld [vmem:[%s263] sm:$0xff]
        %v2058 = vld [vmem:[%s263 + $0x8] sm:$0xff]
        %v2059 = vld [vmem:[%s263 + $0x10] sm:$0xff]
        %v2060 = vld [vmem:[%s263 + $0x18] sm:$0xff]
        %v2061 = vld [vmem:[%s263 + $0x30] sm:$0xff]
        %v2062 = vld [vmem:[%s263 + $0x38] sm:$0xff]
        %v2063 = vld [vmem:[%s263 + $0x40] sm:$0xff]
        %v2064 = vld [vmem:[%s263 + $0x48] sm:$0xff]
        %v2065 = vld [vmem:[%s263 + $0x60] sm:$0xff]
        %v2066 = vld [vmem:[%s263 + $0x68] sm:$0xff]
        %v2067 = vld [vmem:[%s263 + $0x70] sm:$0xff]
        %v2068 = vld [vmem:[%s263 + $0x78] sm:$0xff]
        %v2069 = vld [vmem:[%s263 + $0x90] sm:$0xff]
        %v2070 = vld [vmem:[%s263 + $0x98] sm:$0xff]
        %v2071 = vld [vmem:[%s263 + $0xa0] sm:$0xff]
        %v2072 = vld [vmem:[%s263 + $0xa8] sm:$0xff]
        %v2073 = vld [vmem:[%s263 + $0xc0] sm:$0xff]
        %v2074 = vld [vmem:[%s263 + $0xc8] sm:$0xff]
        %v2075 = vld [vmem:[%s263 + $0xd0] sm:$0xff]
        %v2076 = vld [vmem:[%s263 + $0xd8] sm:$0xff]
        %v2077 = vld [vmem:[%s263 + $0xf0] sm:$0xff]
        %v2078 = vld [vmem:[%s263 + $0xf8] sm:$0xff]
        %v2079 = vld [vmem:[%s263 + $0x100] sm:$0xff]
        %v2080 = vld [vmem:[%s263 + $0x108] sm:$0xff]
        %v2081 = vld [vmem:[%s263 + $0x120] sm:$0xff]
        %v2082 = vld [vmem:[%s263 + $0x128] sm:$0xff]
        %v2083 = vld [vmem:[%s263 + $0x130] sm:$0xff]
        %v2084 = vld [vmem:[%s263 + $0x138] sm:$0xff]
        %v2085 = vld [vmem:[%s263 + $0x150] sm:$0xff]
        %v2086 = vld [vmem:[%s263 + $0x158] sm:$0xff]
        %v2087 = vld [vmem:[%s263 + $0x160] sm:$0xff]
        %v2088 = vld [vmem:[%s263 + $0x168] sm:$0xff]
        %v2089 = vld [vmem:[%s263 + $0x180] sm:$0xff]
        %v2090 = vld [vmem:[%s263 + $0x188] sm:$0xff]
        %v2091 = vld [vmem:[%s263 + $0x190] sm:$0xff]
        %v2092 = vld [vmem:[%s263 + $0x198] sm:$0xff]
        %v2093 = vld [vmem:[%s263 + $0x1b0] sm:$0xff]
        %v2094 = vld [vmem:[%s263 + $0x1b8] sm:$0xff]
        %v2095 = vld [vmem:[%s263 + $0x1c0] sm:$0xff]
        %v2096 = vld [vmem:[%s263 + $0x1c8] sm:$0xff]
        %v2097 = vld [vmem:[%s263 + $0x1e0] sm:$0xff]
        %v2098 = vld [vmem:[%s263 + $0x1e8] sm:$0xff]
        %v2099 = vld [vmem:[%s263 + $0x1f0] sm:$0xff]
        %v2100 = vld [vmem:[%s263 + $0x1f8] sm:$0xff]
        %v2101 = vld [vmem:[%s263 + $0x210] sm:$0xff]
        %v2102 = vld [vmem:[%s263 + $0x218] sm:$0xff]
        %v2103 = vld [vmem:[%s263 + $0x220] sm:$0xff]
        %v2104 = vld [vmem:[%s263 + $0x228] sm:$0xff]
        %v2105 = vld [vmem:[%s263 + $0x240] sm:$0xff]
        %v2106 = vld [vmem:[%s263 + $0x248] sm:$0xff]
        %v2107 = vld [vmem:[%s263 + $0x250] sm:$0xff]
        %v2108 = vld [vmem:[%s263 + $0x258] sm:$0xff]
        %v2109 = vld [vmem:[%s263 + $0x270] sm:$0xff]
        %v2110 = vld [vmem:[%s263 + $0x278] sm:$0xff]
        %v2111 = vld [vmem:[%s263 + $0x280] sm:$0xff]
        %v2112 = vld [vmem:[%s263 + $0x288] sm:$0xff]
        %v2113 = vld [vmem:[%s263 + $0x2a0] sm:$0xff]
        %v2114 = vld [vmem:[%s263 + $0x2a8] sm:$0xff]
        %v2115 = vld [vmem:[%s263 + $0x2b0] sm:$0xff]
        %v2116 = vld [vmem:[%s263 + $0x2b8] sm:$0xff]
        %v2117 = vld [vmem:[%s263 + $0x2d0] sm:$0xff]
        %v2118 = vld [vmem:[%s263 + $0x2d8] sm:$0xff]
        %v2119 = vld [vmem:[%s263 + $0x2e0] sm:$0xff]
        %v2120 = vld [vmem:[%s263 + $0x2e8] sm:$0xff]
        %v2122 = vlaneseq
        %v2123 = vshrl.u32 %v2122, 7
        %v2124 = vsub.s32 0, %v2123
        %v2125 = vrot.slane %v781, %v2124
        %v2126 = vlaneseq
        %v2127 = vshrl.u32 %v2126, 7
        %v2128 = vsub.s32 4, %v2127
        %v2129 = vrot.slane %v781, %v2128
        %v2132 = vlaneseq
        %v2133 = vshrl.u32 %v2132, 7
        %v2134 = vsub.s32 0, %v2133
        %v2135 = vrot.slane %v2125, %v2134
        %v2136 = vlaneseq
        %v2137 = vshrl.u32 %v2136, 7
        %v2138 = vsub.s32 0, %v2137
        %v2139 = vrot.slane %v2129, %v2138
        %v2140 = vmul.f32 %v2057, %v2135
        %v2141 = vmul.f32 %v2058, %v2139
        %v2142 = vmul.f32 %v2059, %v2135
        %v2143 = vmul.f32 %v2060, %v2139
        %v2144 = vmul.f32 %v2061, %v2135
        %v2145 = vmul.f32 %v2062, %v2139
        %v2146 = vmul.f32 %v2063, %v2135
        %v2147 = vmul.f32 %v2064, %v2139
        %v2148 = vmul.f32 %v2065, %v2135
        %v2149 = vmul.f32 %v2066, %v2139
        %v2150 = vmul.f32 %v2067, %v2135
        %v2151 = vmul.f32 %v2068, %v2139
        %v2152 = vmul.f32 %v2069, %v2135
        %v2153 = vmul.f32 %v2070, %v2139
        %v2154 = vmul.f32 %v2071, %v2135
        %v2155 = vmul.f32 %v2072, %v2139
        %v2156 = vmul.f32 %v2073, %v2135
        %v2157 = vmul.f32 %v2074, %v2139
        %v2158 = vmul.f32 %v2075, %v2135
        %v2159 = vmul.f32 %v2076, %v2139
        %v2160 = vmul.f32 %v2077, %v2135
        %v2161 = vmul.f32 %v2078, %v2139
        %v2162 = vmul.f32 %v2079, %v2135
        %v2163 = vmul.f32 %v2080, %v2139
        %v2164 = vmul.f32 %v2081, %v2135
        %v2165 = vmul.f32 %v2082, %v2139
        %v2166 = vmul.f32 %v2083, %v2135
        %v2167 = vmul.f32 %v2084, %v2139
        %v2168 = vmul.f32 %v2085, %v2135
        %v2169 = vmul.f32 %v2086, %v2139
        %v2170 = vmul.f32 %v2087, %v2135
        %v2171 = vmul.f32 %v2088, %v2139
        %v2172 = vmul.f32 %v2089, %v2135
        %v2173 = vmul.f32 %v2090, %v2139
        %v2174 = vmul.f32 %v2091, %v2135
        %v2175 = vmul.f32 %v2092, %v2139
        %v2176 = vmul.f32 %v2093, %v2135
        %v2177 = vmul.f32 %v2094, %v2139
        %v2178 = vmul.f32 %v2095, %v2135
        %v2179 = vmul.f32 %v2096, %v2139
        %v2180 = vmul.f32 %v2097, %v2135
        %v2181 = vmul.f32 %v2098, %v2139
        %v2182 = vmul.f32 %v2099, %v2135
        %v2183 = vmul.f32 %v2100, %v2139
        %v2184 = vmul.f32 %v2101, %v2135
        %v2185 = vmul.f32 %v2102, %v2139
        %v2186 = vmul.f32 %v2103, %v2135
        %v2187 = vmul.f32 %v2104, %v2139
        %v2188 = vmul.f32 %v2105, %v2135
        %v2189 = vmul.f32 %v2106, %v2139
        %v2190 = vmul.f32 %v2107, %v2135
        %v2191 = vmul.f32 %v2108, %v2139
        %v2192 = vmul.f32 %v2109, %v2135
        %v2193 = vmul.f32 %v2110, %v2139
        %v2194 = vmul.f32 %v2111, %v2135
        %v2195 = vmul.f32 %v2112, %v2139
        %v2196 = vmul.f32 %v2113, %v2135
        %v2197 = vmul.f32 %v2114, %v2139
        %v2198 = vmul.f32 %v2115, %v2135
        %v2199 = vmul.f32 %v2116, %v2139
        %v2200 = vmul.f32 %v2117, %v2135
        %v2201 = vmul.f32 %v2118, %v2139
        %v2202 = vmul.f32 %v2119, %v2135
        %v2203 = vmul.f32 %v2120, %v2139
        %v2204 = vadd.f32 %v1993, %v2140
        %v2205 = vadd.f32 %v1994, %v2141
        %v2206 = vadd.f32 %v1995, %v2142
        %v2207 = vadd.f32 %v1996, %v2143
        %v2208 = vadd.f32 %v1997, %v2144
        %v2209 = vadd.f32 %v1998, %v2145
        %v2210 = vadd.f32 %v1999, %v2146
        %v2211 = vadd.f32 %v2000, %v2147
        %v2212 = vadd.f32 %v2001, %v2148
        %v2213 = vadd.f32 %v2002, %v2149
        %v2214 = vadd.f32 %v2003, %v2150
        %v2215 = vadd.f32 %v2004, %v2151
        %v2216 = vadd.f32 %v2005, %v2152
        %v2217 = vadd.f32 %v2006, %v2153
        %v2218 = vadd.f32 %v2007, %v2154
        %v2219 = vadd.f32 %v2008, %v2155
        %v2220 = vadd.f32 %v2009, %v2156
        %v2221 = vadd.f32 %v2010, %v2157
        %v2222 = vadd.f32 %v2011, %v2158
        %v2223 = vadd.f32 %v2012, %v2159
        %v2224 = vadd.f32 %v2013, %v2160
        %v2225 = vadd.f32 %v2014, %v2161
        %v2226 = vadd.f32 %v2015, %v2162
        %v2227 = vadd.f32 %v2016, %v2163
        %v2228 = vadd.f32 %v2017, %v2164
        %v2229 = vadd.f32 %v2018, %v2165
        %v2230 = vadd.f32 %v2019, %v2166
        %v2231 = vadd.f32 %v2020, %v2167
        %v2232 = vadd.f32 %v2021, %v2168
        %v2233 = vadd.f32 %v2022, %v2169
        %v2234 = vadd.f32 %v2023, %v2170
        %v2235 = vadd.f32 %v2024, %v2171
        %v2236 = vadd.f32 %v2025, %v2172
        %v2237 = vadd.f32 %v2026, %v2173
        %v2238 = vadd.f32 %v2027, %v2174
        %v2239 = vadd.f32 %v2028, %v2175
        %v2240 = vadd.f32 %v2029, %v2176
        %v2241 = vadd.f32 %v2030, %v2177
        %v2242 = vadd.f32 %v2031, %v2178
        %v2243 = vadd.f32 %v2032, %v2179
        %v2244 = vadd.f32 %v2033, %v2180
        %v2245 = vadd.f32 %v2034, %v2181
        %v2246 = vadd.f32 %v2035, %v2182
        %v2247 = vadd.f32 %v2036, %v2183
        %v2248 = vadd.f32 %v2037, %v2184
        %v2249 = vadd.f32 %v2038, %v2185
        %v2250 = vadd.f32 %v2039, %v2186
        %v2251 = vadd.f32 %v2040, %v2187
        %v2252 = vadd.f32 %v2041, %v2188
        %v2253 = vadd.f32 %v2042, %v2189
        %v2254 = vadd.f32 %v2043, %v2190
        %v2255 = vadd.f32 %v2044, %v2191
        %v2256 = vadd.f32 %v2045, %v2192
        %v2257 = vadd.f32 %v2046, %v2193
        %v2258 = vadd.f32 %v2047, %v2194
        %v2259 = vadd.f32 %v2048, %v2195
        %v2260 = vadd.f32 %v2049, %v2196
        %v2261 = vadd.f32 %v2050, %v2197
        %v2262 = vadd.f32 %v2051, %v2198
        %v2263 = vadd.f32 %v2052, %v2199
        %v2264 = vadd.f32 %v2053, %v2200
        %v2265 = vadd.f32 %v2054, %v2201
        %v2266 = vadd.f32 %v2055, %v2202
        %v2267 = vadd.f32 %v2056, %v2203
        %v2268 = vld [vmem:[%s263] sm:$0xfe]
        %v2269 = vld [vmem:[%s263 + $0x8] sm:$0xfe]
        %v2270 = vld [vmem:[%s263 + $0x20] sm:$0x1]
        %v2271 = vld [vmem:[%s263 + $0x28] sm:$0x1]
        %v2272 = vld [vmem:[%s263 + $0x30] sm:$0xfe]
        %v2273 = vld [vmem:[%s263 + $0x38] sm:$0xfe]
        %v2274 = vld [vmem:[%s263 + $0x50] sm:$0x1]
        %v2275 = vld [vmem:[%s263 + $0x58] sm:$0x1]
        %v2276 = vld [vmem:[%s263 + $0x60] sm:$0xfe]
        %v2277 = vld [vmem:[%s263 + $0x68] sm:$0xfe]
        %v2278 = vld [vmem:[%s263 + $0x80] sm:$0x1]
        %v2279 = vld [vmem:[%s263 + $0x88] sm:$0x1]
        %v2280 = vld [vmem:[%s263 + $0x90] sm:$0xfe]
        %v2281 = vld [vmem:[%s263 + $0x98] sm:$0xfe]
        %v2282 = vld [vmem:[%s263 + $0xb0] sm:$0x1]
        %v2283 = vld [vmem:[%s263 + $0xb8] sm:$0x1]
        %v2284 = vld [vmem:[%s263 + $0xc0] sm:$0xfe]
        %v2285 = vld [vmem:[%s263 + $0xc8] sm:$0xfe]
        %v2286 = vld [vmem:[%s263 + $0xe0] sm:$0x1]
        %v2287 = vld [vmem:[%s263 + $0xe8] sm:$0x1]
        %v2288 = vld [vmem:[%s263 + $0xf0] sm:$0xfe]
        %v2289 = vld [vmem:[%s263 + $0xf8] sm:$0xfe]
        %v2290 = vld [vmem:[%s263 + $0x110] sm:$0x1]
        %v2291 = vld [vmem:[%s263 + $0x118] sm:$0x1]
        %v2292 = vld [vmem:[%s263 + $0x120] sm:$0xfe]
        %v2293 = vld [vmem:[%s263 + $0x128] sm:$0xfe]
        %v2294 = vld [vmem:[%s263 + $0x140] sm:$0x1]
        %v2295 = vld [vmem:[%s263 + $0x148] sm:$0x1]
        %v2296 = vld [vmem:[%s263 + $0x150] sm:$0xfe]
        %v2297 = vld [vmem:[%s263 + $0x158] sm:$0xfe]
        %v2298 = vld [vmem:[%s263 + $0x170] sm:$0x1]
        %v2299 = vld [vmem:[%s263 + $0x178] sm:$0x1]
        %v2300 = vld [vmem:[%s263 + $0x180] sm:$0xfe]
        %v2301 = vld [vmem:[%s263 + $0x188] sm:$0xfe]
        %v2302 = vld [vmem:[%s263 + $0x1a0] sm:$0x1]
        %v2303 = vld [vmem:[%s263 + $0x1a8] sm:$0x1]
        %v2304 = vld [vmem:[%s263 + $0x1b0] sm:$0xfe]
        %v2305 = vld [vmem:[%s263 + $0x1b8] sm:$0xfe]
        %v2306 = vld [vmem:[%s263 + $0x1d0] sm:$0x1]
        %v2307 = vld [vmem:[%s263 + $0x1d8] sm:$0x1]
        %v2308 = vld [vmem:[%s263 + $0x1e0] sm:$0xfe]
        %v2309 = vld [vmem:[%s263 + $0x1e8] sm:$0xfe]
        %v2310 = vld [vmem:[%s263 + $0x200] sm:$0x1]
        %v2311 = vld [vmem:[%s263 + $0x208] sm:$0x1]
        %v2312 = vld [vmem:[%s263 + $0x210] sm:$0xfe]
        %v2313 = vld [vmem:[%s263 + $0x218] sm:$0xfe]
        %v2314 = vld [vmem:[%s263 + $0x230] sm:$0x1]
        %v2315 = vld [vmem:[%s263 + $0x238] sm:$0x1]
        %v2316 = vld [vmem:[%s263 + $0x240] sm:$0xfe]
        %v2317 = vld [vmem:[%s263 + $0x248] sm:$0xfe]
        %v2318 = vld [vmem:[%s263 + $0x260] sm:$0x1]
        %v2319 = vld [vmem:[%s263 + $0x268] sm:$0x1]
        %v2320 = vld [vmem:[%s263 + $0x270] sm:$0xfe]
        %v2321 = vld [vmem:[%s263 + $0x278] sm:$0xfe]
        %v2322 = vld [vmem:[%s263 + $0x290] sm:$0x1]
        %v2323 = vld [vmem:[%s263 + $0x298] sm:$0x1]
        %v2324 = vld [vmem:[%s263 + $0x2a0] sm:$0xfe]
        %v2325 = vld [vmem:[%s263 + $0x2a8] sm:$0xfe]
        %v2326 = vld [vmem:[%s263 + $0x2c0] sm:$0x1]
        %v2327 = vld [vmem:[%s263 + $0x2c8] sm:$0x1]
        %v2328 = vld [vmem:[%s263 + $0x2d0] sm:$0xfe]
        %v2329 = vld [vmem:[%s263 + $0x2d8] sm:$0xfe]
        %v2330 = vld [vmem:[%s263 + $0x2f0] sm:$0x1]
        %v2331 = vld [vmem:[%s263 + $0x2f8] sm:$0x1]
        %v2332 = vlaneseq
        %v2333 = vshrl.u32 %v2332, 7
        %v2334 = vsub.s32 1, %v2333
        %v2335 = vrot.slane %v781, %v2334
        %v2336 = vlaneseq
        %v2337 = vshrl.u32 %v2336, 7
        %v2338 = vsub.s32 5, %v2337
        %v2339 = vrot.slane %v781, %v2338
        %v2342 = vlaneseq
        %v2343 = vshrl.u32 %v2342, 7
        %v2344 = vsub.s32 1, %v2343
        %v2345 = vrot.slane %v2335, %v2344
        %v2346 = vlaneseq
        %v2347 = vshrl.u32 %v2346, 7
        %v2348 = vsub.s32 1, %v2347
        %v2349 = vrot.slane %v2339, %v2348
        %v2350 = vmul.f32 %v2268, %v2345
        %v2351 = vmul.f32 %v2269, %v2349
        %v2352 = vmul.f32 %v2059, %v2345
        %v2353 = vmul.f32 %v2060, %v2349
        %v2354 = vmul.f32 %v2270, %v2345
        %v2355 = vmul.f32 %v2271, %v2349
        %v2356 = vmul.f32 %v2272, %v2345
        %v2357 = vmul.f32 %v2273, %v2349
        %v2358 = vmul.f32 %v2063, %v2345
        %v2359 = vmul.f32 %v2064, %v2349
        %v2360 = vmul.f32 %v2274, %v2345
        %v2361 = vmul.f32 %v2275, %v2349
        %v2362 = vmul.f32 %v2276, %v2345
        %v2363 = vmul.f32 %v2277, %v2349
        %v2364 = vmul.f32 %v2067, %v2345
        %v2365 = vmul.f32 %v2068, %v2349
        %v2366 = vmul.f32 %v2278, %v2345
        %v2367 = vmul.f32 %v2279, %v2349
        %v2368 = vmul.f32 %v2280, %v2345
        %v2369 = vmul.f32 %v2281, %v2349
        %v2370 = vmul.f32 %v2071, %v2345
        %v2371 = vmul.f32 %v2072, %v2349
        %v2372 = vmul.f32 %v2282, %v2345
        %v2373 = vmul.f32 %v2283, %v2349
        %v2374 = vmul.f32 %v2284, %v2345
        %v2375 = vmul.f32 %v2285, %v2349
        %v2376 = vmul.f32 %v2075, %v2345
        %v2377 = vmul.f32 %v2076, %v2349
        %v2378 = vmul.f32 %v2286, %v2345
        %v2379 = vmul.f32 %v2287, %v2349
        %v2380 = vmul.f32 %v2288, %v2345
        %v2381 = vmul.f32 %v2289, %v2349
        %v2382 = vmul.f32 %v2079, %v2345
        %v2383 = vmul.f32 %v2080, %v2349
        %v2384 = vmul.f32 %v2290, %v2345
        %v2385 = vmul.f32 %v2291, %v2349
        %v2386 = vmul.f32 %v2292, %v2345
        %v2387 = vmul.f32 %v2293, %v2349
        %v2388 = vmul.f32 %v2083, %v2345
        %v2389 = vmul.f32 %v2084, %v2349
        %v2390 = vmul.f32 %v2294, %v2345
        %v2391 = vmul.f32 %v2295, %v2349
        %v2392 = vmul.f32 %v2296, %v2345
        %v2393 = vmul.f32 %v2297, %v2349
        %v2394 = vmul.f32 %v2087, %v2345
        %v2395 = vmul.f32 %v2088, %v2349
        %v2396 = vmul.f32 %v2298, %v2345
        %v2397 = vmul.f32 %v2299, %v2349
        %v2398 = vmul.f32 %v2300, %v2345
        %v2399 = vmul.f32 %v2301, %v2349
        %v2400 = vmul.f32 %v2091, %v2345
        %v2401 = vmul.f32 %v2092, %v2349
        %v2402 = vmul.f32 %v2302, %v2345
        %v2403 = vmul.f32 %v2303, %v2349
        %v2404 = vmul.f32 %v2304, %v2345
        %v2405 = vmul.f32 %v2305, %v2349
        %v2406 = vmul.f32 %v2095, %v2345
        %v2407 = vmul.f32 %v2096, %v2349
        %v2408 = vmul.f32 %v2306, %v2345
        %v2409 = vmul.f32 %v2307, %v2349
        %v2410 = vmul.f32 %v2308, %v2345
        %v2411 = vmul.f32 %v2309, %v2349
        %v2412 = vmul.f32 %v2099, %v2345
        %v2413 = vmul.f32 %v2100, %v2349
        %v2414 = vmul.f32 %v2310, %v2345
        %v2415 = vmul.f32 %v2311, %v2349
        %v2416 = vmul.f32 %v2312, %v2345
        %v2417 = vmul.f32 %v2313, %v2349
        %v2418 = vmul.f32 %v2103, %v2345
        %v2419 = vmul.f32 %v2104, %v2349
        %v2420 = vmul.f32 %v2314, %v2345
        %v2421 = vmul.f32 %v2315, %v2349
        %v2422 = vmul.f32 %v2316, %v2345
        %v2423 = vmul.f32 %v2317, %v2349
        %v2424 = vmul.f32 %v2107, %v2345
        %v2425 = vmul.f32 %v2108, %v2349
        %v2426 = vmul.f32 %v2318, %v2345
        %v2427 = vmul.f32 %v2319, %v2349
        %v2428 = vmul.f32 %v2320, %v2345
        %v2429 = vmul.f32 %v2321, %v2349
        %v2430 = vmul.f32 %v2111, %v2345
        %v2431 = vmul.f32 %v2112, %v2349
        %v2432 = vmul.f32 %v2322, %v2345
        %v2433 = vmul.f32 %v2323, %v2349
        %v2434 = vmul.f32 %v2324, %v2345
        %v2435 = vmul.f32 %v2325, %v2349
        %v2436 = vmul.f32 %v2115, %v2345
        %v2437 = vmul.f32 %v2116, %v2349
        %v2438 = vmul.f32 %v2326, %v2345
        %v2439 = vmul.f32 %v2327, %v2349
        %v2440 = vmul.f32 %v2328, %v2345
        %v2441 = vmul.f32 %v2329, %v2349
        %v2442 = vmul.f32 %v2119, %v2345
        %v2443 = vmul.f32 %v2120, %v2349
        %v2444 = vmul.f32 %v2330, %v2345
        %v2445 = vmul.f32 %v2331, %v2349
        %v2542 = vrot.slane %v2350, 1
        %v2543 = vrot.slane %v2352, 1
        %v2544 = vsel %vm1205, %v2542, %v2543
        %v2545 = vrot.slane %v2351, 1
        %v2546 = vrot.slane %v2353, 1
        %v2547 = vsel %vm1205, %v2545, %v2546
        %v2548 = vrot.slane %v2354, 1
        %v2549 = vsel %vm1205, %v2543, %v2548
        %v2550 = vrot.slane %v2355, 1
        %v2551 = vsel %vm1205, %v2546, %v2550
        %v2552 = vrot.slane %v2356, 1
        %v2553 = vrot.slane %v2358, 1
        %v2554 = vsel %vm1205, %v2552, %v2553
        %v2555 = vrot.slane %v2357, 1
        %v2556 = vrot.slane %v2359, 1
        %v2557 = vsel %vm1205, %v2555, %v2556
        %v2558 = vrot.slane %v2360, 1
        %v2559 = vsel %vm1205, %v2553, %v2558
        %v2560 = vrot.slane %v2361, 1
        %v2561 = vsel %vm1205, %v2556, %v2560
        %v2562 = vrot.slane %v2362, 1
        %v2563 = vrot.slane %v2364, 1
        %v2564 = vsel %vm1205, %v2562, %v2563
        %v2565 = vrot.slane %v2363, 1
        %v2566 = vrot.slane %v2365, 1
        %v2567 = vsel %vm1205, %v2565, %v2566
        %v2568 = vrot.slane %v2366, 1
        %v2569 = vsel %vm1205, %v2563, %v2568
        %v2570 = vrot.slane %v2367, 1
        %v2571 = vsel %vm1205, %v2566, %v2570
        %v2572 = vrot.slane %v2368, 1
        %v2573 = vrot.slane %v2370, 1
        %v2574 = vsel %vm1205, %v2572, %v2573
        %v2575 = vrot.slane %v2369, 1
        %v2576 = vrot.slane %v2371, 1
        %v2577 = vsel %vm1205, %v2575, %v2576
        %v2578 = vrot.slane %v2372, 1
        %v2579 = vsel %vm1205, %v2573, %v2578
        %v2580 = vrot.slane %v2373, 1
        %v2581 = vsel %vm1205, %v2576, %v2580
        %v2582 = vrot.slane %v2374, 1
        %v2583 = vrot.slane %v2376, 1
        %v2584 = vsel %vm1205, %v2582, %v2583
        %v2585 = vrot.slane %v2375, 1
        %v2586 = vrot.slane %v2377, 1
        %v2587 = vsel %vm1205, %v2585, %v2586
        %v2588 = vrot.slane %v2378, 1
        %v2589 = vsel %vm1205, %v2583, %v2588
        %v2590 = vrot.slane %v2379, 1
        %v2591 = vsel %vm1205, %v2586, %v2590
        %v2592 = vrot.slane %v2380, 1
        %v2593 = vrot.slane %v2382, 1
        %v2594 = vsel %vm1205, %v2592, %v2593
        %v2595 = vrot.slane %v2381, 1
        %v2596 = vrot.slane %v2383, 1
        %v2597 = vsel %vm1205, %v2595, %v2596
        %v2598 = vrot.slane %v2384, 1
        %v2599 = vsel %vm1205, %v2593, %v2598
        %v2600 = vrot.slane %v2385, 1
        %v2601 = vsel %vm1205, %v2596, %v2600
        %v2602 = vrot.slane %v2386, 1
        %v2603 = vrot.slane %v2388, 1
        %v2604 = vsel %vm1205, %v2602, %v2603
        %v2605 = vrot.slane %v2387, 1
        %v2606 = vrot.slane %v2389, 1
        %v2607 = vsel %vm1205, %v2605, %v2606
        %v2608 = vrot.slane %v2390, 1
        %v2609 = vsel %vm1205, %v2603, %v2608
        %v2610 = vrot.slane %v2391, 1
        %v2611 = vsel %vm1205, %v2606, %v2610
        %v2612 = vrot.slane %v2392, 1
        %v2613 = vrot.slane %v2394, 1
        %v2614 = vsel %vm1205, %v2612, %v2613
        %v2615 = vrot.slane %v2393, 1
        %v2616 = vrot.slane %v2395, 1
        %v2617 = vsel %vm1205, %v2615, %v2616
        %v2618 = vrot.slane %v2396, 1
        %v2619 = vsel %vm1205, %v2613, %v2618
        %v2620 = vrot.slane %v2397, 1
        %v2621 = vsel %vm1205, %v2616, %v2620
        %v2622 = vrot.slane %v2398, 1
        %v2623 = vrot.slane %v2400, 1
        %v2624 = vsel %vm1205, %v2622, %v2623
        %v2625 = vrot.slane %v2399, 1
        %v2626 = vrot.slane %v2401, 1
        %v2627 = vsel %vm1205, %v2625, %v2626
        %v2628 = vrot.slane %v2402, 1
        %v2629 = vsel %vm1205, %v2623, %v2628
        %v2630 = vrot.slane %v2403, 1
        %v2631 = vsel %vm1205, %v2626, %v2630
        %v2632 = vrot.slane %v2404, 1
        %v2633 = vrot.slane %v2406, 1
        %v2634 = vsel %vm1205, %v2632, %v2633
        %v2635 = vrot.slane %v2405, 1
        %v2636 = vrot.slane %v2407, 1
        %v2637 = vsel %vm1205, %v2635, %v2636
        %v2638 = vrot.slane %v2408, 1
        %v2639 = vsel %vm1205, %v2633, %v2638
        %v2640 = vrot.slane %v2409, 1
        %v2641 = vsel %vm1205, %v2636, %v2640
        %v2642 = vrot.slane %v2410, 1
        %v2643 = vrot.slane %v2412, 1
        %v2644 = vsel %vm1205, %v2642, %v2643
        %v2645 = vrot.slane %v2411, 1
        %v2646 = vrot.slane %v2413, 1
        %v2647 = vsel %vm1205, %v2645, %v2646
        %v2648 = vrot.slane %v2414, 1
        %v2649 = vsel %vm1205, %v2643, %v2648
        %v2650 = vrot.slane %v2415, 1
        %v2651 = vsel %vm1205, %v2646, %v2650
        %v2652 = vrot.slane %v2416, 1
        %v2653 = vrot.slane %v2418, 1
        %v2654 = vsel %vm1205, %v2652, %v2653
        %v2655 = vrot.slane %v2417, 1
        %v2656 = vrot.slane %v2419, 1
        %v2657 = vsel %vm1205, %v2655, %v2656
        %v2658 = vrot.slane %v2420, 1
        %v2659 = vsel %vm1205, %v2653, %v2658
        %v2660 = vrot.slane %v2421, 1
        %v2661 = vsel %vm1205, %v2656, %v2660
        %v2662 = vrot.slane %v2422, 1
        %v2663 = vrot.slane %v2424, 1
        %v2664 = vsel %vm1205, %v2662, %v2663
        %v2665 = vrot.slane %v2423, 1
        %v2666 = vrot.slane %v2425, 1
        %v2667 = vsel %vm1205, %v2665, %v2666
        %v2668 = vrot.slane %v2426, 1
        %v2669 = vsel %vm1205, %v2663, %v2668
        %v2670 = vrot.slane %v2427, 1
        %v2671 = vsel %vm1205, %v2666, %v2670
        %v2672 = vrot.slane %v2428, 1
        %v2673 = vrot.slane %v2430, 1
        %v2674 = vsel %vm1205, %v2672, %v2673
        %v2675 = vrot.slane %v2429, 1
        %v2676 = vrot.slane %v2431, 1
        %v2677 = vsel %vm1205, %v2675, %v2676
        %v2678 = vrot.slane %v2432, 1
        %v2679 = vsel %vm1205, %v2673, %v2678
        %v2680 = vrot.slane %v2433, 1
        %v2681 = vsel %vm1205, %v2676, %v2680
        %v2682 = vrot.slane %v2434, 1
        %v2683 = vrot.slane %v2436, 1
        %v2684 = vsel %vm1205, %v2682, %v2683
        %v2685 = vrot.slane %v2435, 1
        %v2686 = vrot.slane %v2437, 1
        %v2687 = vsel %vm1205, %v2685, %v2686
        %v2688 = vrot.slane %v2438, 1
        %v2689 = vsel %vm1205, %v2683, %v2688
        %v2690 = vrot.slane %v2439, 1
        %v2691 = vsel %vm1205, %v2686, %v2690
        %v2692 = vrot.slane %v2440, 1
        %v2693 = vrot.slane %v2442, 1
        %v2694 = vsel %vm1205, %v2692, %v2693
        %v2695 = vrot.slane %v2441, 1
        %v2696 = vrot.slane %v2443, 1
        %v2697 = vsel %vm1205, %v2695, %v2696
        %v2698 = vrot.slane %v2444, 1
        %v2699 = vsel %vm1205, %v2693, %v2698
        %v2700 = vrot.slane %v2445, 1
        %v2701 = vsel %vm1205, %v2696, %v2700
        %v2766 = vadd.f32 %v2204, %v2544
        %v2767 = vadd.f32 %v2205, %v2547
        %v2768 = vadd.f32 %v2206, %v2549
        %v2769 = vadd.f32 %v2207, %v2551
        %v2770 = vadd.f32 %v2208, %v2554
        %v2771 = vadd.f32 %v2209, %v2557
        %v2772 = vadd.f32 %v2210, %v2559
        %v2773 = vadd.f32 %v2211, %v2561
        %v2774 = vadd.f32 %v2212, %v2564
        %v2775 = vadd.f32 %v2213, %v2567
        %v2776 = vadd.f32 %v2214, %v2569
        %v2777 = vadd.f32 %v2215, %v2571
        %v2778 = vadd.f32 %v2216, %v2574
        %v2779 = vadd.f32 %v2217, %v2577
        %v2780 = vadd.f32 %v2218, %v2579
        %v2781 = vadd.f32 %v2219, %v2581
        %v2782 = vadd.f32 %v2220, %v2584
        %v2783 = vadd.f32 %v2221, %v2587
        %v2784 = vadd.f32 %v2222, %v2589
        %v2785 = vadd.f32 %v2223, %v2591
        %v2786 = vadd.f32 %v2224, %v2594
        %v2787 = vadd.f32 %v2225, %v2597
        %v2788 = vadd.f32 %v2226, %v2599
        %v2789 = vadd.f32 %v2227, %v2601
        %v2790 = vadd.f32 %v2228, %v2604
        %v2791 = vadd.f32 %v2229, %v2607
        %v2792 = vadd.f32 %v2230, %v2609
        %v2793 = vadd.f32 %v2231, %v2611
        %v2794 = vadd.f32 %v2232, %v2614
        %v2795 = vadd.f32 %v2233, %v2617
        %v2796 = vadd.f32 %v2234, %v2619
        %v2797 = vadd.f32 %v2235, %v2621
        %v2798 = vadd.f32 %v2236, %v2624
        %v2799 = vadd.f32 %v2237, %v2627
        %v2800 = vadd.f32 %v2238, %v2629
        %v2801 = vadd.f32 %v2239, %v2631
        %v2802 = vadd.f32 %v2240, %v2634
        %v2803 = vadd.f32 %v2241, %v2637
        %v2804 = vadd.f32 %v2242, %v2639
        %v2805 = vadd.f32 %v2243, %v2641
        %v2806 = vadd.f32 %v2244, %v2644
        %v2807 = vadd.f32 %v2245, %v2647
        %v2808 = vadd.f32 %v2246, %v2649
        %v2809 = vadd.f32 %v2247, %v2651
        %v2810 = vadd.f32 %v2248, %v2654
        %v2811 = vadd.f32 %v2249, %v2657
        %v2812 = vadd.f32 %v2250, %v2659
        %v2813 = vadd.f32 %v2251, %v2661
        %v2814 = vadd.f32 %v2252, %v2664
        %v2815 = vadd.f32 %v2253, %v2667
        %v2816 = vadd.f32 %v2254, %v2669
        %v2817 = vadd.f32 %v2255, %v2671
        %v2818 = vadd.f32 %v2256, %v2674
        %v2819 = vadd.f32 %v2257, %v2677
        %v2820 = vadd.f32 %v2258, %v2679
        %v2821 = vadd.f32 %v2259, %v2681
        %v2822 = vadd.f32 %v2260, %v2684
        %v2823 = vadd.f32 %v2261, %v2687
        %v2824 = vadd.f32 %v2262, %v2689
        %v2825 = vadd.f32 %v2263, %v2691
        %v2826 = vadd.f32 %v2264, %v2694
        %v2827 = vadd.f32 %v2265, %v2697
        %v2828 = vadd.f32 %v2266, %v2699
        %v2829 = vadd.f32 %v2267, %v2701
        %v2830 = vld [vmem:[%s263] sm:$0xfc]
        %v2831 = vld [vmem:[%s263 + $0x8] sm:$0xfc]
        %v2832 = vld [vmem:[%s263 + $0x20] sm:$0x3]
        %v2833 = vld [vmem:[%s263 + $0x28] sm:$0x3]
        %v2834 = vld [vmem:[%s263 + $0x30] sm:$0xfc]
        %v2835 = vld [vmem:[%s263 + $0x38] sm:$0xfc]
        %v2836 = vld [vmem:[%s263 + $0x50] sm:$0x3]
        %v2837 = vld [vmem:[%s263 + $0x58] sm:$0x3]
        %v2838 = vld [vmem:[%s263 + $0x60] sm:$0xfc]
        %v2839 = vld [vmem:[%s263 + $0x68] sm:$0xfc]
        %v2840 = vld [vmem:[%s263 + $0x80] sm:$0x3]
        %v2841 = vld [vmem:[%s263 + $0x88] sm:$0x3]
        %v2842 = vld [vmem:[%s263 + $0x90] sm:$0xfc]
        %v2843 = vld [vmem:[%s263 + $0x98] sm:$0xfc]
        %v2844 = vld [vmem:[%s263 + $0xb0] sm:$0x3]
        %v2845 = vld [vmem:[%s263 + $0xb8] sm:$0x3]
        %v2846 = vld [vmem:[%s263 + $0xc0] sm:$0xfc]
        %v2847 = vld [vmem:[%s263 + $0xc8] sm:$0xfc]
        %v2848 = vld [vmem:[%s263 + $0xe0] sm:$0x3]
        %v2849 = vld [vmem:[%s263 + $0xe8] sm:$0x3]
        %v2850 = vld [vmem:[%s263 + $0xf0] sm:$0xfc]
        %v2851 = vld [vmem:[%s263 + $0xf8] sm:$0xfc]
        %v2852 = vld [vmem:[%s263 + $0x110] sm:$0x3]
        %v2853 = vld [vmem:[%s263 + $0x118] sm:$0x3]
        %v2854 = vld [vmem:[%s263 + $0x120] sm:$0xfc]
        %v2855 = vld [vmem:[%s263 + $0x128] sm:$0xfc]
        %v2856 = vld [vmem:[%s263 + $0x140] sm:$0x3]
        %v2857 = vld [vmem:[%s263 + $0x148] sm:$0x3]
        %v2858 = vld [vmem:[%s263 + $0x150] sm:$0xfc]
        %v2859 = vld [vmem:[%s263 + $0x158] sm:$0xfc]
        %v2860 = vld [vmem:[%s263 + $0x170] sm:$0x3]
        %v2861 = vld [vmem:[%s263 + $0x178] sm:$0x3]
        %v2862 = vld [vmem:[%s263 + $0x180] sm:$0xfc]
        %v2863 = vld [vmem:[%s263 + $0x188] sm:$0xfc]
        %v2864 = vld [vmem:[%s263 + $0x1a0] sm:$0x3]
        %v2865 = vld [vmem:[%s263 + $0x1a8] sm:$0x3]
        %v2866 = vld [vmem:[%s263 + $0x1b0] sm:$0xfc]
        %v2867 = vld [vmem:[%s263 + $0x1b8] sm:$0xfc]
        %v2868 = vld [vmem:[%s263 + $0x1d0] sm:$0x3]
        %v2869 = vld [vmem:[%s263 + $0x1d8] sm:$0x3]
        %v2870 = vld [vmem:[%s263 + $0x1e0] sm:$0xfc]
        %v2871 = vld [vmem:[%s263 + $0x1e8] sm:$0xfc]
        %v2872 = vld [vmem:[%s263 + $0x200] sm:$0x3]
        %v2873 = vld [vmem:[%s263 + $0x208] sm:$0x3]
        %v2874 = vld [vmem:[%s263 + $0x210] sm:$0xfc]
        %v2875 = vld [vmem:[%s263 + $0x218] sm:$0xfc]
        %v2876 = vld [vmem:[%s263 + $0x230] sm:$0x3]
        %v2877 = vld [vmem:[%s263 + $0x238] sm:$0x3]
        %v2878 = vld [vmem:[%s263 + $0x240] sm:$0xfc]
        %v2879 = vld [vmem:[%s263 + $0x248] sm:$0xfc]
        %v2880 = vld [vmem:[%s263 + $0x260] sm:$0x3]
        %v2881 = vld [vmem:[%s263 + $0x268] sm:$0x3]
        %v2882 = vld [vmem:[%s263 + $0x270] sm:$0xfc]
        %v2883 = vld [vmem:[%s263 + $0x278] sm:$0xfc]
        %v2884 = vld [vmem:[%s263 + $0x290] sm:$0x3]
        %v2885 = vld [vmem:[%s263 + $0x298] sm:$0x3]
        %v2886 = vld [vmem:[%s263 + $0x2a0] sm:$0xfc]
        %v2887 = vld [vmem:[%s263 + $0x2a8] sm:$0xfc]
        %v2888 = vld [vmem:[%s263 + $0x2c0] sm:$0x3]
        %v2889 = vld [vmem:[%s263 + $0x2c8] sm:$0x3]
        %v2890 = vld [vmem:[%s263 + $0x2d0] sm:$0xfc]
        %v2891 = vld [vmem:[%s263 + $0x2d8] sm:$0xfc]
        %v2892 = vld [vmem:[%s263 + $0x2f0] sm:$0x3]
        %v2893 = vld [vmem:[%s263 + $0x2f8] sm:$0x3]
        %v2894 = vlaneseq
        %v2895 = vshrl.u32 %v2894, 7
        %v2896 = vsub.s32 2, %v2895
        %v2897 = vrot.slane %v781, %v2896
        %v2898 = vlaneseq
        %v2899 = vshrl.u32 %v2898, 7
        %v2900 = vsub.s32 6, %v2899
        %v2901 = vrot.slane %v781, %v2900
        %v2904 = vlaneseq
        %v2905 = vshrl.u32 %v2904, 7
        %v2906 = vsub.s32 2, %v2905
        %v2907 = vrot.slane %v2897, %v2906
        %v2908 = vlaneseq
        %v2909 = vshrl.u32 %v2908, 7
        %v2910 = vsub.s32 2, %v2909
        %v2911 = vrot.slane %v2901, %v2910
        %v2912 = vmul.f32 %v2830, %v2907
        %v2913 = vmul.f32 %v2831, %v2911
        %v2914 = vmul.f32 %v2059, %v2907
        %v2915 = vmul.f32 %v2060, %v2911
        %v2916 = vmul.f32 %v2832, %v2907
        %v2917 = vmul.f32 %v2833, %v2911
        %v2918 = vmul.f32 %v2834, %v2907
        %v2919 = vmul.f32 %v2835, %v2911
        %v2920 = vmul.f32 %v2063, %v2907
        %v2921 = vmul.f32 %v2064, %v2911
        %v2922 = vmul.f32 %v2836, %v2907
        %v2923 = vmul.f32 %v2837, %v2911
        %v2924 = vmul.f32 %v2838, %v2907
        %v2925 = vmul.f32 %v2839, %v2911
        %v2926 = vmul.f32 %v2067, %v2907
        %v2927 = vmul.f32 %v2068, %v2911
        %v2928 = vmul.f32 %v2840, %v2907
        %v2929 = vmul.f32 %v2841, %v2911
        %v2930 = vmul.f32 %v2842, %v2907
        %v2931 = vmul.f32 %v2843, %v2911
        %v2932 = vmul.f32 %v2071, %v2907
        %v2933 = vmul.f32 %v2072, %v2911
        %v2934 = vmul.f32 %v2844, %v2907
        %v2935 = vmul.f32 %v2845, %v2911
        %v2936 = vmul.f32 %v2846, %v2907
        %v2937 = vmul.f32 %v2847, %v2911
        %v2938 = vmul.f32 %v2075, %v2907
        %v2939 = vmul.f32 %v2076, %v2911
        %v2940 = vmul.f32 %v2848, %v2907
        %v2941 = vmul.f32 %v2849, %v2911
        %v2942 = vmul.f32 %v2850, %v2907
        %v2943 = vmul.f32 %v2851, %v2911
        %v2944 = vmul.f32 %v2079, %v2907
        %v2945 = vmul.f32 %v2080, %v2911
        %v2946 = vmul.f32 %v2852, %v2907
        %v2947 = vmul.f32 %v2853, %v2911
        %v2948 = vmul.f32 %v2854, %v2907
        %v2949 = vmul.f32 %v2855, %v2911
        %v2950 = vmul.f32 %v2083, %v2907
        %v2951 = vmul.f32 %v2084, %v2911
        %v2952 = vmul.f32 %v2856, %v2907
        %v2953 = vmul.f32 %v2857, %v2911
        %v2954 = vmul.f32 %v2858, %v2907
        %v2955 = vmul.f32 %v2859, %v2911
        %v2956 = vmul.f32 %v2087, %v2907
        %v2957 = vmul.f32 %v2088, %v2911
        %v2958 = vmul.f32 %v2860, %v2907
        %v2959 = vmul.f32 %v2861, %v2911
        %v2960 = vmul.f32 %v2862, %v2907
        %v2961 = vmul.f32 %v2863, %v2911
        %v2962 = vmul.f32 %v2091, %v2907
        %v2963 = vmul.f32 %v2092, %v2911
        %v2964 = vmul.f32 %v2864, %v2907
        %v2965 = vmul.f32 %v2865, %v2911
        %v2966 = vmul.f32 %v2866, %v2907
        %v2967 = vmul.f32 %v2867, %v2911
        %v2968 = vmul.f32 %v2095, %v2907
        %v2969 = vmul.f32 %v2096, %v2911
        %v2970 = vmul.f32 %v2868, %v2907
        %v2971 = vmul.f32 %v2869, %v2911
        %v2972 = vmul.f32 %v2870, %v2907
        %v2973 = vmul.f32 %v2871, %v2911
        %v2974 = vmul.f32 %v2099, %v2907
        %v2975 = vmul.f32 %v2100, %v2911
        %v2976 = vmul.f32 %v2872, %v2907
        %v2977 = vmul.f32 %v2873, %v2911
        %v2978 = vmul.f32 %v2874, %v2907
        %v2979 = vmul.f32 %v2875, %v2911
        %v2980 = vmul.f32 %v2103, %v2907
        %v2981 = vmul.f32 %v2104, %v2911
        %v2982 = vmul.f32 %v2876, %v2907
        %v2983 = vmul.f32 %v2877, %v2911
        %v2984 = vmul.f32 %v2878, %v2907
        %v2985 = vmul.f32 %v2879, %v2911
        %v2986 = vmul.f32 %v2107, %v2907
        %v2987 = vmul.f32 %v2108, %v2911
        %v2988 = vmul.f32 %v2880, %v2907
        %v2989 = vmul.f32 %v2881, %v2911
        %v2990 = vmul.f32 %v2882, %v2907
        %v2991 = vmul.f32 %v2883, %v2911
        %v2992 = vmul.f32 %v2111, %v2907
        %v2993 = vmul.f32 %v2112, %v2911
        %v2994 = vmul.f32 %v2884, %v2907
        %v2995 = vmul.f32 %v2885, %v2911
        %v2996 = vmul.f32 %v2886, %v2907
        %v2997 = vmul.f32 %v2887, %v2911
        %v2998 = vmul.f32 %v2115, %v2907
        %v2999 = vmul.f32 %v2116, %v2911
        %v3000 = vmul.f32 %v2888, %v2907
        %v3001 = vmul.f32 %v2889, %v2911
        %v3002 = vmul.f32 %v2890, %v2907
        %v3003 = vmul.f32 %v2891, %v2911
        %v3004 = vmul.f32 %v2119, %v2907
        %v3005 = vmul.f32 %v2120, %v2911
        %v3006 = vmul.f32 %v2892, %v2907
        %v3007 = vmul.f32 %v2893, %v2911
        %v3104 = vrot.slane %v2912, 2
        %v3105 = vrot.slane %v2914, 2
        %v3106 = vsel %vm1768, %v3104, %v3105
        %v3107 = vrot.slane %v2913, 2
        %v3108 = vrot.slane %v2915, 2
        %v3109 = vsel %vm1768, %v3107, %v3108
        %v3110 = vrot.slane %v2916, 2
        %v3111 = vsel %vm1768, %v3105, %v3110
        %v3112 = vrot.slane %v2917, 2
        %v3113 = vsel %vm1768, %v3108, %v3112
        %v3114 = vrot.slane %v2918, 2
        %v3115 = vrot.slane %v2920, 2
        %v3116 = vsel %vm1768, %v3114, %v3115
        %v3117 = vrot.slane %v2919, 2
        %v3118 = vrot.slane %v2921, 2
        %v3119 = vsel %vm1768, %v3117, %v3118
        %v3120 = vrot.slane %v2922, 2
        %v3121 = vsel %vm1768, %v3115, %v3120
        %v3122 = vrot.slane %v2923, 2
        %v3123 = vsel %vm1768, %v3118, %v3122
        %v3124 = vrot.slane %v2924, 2
        %v3125 = vrot.slane %v2926, 2
        %v3126 = vsel %vm1768, %v3124, %v3125
        %v3127 = vrot.slane %v2925, 2
        %v3128 = vrot.slane %v2927, 2
        %v3129 = vsel %vm1768, %v3127, %v3128
        %v3130 = vrot.slane %v2928, 2
        %v3131 = vsel %vm1768, %v3125, %v3130
        %v3132 = vrot.slane %v2929, 2
        %v3133 = vsel %vm1768, %v3128, %v3132
        %v3134 = vrot.slane %v2930, 2
        %v3135 = vrot.slane %v2932, 2
        %v3136 = vsel %vm1768, %v3134, %v3135
        %v3137 = vrot.slane %v2931, 2
        %v3138 = vrot.slane %v2933, 2
        %v3139 = vsel %vm1768, %v3137, %v3138
        %v3140 = vrot.slane %v2934, 2
        %v3141 = vsel %vm1768, %v3135, %v3140
        %v3142 = vrot.slane %v2935, 2
        %v3143 = vsel %vm1768, %v3138, %v3142
        %v3144 = vrot.slane %v2936, 2
        %v3145 = vrot.slane %v2938, 2
        %v3146 = vsel %vm1768, %v3144, %v3145
        %v3147 = vrot.slane %v2937, 2
        %v3148 = vrot.slane %v2939, 2
        %v3149 = vsel %vm1768, %v3147, %v3148
        %v3150 = vrot.slane %v2940, 2
        %v3151 = vsel %vm1768, %v3145, %v3150
        %v3152 = vrot.slane %v2941, 2
        %v3153 = vsel %vm1768, %v3148, %v3152
        %v3154 = vrot.slane %v2942, 2
        %v3155 = vrot.slane %v2944, 2
        %v3156 = vsel %vm1768, %v3154, %v3155
        %v3157 = vrot.slane %v2943, 2
        %v3158 = vrot.slane %v2945, 2
        %v3159 = vsel %vm1768, %v3157, %v3158
        %v3160 = vrot.slane %v2946, 2
        %v3161 = vsel %vm1768, %v3155, %v3160
        %v3162 = vrot.slane %v2947, 2
        %v3163 = vsel %vm1768, %v3158, %v3162
        %v3164 = vrot.slane %v2948, 2
        %v3165 = vrot.slane %v2950, 2
        %v3166 = vsel %vm1768, %v3164, %v3165
        %v3167 = vrot.slane %v2949, 2
        %v3168 = vrot.slane %v2951, 2
        %v3169 = vsel %vm1768, %v3167, %v3168
        %v3170 = vrot.slane %v2952, 2
        %v3171 = vsel %vm1768, %v3165, %v3170
        %v3172 = vrot.slane %v2953, 2
        %v3173 = vsel %vm1768, %v3168, %v3172
        %v3174 = vrot.slane %v2954, 2
        %v3175 = vrot.slane %v2956, 2
        %v3176 = vsel %vm1768, %v3174, %v3175
        %v3177 = vrot.slane %v2955, 2
        %v3178 = vrot.slane %v2957, 2
        %v3179 = vsel %vm1768, %v3177, %v3178
        %v3180 = vrot.slane %v2958, 2
        %v3181 = vsel %vm1768, %v3175, %v3180
        %v3182 = vrot.slane %v2959, 2
        %v3183 = vsel %vm1768, %v3178, %v3182
        %v3184 = vrot.slane %v2960, 2
        %v3185 = vrot.slane %v2962, 2
        %v3186 = vsel %vm1768, %v3184, %v3185
        %v3187 = vrot.slane %v2961, 2
        %v3188 = vrot.slane %v2963, 2
        %v3189 = vsel %vm1768, %v3187, %v3188
        %v3190 = vrot.slane %v2964, 2
        %v3191 = vsel %vm1768, %v3185, %v3190
        %v3192 = vrot.slane %v2965, 2
        %v3193 = vsel %vm1768, %v3188, %v3192
        %v3194 = vrot.slane %v2966, 2
        %v3195 = vrot.slane %v2968, 2
        %v3196 = vsel %vm1768, %v3194, %v3195
        %v3197 = vrot.slane %v2967, 2
        %v3198 = vrot.slane %v2969, 2
        %v3199 = vsel %vm1768, %v3197, %v3198
        %v3200 = vrot.slane %v2970, 2
        %v3201 = vsel %vm1768, %v3195, %v3200
        %v3202 = vrot.slane %v2971, 2
        %v3203 = vsel %vm1768, %v3198, %v3202
        %v3204 = vrot.slane %v2972, 2
        %v3205 = vrot.slane %v2974, 2
        %v3206 = vsel %vm1768, %v3204, %v3205
        %v3207 = vrot.slane %v2973, 2
        %v3208 = vrot.slane %v2975, 2
        %v3209 = vsel %vm1768, %v3207, %v3208
        %v3210 = vrot.slane %v2976, 2
        %v3211 = vsel %vm1768, %v3205, %v3210
        %v3212 = vrot.slane %v2977, 2
        %v3213 = vsel %vm1768, %v3208, %v3212
        %v3214 = vrot.slane %v2978, 2
        %v3215 = vrot.slane %v2980, 2
        %v3216 = vsel %vm1768, %v3214, %v3215
        %v3217 = vrot.slane %v2979, 2
        %v3218 = vrot.slane %v2981, 2
        %v3219 = vsel %vm1768, %v3217, %v3218
        %v3220 = vrot.slane %v2982, 2
        %v3221 = vsel %vm1768, %v3215, %v3220
        %v3222 = vrot.slane %v2983, 2
        %v3223 = vsel %vm1768, %v3218, %v3222
        %v3224 = vrot.slane %v2984, 2
        %v3225 = vrot.slane %v2986, 2
        %v3226 = vsel %vm1768, %v3224, %v3225
        %v3227 = vrot.slane %v2985, 2
        %v3228 = vrot.slane %v2987, 2
        %v3229 = vsel %vm1768, %v3227, %v3228
        %v3230 = vrot.slane %v2988, 2
        %v3231 = vsel %vm1768, %v3225, %v3230
        %v3232 = vrot.slane %v2989, 2
        %v3233 = vsel %vm1768, %v3228, %v3232
        %v3234 = vrot.slane %v2990, 2
        %v3235 = vrot.slane %v2992, 2
        %v3236 = vsel %vm1768, %v3234, %v3235
        %v3237 = vrot.slane %v2991, 2
        %v3238 = vrot.slane %v2993, 2
        %v3239 = vsel %vm1768, %v3237, %v3238
        %v3240 = vrot.slane %v2994, 2
        %v3241 = vsel %vm1768, %v3235, %v3240
        %v3242 = vrot.slane %v2995, 2
        %v3243 = vsel %vm1768, %v3238, %v3242
        %v3244 = vrot.slane %v2996, 2
        %v3245 = vrot.slane %v2998, 2
        %v3246 = vsel %vm1768, %v3244, %v3245
        %v3247 = vrot.slane %v2997, 2
        %v3248 = vrot.slane %v2999, 2
        %v3249 = vsel %vm1768, %v3247, %v3248
        %v3250 = vrot.slane %v3000, 2
        %v3251 = vsel %vm1768, %v3245, %v3250
        %v3252 = vrot.slane %v3001, 2
        %v3253 = vsel %vm1768, %v3248, %v3252
        %v3254 = vrot.slane %v3002, 2
        %v3255 = vrot.slane %v3004, 2
        %v3256 = vsel %vm1768, %v3254, %v3255
        %v3257 = vrot.slane %v3003, 2
        %v3258 = vrot.slane %v3005, 2
        %v3259 = vsel %vm1768, %v3257, %v3258
        %v3260 = vrot.slane %v3006, 2
        %v3261 = vsel %vm1768, %v3255, %v3260
        %v3262 = vrot.slane %v3007, 2
        %v3263 = vsel %vm1768, %v3258, %v3262
        %v3328 = vadd.f32 %v2766, %v3106
        %v3329 = vadd.f32 %v2767, %v3109
        %v3330 = vadd.f32 %v2768, %v3111
        %v3331 = vadd.f32 %v2769, %v3113
        %v3332 = vadd.f32 %v2770, %v3116
        %v3333 = vadd.f32 %v2771, %v3119
        %v3334 = vadd.f32 %v2772, %v3121
        %v3335 = vadd.f32 %v2773, %v3123
        %v3336 = vadd.f32 %v2774, %v3126
        %v3337 = vadd.f32 %v2775, %v3129
        %v3338 = vadd.f32 %v2776, %v3131
        %v3339 = vadd.f32 %v2777, %v3133
        %v3340 = vadd.f32 %v2778, %v3136
        %v3341 = vadd.f32 %v2779, %v3139
        %v3342 = vadd.f32 %v2780, %v3141
        %v3343 = vadd.f32 %v2781, %v3143
        %v3344 = vadd.f32 %v2782, %v3146
        %v3345 = vadd.f32 %v2783, %v3149
        %v3346 = vadd.f32 %v2784, %v3151
        %v3347 = vadd.f32 %v2785, %v3153
        %v3348 = vadd.f32 %v2786, %v3156
        %v3349 = vadd.f32 %v2787, %v3159
        %v3350 = vadd.f32 %v2788, %v3161
        %v3351 = vadd.f32 %v2789, %v3163
        %v3352 = vadd.f32 %v2790, %v3166
        %v3353 = vadd.f32 %v2791, %v3169
        %v3354 = vadd.f32 %v2792, %v3171
        %v3355 = vadd.f32 %v2793, %v3173
        %v3356 = vadd.f32 %v2794, %v3176
        %v3357 = vadd.f32 %v2795, %v3179
        %v3358 = vadd.f32 %v2796, %v3181
        %v3359 = vadd.f32 %v2797, %v3183
        %v3360 = vadd.f32 %v2798, %v3186
        %v3361 = vadd.f32 %v2799, %v3189
        %v3362 = vadd.f32 %v2800, %v3191
        %v3363 = vadd.f32 %v2801, %v3193
        %v3364 = vadd.f32 %v2802, %v3196
        %v3365 = vadd.f32 %v2803, %v3199
        %v3366 = vadd.f32 %v2804, %v3201
        %v3367 = vadd.f32 %v2805, %v3203
        %v3368 = vadd.f32 %v2806, %v3206
        %v3369 = vadd.f32 %v2807, %v3209
        %v3370 = vadd.f32 %v2808, %v3211
        %v3371 = vadd.f32 %v2809, %v3213
        %v3372 = vadd.f32 %v2810, %v3216
        %v3373 = vadd.f32 %v2811, %v3219
        %v3374 = vadd.f32 %v2812, %v3221
        %v3375 = vadd.f32 %v2813, %v3223
        %v3376 = vadd.f32 %v2814, %v3226
        %v3377 = vadd.f32 %v2815, %v3229
        %v3378 = vadd.f32 %v2816, %v3231
        %v3379 = vadd.f32 %v2817, %v3233
        %v3380 = vadd.f32 %v2818, %v3236
        %v3381 = vadd.f32 %v2819, %v3239
        %v3382 = vadd.f32 %v2820, %v3241
        %v3383 = vadd.f32 %v2821, %v3243
        %v3384 = vadd.f32 %v2822, %v3246
        %v3385 = vadd.f32 %v2823, %v3249
        %v3386 = vadd.f32 %v2824, %v3251
        %v3387 = vadd.f32 %v2825, %v3253
        %v3388 = vadd.f32 %v2826, %v3256
        %v3389 = vadd.f32 %v2827, %v3259
        %v3390 = vadd.f32 %v2828, %v3261
        %v3391 = vadd.f32 %v2829, %v3263
        %s3392 = scalar_lea.vmem [#allocation2], 96
        %v3393 = vld [vmem:[%s3392] sm:$0xff]
        %v3394 = vld [vmem:[%s3392 + $0x8] sm:$0xff]
        %v3395 = vld [vmem:[%s3392 + $0x10] sm:$0xff]
        %v3396 = vld [vmem:[%s3392 + $0x18] sm:$0xff]
        %v3397 = vld [vmem:[%s3392 + $0x30] sm:$0xff]
        %v3398 = vld [vmem:[%s3392 + $0x38] sm:$0xff]
        %v3399 = vld [vmem:[%s3392 + $0x40] sm:$0xff]
        %v3400 = vld [vmem:[%s3392 + $0x48] sm:$0xff]
        %v3401 = vld [vmem:[%s3392 + $0x60] sm:$0xff]
        %v3402 = vld [vmem:[%s3392 + $0x68] sm:$0xff]
        %v3403 = vld [vmem:[%s3392 + $0x70] sm:$0xff]
        %v3404 = vld [vmem:[%s3392 + $0x78] sm:$0xff]
        %v3405 = vld [vmem:[%s3392 + $0x90] sm:$0xff]
        %v3406 = vld [vmem:[%s3392 + $0x98] sm:$0xff]
        %v3407 = vld [vmem:[%s3392 + $0xa0] sm:$0xff]
        %v3408 = vld [vmem:[%s3392 + $0xa8] sm:$0xff]
        %v3409 = vld [vmem:[%s3392 + $0xc0] sm:$0xff]
        %v3410 = vld [vmem:[%s3392 + $0xc8] sm:$0xff]
        %v3411 = vld [vmem:[%s3392 + $0xd0] sm:$0xff]
        %v3412 = vld [vmem:[%s3392 + $0xd8] sm:$0xff]
        %v3413 = vld [vmem:[%s3392 + $0xf0] sm:$0xff]
        %v3414 = vld [vmem:[%s3392 + $0xf8] sm:$0xff]
        %v3415 = vld [vmem:[%s3392 + $0x100] sm:$0xff]
        %v3416 = vld [vmem:[%s3392 + $0x108] sm:$0xff]
        %v3417 = vld [vmem:[%s3392 + $0x120] sm:$0xff]
        %v3418 = vld [vmem:[%s3392 + $0x128] sm:$0xff]
        %v3419 = vld [vmem:[%s3392 + $0x130] sm:$0xff]
        %v3420 = vld [vmem:[%s3392 + $0x138] sm:$0xff]
        %v3421 = vld [vmem:[%s3392 + $0x150] sm:$0xff]
        %v3422 = vld [vmem:[%s3392 + $0x158] sm:$0xff]
        %v3423 = vld [vmem:[%s3392 + $0x160] sm:$0xff]
        %v3424 = vld [vmem:[%s3392 + $0x168] sm:$0xff]
        %v3425 = vld [vmem:[%s3392 + $0x180] sm:$0xff]
        %v3426 = vld [vmem:[%s3392 + $0x188] sm:$0xff]
        %v3427 = vld [vmem:[%s3392 + $0x190] sm:$0xff]
        %v3428 = vld [vmem:[%s3392 + $0x198] sm:$0xff]
        %v3429 = vld [vmem:[%s3392 + $0x1b0] sm:$0xff]
        %v3430 = vld [vmem:[%s3392 + $0x1b8] sm:$0xff]
        %v3431 = vld [vmem:[%s3392 + $0x1c0] sm:$0xff]
        %v3432 = vld [vmem:[%s3392 + $0x1c8] sm:$0xff]
        %v3433 = vld [vmem:[%s3392 + $0x1e0] sm:$0xff]
        %v3434 = vld [vmem:[%s3392 + $0x1e8] sm:$0xff]
        %v3435 = vld [vmem:[%s3392 + $0x1f0] sm:$0xff]
        %v3436 = vld [vmem:[%s3392 + $0x1f8] sm:$0xff]
        %v3437 = vld [vmem:[%s3392 + $0x210] sm:$0xff]
        %v3438 = vld [vmem:[%s3392 + $0x218] sm:$0xff]
        %v3439 = vld [vmem:[%s3392 + $0x220] sm:$0xff]
        %v3440 = vld [vmem:[%s3392 + $0x228] sm:$0xff]
        %v3441 = vld [vmem:[%s3392 + $0x240] sm:$0xff]
        %v3442 = vld [vmem:[%s3392 + $0x248] sm:$0xff]
        %v3443 = vld [vmem:[%s3392 + $0x250] sm:$0xff]
        %v3444 = vld [vmem:[%s3392 + $0x258] sm:$0xff]
        %v3445 = vld [vmem:[%s3392 + $0x270] sm:$0xff]
        %v3446 = vld [vmem:[%s3392 + $0x278] sm:$0xff]
        %v3447 = vld [vmem:[%s3392 + $0x280] sm:$0xff]
        %v3448 = vld [vmem:[%s3392 + $0x288] sm:$0xff]
        %v3449 = vld [vmem:[%s3392 + $0x2a0] sm:$0xff]
        %v3450 = vld [vmem:[%s3392 + $0x2a8] sm:$0xff]
        %v3451 = vld [vmem:[%s3392 + $0x2b0] sm:$0xff]
        %v3452 = vld [vmem:[%s3392 + $0x2b8] sm:$0xff]
        %v3453 = vld [vmem:[%s3392 + $0x2d0] sm:$0xff]
        %v3454 = vld [vmem:[%s3392 + $0x2d8] sm:$0xff]
        %v3455 = vld [vmem:[%s3392 + $0x2e0] sm:$0xff]
        %v3456 = vld [vmem:[%s3392 + $0x2e8] sm:$0xff]
        %v3458 = vlaneseq
        %v3459 = vshrl.u32 %v3458, 7
        %v3460 = vsub.s32 0, %v3459
        %v3461 = vrot.slane %v782, %v3460
        %v3462 = vlaneseq
        %v3463 = vshrl.u32 %v3462, 7
        %v3464 = vsub.s32 4, %v3463
        %v3465 = vrot.slane %v782, %v3464
        %v3468 = vlaneseq
        %v3469 = vshrl.u32 %v3468, 7
        %v3470 = vsub.s32 0, %v3469
        %v3471 = vrot.slane %v3461, %v3470
        %v3472 = vlaneseq
        %v3473 = vshrl.u32 %v3472, 7
        %v3474 = vsub.s32 0, %v3473
        %v3475 = vrot.slane %v3465, %v3474
        %v3476 = vmul.f32 %v3393, %v3471
        %v3477 = vmul.f32 %v3394, %v3475
        %v3478 = vmul.f32 %v3395, %v3471
        %v3479 = vmul.f32 %v3396, %v3475
        %v3480 = vmul.f32 %v3397, %v3471
        %v3481 = vmul.f32 %v3398, %v3475
        %v3482 = vmul.f32 %v3399, %v3471
        %v3483 = vmul.f32 %v3400, %v3475
        %v3484 = vmul.f32 %v3401, %v3471
        %v3485 = vmul.f32 %v3402, %v3475
        %v3486 = vmul.f32 %v3403, %v3471
        %v3487 = vmul.f32 %v3404, %v3475
        %v3488 = vmul.f32 %v3405, %v3471
        %v3489 = vmul.f32 %v3406, %v3475
        %v3490 = vmul.f32 %v3407, %v3471
        %v3491 = vmul.f32 %v3408, %v3475
        %v3492 = vmul.f32 %v3409, %v3471
        %v3493 = vmul.f32 %v3410, %v3475
        %v3494 = vmul.f32 %v3411, %v3471
        %v3495 = vmul.f32 %v3412, %v3475
        %v3496 = vmul.f32 %v3413, %v3471
        %v3497 = vmul.f32 %v3414, %v3475
        %v3498 = vmul.f32 %v3415, %v3471
        %v3499 = vmul.f32 %v3416, %v3475
        %v3500 = vmul.f32 %v3417, %v3471
        %v3501 = vmul.f32 %v3418, %v3475
        %v3502 = vmul.f32 %v3419, %v3471
        %v3503 = vmul.f32 %v3420, %v3475
        %v3504 = vmul.f32 %v3421, %v3471
        %v3505 = vmul.f32 %v3422, %v3475
        %v3506 = vmul.f32 %v3423, %v3471
        %v3507 = vmul.f32 %v3424, %v3475
        %v3508 = vmul.f32 %v3425, %v3471
        %v3509 = vmul.f32 %v3426, %v3475
        %v3510 = vmul.f32 %v3427, %v3471
        %v3511 = vmul.f32 %v3428, %v3475
        %v3512 = vmul.f32 %v3429, %v3471
        %v3513 = vmul.f32 %v3430, %v3475
        %v3514 = vmul.f32 %v3431, %v3471
        %v3515 = vmul.f32 %v3432, %v3475
        %v3516 = vmul.f32 %v3433, %v3471
        %v3517 = vmul.f32 %v3434, %v3475
        %v3518 = vmul.f32 %v3435, %v3471
        %v3519 = vmul.f32 %v3436, %v3475
        %v3520 = vmul.f32 %v3437, %v3471
        %v3521 = vmul.f32 %v3438, %v3475
        %v3522 = vmul.f32 %v3439, %v3471
        %v3523 = vmul.f32 %v3440, %v3475
        %v3524 = vmul.f32 %v3441, %v3471
        %v3525 = vmul.f32 %v3442, %v3475
        %v3526 = vmul.f32 %v3443, %v3471
        %v3527 = vmul.f32 %v3444, %v3475
        %v3528 = vmul.f32 %v3445, %v3471
        %v3529 = vmul.f32 %v3446, %v3475
        %v3530 = vmul.f32 %v3447, %v3471
        %v3531 = vmul.f32 %v3448, %v3475
        %v3532 = vmul.f32 %v3449, %v3471
        %v3533 = vmul.f32 %v3450, %v3475
        %v3534 = vmul.f32 %v3451, %v3471
        %v3535 = vmul.f32 %v3452, %v3475
        %v3536 = vmul.f32 %v3453, %v3471
        %v3537 = vmul.f32 %v3454, %v3475
        %v3538 = vmul.f32 %v3455, %v3471
        %v3539 = vmul.f32 %v3456, %v3475
        %v3540 = vadd.f32 %v3328, %v3476
        %v3541 = vadd.f32 %v3329, %v3477
        %v3542 = vadd.f32 %v3330, %v3478
        %v3543 = vadd.f32 %v3331, %v3479
        %v3544 = vadd.f32 %v3332, %v3480
        %v3545 = vadd.f32 %v3333, %v3481
        %v3546 = vadd.f32 %v3334, %v3482
        %v3547 = vadd.f32 %v3335, %v3483
        %v3548 = vadd.f32 %v3336, %v3484
        %v3549 = vadd.f32 %v3337, %v3485
        %v3550 = vadd.f32 %v3338, %v3486
        %v3551 = vadd.f32 %v3339, %v3487
        %v3552 = vadd.f32 %v3340, %v3488
        %v3553 = vadd.f32 %v3341, %v3489
        %v3554 = vadd.f32 %v3342, %v3490
        %v3555 = vadd.f32 %v3343, %v3491
        %v3556 = vadd.f32 %v3344, %v3492
        %v3557 = vadd.f32 %v3345, %v3493
        %v3558 = vadd.f32 %v3346, %v3494
        %v3559 = vadd.f32 %v3347, %v3495
        %v3560 = vadd.f32 %v3348, %v3496
        %v3561 = vadd.f32 %v3349, %v3497
        %v3562 = vadd.f32 %v3350, %v3498
        %v3563 = vadd.f32 %v3351, %v3499
        %v3564 = vadd.f32 %v3352, %v3500
        %v3565 = vadd.f32 %v3353, %v3501
        %v3566 = vadd.f32 %v3354, %v3502
        %v3567 = vadd.f32 %v3355, %v3503
        %v3568 = vadd.f32 %v3356, %v3504
        %v3569 = vadd.f32 %v3357, %v3505
        %v3570 = vadd.f32 %v3358, %v3506
        %v3571 = vadd.f32 %v3359, %v3507
        %v3572 = vadd.f32 %v3360, %v3508
        %v3573 = vadd.f32 %v3361, %v3509
        %v3574 = vadd.f32 %v3362, %v3510
        %v3575 = vadd.f32 %v3363, %v3511
        %v3576 = vadd.f32 %v3364, %v3512
        %v3577 = vadd.f32 %v3365, %v3513
        %v3578 = vadd.f32 %v3366, %v3514
        %v3579 = vadd.f32 %v3367, %v3515
        %v3580 = vadd.f32 %v3368, %v3516
        %v3581 = vadd.f32 %v3369, %v3517
        %v3582 = vadd.f32 %v3370, %v3518
        %v3583 = vadd.f32 %v3371, %v3519
        %v3584 = vadd.f32 %v3372, %v3520
        %v3585 = vadd.f32 %v3373, %v3521
        %v3586 = vadd.f32 %v3374, %v3522
        %v3587 = vadd.f32 %v3375, %v3523
        %v3588 = vadd.f32 %v3376, %v3524
        %v3589 = vadd.f32 %v3377, %v3525
        %v3590 = vadd.f32 %v3378, %v3526
        %v3591 = vadd.f32 %v3379, %v3527
        %v3592 = vadd.f32 %v3380, %v3528
        %v3593 = vadd.f32 %v3381, %v3529
        %v3594 = vadd.f32 %v3382, %v3530
        %v3595 = vadd.f32 %v3383, %v3531
        %v3596 = vadd.f32 %v3384, %v3532
        %v3597 = vadd.f32 %v3385, %v3533
        %v3598 = vadd.f32 %v3386, %v3534
        %v3599 = vadd.f32 %v3387, %v3535
        %v3600 = vadd.f32 %v3388, %v3536
        %v3601 = vadd.f32 %v3389, %v3537
        %v3602 = vadd.f32 %v3390, %v3538
        %v3603 = vadd.f32 %v3391, %v3539
        %v3604 = vld [vmem:[%s3392] sm:$0xfe]
        %v3605 = vld [vmem:[%s3392 + $0x8] sm:$0xfe]
        %v3606 = vld [vmem:[%s3392 + $0x20] sm:$0x1]
        %v3607 = vld [vmem:[%s3392 + $0x28] sm:$0x1]
        %v3608 = vld [vmem:[%s3392 + $0x30] sm:$0xfe]
        %v3609 = vld [vmem:[%s3392 + $0x38] sm:$0xfe]
        %v3610 = vld [vmem:[%s3392 + $0x50] sm:$0x1]
        %v3611 = vld [vmem:[%s3392 + $0x58] sm:$0x1]
        %v3612 = vld [vmem:[%s3392 + $0x60] sm:$0xfe]
        %v3613 = vld [vmem:[%s3392 + $0x68] sm:$0xfe]
        %v3614 = vld [vmem:[%s3392 + $0x80] sm:$0x1]
        %v3615 = vld [vmem:[%s3392 + $0x88] sm:$0x1]
        %v3616 = vld [vmem:[%s3392 + $0x90] sm:$0xfe]
        %v3617 = vld [vmem:[%s3392 + $0x98] sm:$0xfe]
        %v3618 = vld [vmem:[%s3392 + $0xb0] sm:$0x1]
        %v3619 = vld [vmem:[%s3392 + $0xb8] sm:$0x1]
        %v3620 = vld [vmem:[%s3392 + $0xc0] sm:$0xfe]
        %v3621 = vld [vmem:[%s3392 + $0xc8] sm:$0xfe]
        %v3622 = vld [vmem:[%s3392 + $0xe0] sm:$0x1]
        %v3623 = vld [vmem:[%s3392 + $0xe8] sm:$0x1]
        %v3624 = vld [vmem:[%s3392 + $0xf0] sm:$0xfe]
        %v3625 = vld [vmem:[%s3392 + $0xf8] sm:$0xfe]
        %v3626 = vld [vmem:[%s3392 + $0x110] sm:$0x1]
        %v3627 = vld [vmem:[%s3392 + $0x118] sm:$0x1]
        %v3628 = vld [vmem:[%s3392 + $0x120] sm:$0xfe]
        %v3629 = vld [vmem:[%s3392 + $0x128] sm:$0xfe]
        %v3630 = vld [vmem:[%s3392 + $0x140] sm:$0x1]
        %v3631 = vld [vmem:[%s3392 + $0x148] sm:$0x1]
        %v3632 = vld [vmem:[%s3392 + $0x150] sm:$0xfe]
        %v3633 = vld [vmem:[%s3392 + $0x158] sm:$0xfe]
        %v3634 = vld [vmem:[%s3392 + $0x170] sm:$0x1]
        %v3635 = vld [vmem:[%s3392 + $0x178] sm:$0x1]
        %v3636 = vld [vmem:[%s3392 + $0x180] sm:$0xfe]
        %v3637 = vld [vmem:[%s3392 + $0x188] sm:$0xfe]
        %v3638 = vld [vmem:[%s3392 + $0x1a0] sm:$0x1]
        %v3639 = vld [vmem:[%s3392 + $0x1a8] sm:$0x1]
        %v3640 = vld [vmem:[%s3392 + $0x1b0] sm:$0xfe]
        %v3641 = vld [vmem:[%s3392 + $0x1b8] sm:$0xfe]
        %v3642 = vld [vmem:[%s3392 + $0x1d0] sm:$0x1]
        %v3643 = vld [vmem:[%s3392 + $0x1d8] sm:$0x1]
        %v3644 = vld [vmem:[%s3392 + $0x1e0] sm:$0xfe]
        %v3645 = vld [vmem:[%s3392 + $0x1e8] sm:$0xfe]
        %v3646 = vld [vmem:[%s3392 + $0x200] sm:$0x1]
        %v3647 = vld [vmem:[%s3392 + $0x208] sm:$0x1]
        %v3648 = vld [vmem:[%s3392 + $0x210] sm:$0xfe]
        %v3649 = vld [vmem:[%s3392 + $0x218] sm:$0xfe]
        %v3650 = vld [vmem:[%s3392 + $0x230] sm:$0x1]
        %v3651 = vld [vmem:[%s3392 + $0x238] sm:$0x1]
        %v3652 = vld [vmem:[%s3392 + $0x240] sm:$0xfe]
        %v3653 = vld [vmem:[%s3392 + $0x248] sm:$0xfe]
        %v3654 = vld [vmem:[%s3392 + $0x260] sm:$0x1]
        %v3655 = vld [vmem:[%s3392 + $0x268] sm:$0x1]
        %v3656 = vld [vmem:[%s3392 + $0x270] sm:$0xfe]
        %v3657 = vld [vmem:[%s3392 + $0x278] sm:$0xfe]
        %v3658 = vld [vmem:[%s3392 + $0x290] sm:$0x1]
        %v3659 = vld [vmem:[%s3392 + $0x298] sm:$0x1]
        %v3660 = vld [vmem:[%s3392 + $0x2a0] sm:$0xfe]
        %v3661 = vld [vmem:[%s3392 + $0x2a8] sm:$0xfe]
        %v3662 = vld [vmem:[%s3392 + $0x2c0] sm:$0x1]
        %v3663 = vld [vmem:[%s3392 + $0x2c8] sm:$0x1]
        %v3664 = vld [vmem:[%s3392 + $0x2d0] sm:$0xfe]
        %v3665 = vld [vmem:[%s3392 + $0x2d8] sm:$0xfe]
        %v3666 = vld [vmem:[%s3392 + $0x2f0] sm:$0x1]
        %v3667 = vld [vmem:[%s3392 + $0x2f8] sm:$0x1]
        %v3668 = vlaneseq
        %v3669 = vshrl.u32 %v3668, 7
        %v3670 = vsub.s32 1, %v3669
        %v3671 = vrot.slane %v782, %v3670
        %v3672 = vlaneseq
        %v3673 = vshrl.u32 %v3672, 7
        %v3674 = vsub.s32 5, %v3673
        %v3675 = vrot.slane %v782, %v3674
        %v3678 = vlaneseq
        %v3679 = vshrl.u32 %v3678, 7
        %v3680 = vsub.s32 1, %v3679
        %v3681 = vrot.slane %v3671, %v3680
        %v3682 = vlaneseq
        %v3683 = vshrl.u32 %v3682, 7
        %v3684 = vsub.s32 1, %v3683
        %v3685 = vrot.slane %v3675, %v3684
        %v3686 = vmul.f32 %v3604, %v3681
        %v3687 = vmul.f32 %v3605, %v3685
        %v3688 = vmul.f32 %v3395, %v3681
        %v3689 = vmul.f32 %v3396, %v3685
        %v3690 = vmul.f32 %v3606, %v3681
        %v3691 = vmul.f32 %v3607, %v3685
        %v3692 = vmul.f32 %v3608, %v3681
        %v3693 = vmul.f32 %v3609, %v3685
        %v3694 = vmul.f32 %v3399, %v3681
        %v3695 = vmul.f32 %v3400, %v3685
        %v3696 = vmul.f32 %v3610, %v3681
        %v3697 = vmul.f32 %v3611, %v3685
        %v3698 = vmul.f32 %v3612, %v3681
        %v3699 = vmul.f32 %v3613, %v3685
        %v3700 = vmul.f32 %v3403, %v3681
        %v3701 = vmul.f32 %v3404, %v3685
        %v3702 = vmul.f32 %v3614, %v3681
        %v3703 = vmul.f32 %v3615, %v3685
        %v3704 = vmul.f32 %v3616, %v3681
        %v3705 = vmul.f32 %v3617, %v3685
        %v3706 = vmul.f32 %v3407, %v3681
        %v3707 = vmul.f32 %v3408, %v3685
        %v3708 = vmul.f32 %v3618, %v3681
        %v3709 = vmul.f32 %v3619, %v3685
        %v3710 = vmul.f32 %v3620, %v3681
        %v3711 = vmul.f32 %v3621, %v3685
        %v3712 = vmul.f32 %v3411, %v3681
        %v3713 = vmul.f32 %v3412, %v3685
        %v3714 = vmul.f32 %v3622, %v3681
        %v3715 = vmul.f32 %v3623, %v3685
        %v3716 = vmul.f32 %v3624, %v3681
        %v3717 = vmul.f32 %v3625, %v3685
        %v3718 = vmul.f32 %v3415, %v3681
        %v3719 = vmul.f32 %v3416, %v3685
        %v3720 = vmul.f32 %v3626, %v3681
        %v3721 = vmul.f32 %v3627, %v3685
        %v3722 = vmul.f32 %v3628, %v3681
        %v3723 = vmul.f32 %v3629, %v3685
        %v3724 = vmul.f32 %v3419, %v3681
        %v3725 = vmul.f32 %v3420, %v3685
        %v3726 = vmul.f32 %v3630, %v3681
        %v3727 = vmul.f32 %v3631, %v3685
        %v3728 = vmul.f32 %v3632, %v3681
        %v3729 = vmul.f32 %v3633, %v3685
        %v3730 = vmul.f32 %v3423, %v3681
        %v3731 = vmul.f32 %v3424, %v3685
        %v3732 = vmul.f32 %v3634, %v3681
        %v3733 = vmul.f32 %v3635, %v3685
        %v3734 = vmul.f32 %v3636, %v3681
        %v3735 = vmul.f32 %v3637, %v3685
        %v3736 = vmul.f32 %v3427, %v3681
        %v3737 = vmul.f32 %v3428, %v3685
        %v3738 = vmul.f32 %v3638, %v3681
        %v3739 = vmul.f32 %v3639, %v3685
        %v3740 = vmul.f32 %v3640, %v3681
        %v3741 = vmul.f32 %v3641, %v3685
        %v3742 = vmul.f32 %v3431, %v3681
        %v3743 = vmul.f32 %v3432, %v3685
        %v3744 = vmul.f32 %v3642, %v3681
        %v3745 = vmul.f32 %v3643, %v3685
        %v3746 = vmul.f32 %v3644, %v3681
        %v3747 = vmul.f32 %v3645, %v3685
        %v3748 = vmul.f32 %v3435, %v3681
        %v3749 = vmul.f32 %v3436, %v3685
        %v3750 = vmul.f32 %v3646, %v3681
        %v3751 = vmul.f32 %v3647, %v3685
        %v3752 = vmul.f32 %v3648, %v3681
        %v3753 = vmul.f32 %v3649, %v3685
        %v3754 = vmul.f32 %v3439, %v3681
        %v3755 = vmul.f32 %v3440, %v3685
        %v3756 = vmul.f32 %v3650, %v3681
        %v3757 = vmul.f32 %v3651, %v3685
        %v3758 = vmul.f32 %v3652, %v3681
        %v3759 = vmul.f32 %v3653, %v3685
        %v3760 = vmul.f32 %v3443, %v3681
        %v3761 = vmul.f32 %v3444, %v3685
        %v3762 = vmul.f32 %v3654, %v3681
        %v3763 = vmul.f32 %v3655, %v3685
        %v3764 = vmul.f32 %v3656, %v3681
        %v3765 = vmul.f32 %v3657, %v3685
        %v3766 = vmul.f32 %v3447, %v3681
        %v3767 = vmul.f32 %v3448, %v3685
        %v3768 = vmul.f32 %v3658, %v3681
        %v3769 = vmul.f32 %v3659, %v3685
        %v3770 = vmul.f32 %v3660, %v3681
        %v3771 = vmul.f32 %v3661, %v3685
        %v3772 = vmul.f32 %v3451, %v3681
        %v3773 = vmul.f32 %v3452, %v3685
        %v3774 = vmul.f32 %v3662, %v3681
        %v3775 = vmul.f32 %v3663, %v3685
        %v3776 = vmul.f32 %v3664, %v3681
        %v3777 = vmul.f32 %v3665, %v3685
        %v3778 = vmul.f32 %v3455, %v3681
        %v3779 = vmul.f32 %v3456, %v3685
        %v3780 = vmul.f32 %v3666, %v3681
        %v3781 = vmul.f32 %v3667, %v3685
        %v3878 = vrot.slane %v3686, 1
        %v3879 = vrot.slane %v3688, 1
        %v3880 = vsel %vm1205, %v3878, %v3879
        %v3881 = vrot.slane %v3687, 1
        %v3882 = vrot.slane %v3689, 1
        %v3883 = vsel %vm1205, %v3881, %v3882
        %v3884 = vrot.slane %v3690, 1
        %v3885 = vsel %vm1205, %v3879, %v3884
        %v3886 = vrot.slane %v3691, 1
        %v3887 = vsel %vm1205, %v3882, %v3886
        %v3888 = vrot.slane %v3692, 1
        %v3889 = vrot.slane %v3694, 1
        %v3890 = vsel %vm1205, %v3888, %v3889
        %v3891 = vrot.slane %v3693, 1
        %v3892 = vrot.slane %v3695, 1
        %v3893 = vsel %vm1205, %v3891, %v3892
        %v3894 = vrot.slane %v3696, 1
        %v3895 = vsel %vm1205, %v3889, %v3894
        %v3896 = vrot.slane %v3697, 1
        %v3897 = vsel %vm1205, %v3892, %v3896
        %v3898 = vrot.slane %v3698, 1
        %v3899 = vrot.slane %v3700, 1
        %v3900 = vsel %vm1205, %v3898, %v3899
        %v3901 = vrot.slane %v3699, 1
        %v3902 = vrot.slane %v3701, 1
        %v3903 = vsel %vm1205, %v3901, %v3902
        %v3904 = vrot.slane %v3702, 1
        %v3905 = vsel %vm1205, %v3899, %v3904
        %v3906 = vrot.slane %v3703, 1
        %v3907 = vsel %vm1205, %v3902, %v3906
        %v3908 = vrot.slane %v3704, 1
        %v3909 = vrot.slane %v3706, 1
        %v3910 = vsel %vm1205, %v3908, %v3909
        %v3911 = vrot.slane %v3705, 1
        %v3912 = vrot.slane %v3707, 1
        %v3913 = vsel %vm1205, %v3911, %v3912
        %v3914 = vrot.slane %v3708, 1
        %v3915 = vsel %vm1205, %v3909, %v3914
        %v3916 = vrot.slane %v3709, 1
        %v3917 = vsel %vm1205, %v3912, %v3916
        %v3918 = vrot.slane %v3710, 1
        %v3919 = vrot.slane %v3712, 1
        %v3920 = vsel %vm1205, %v3918, %v3919
        %v3921 = vrot.slane %v3711, 1
        %v3922 = vrot.slane %v3713, 1
        %v3923 = vsel %vm1205, %v3921, %v3922
        %v3924 = vrot.slane %v3714, 1
        %v3925 = vsel %vm1205, %v3919, %v3924
        %v3926 = vrot.slane %v3715, 1
        %v3927 = vsel %vm1205, %v3922, %v3926
        %v3928 = vrot.slane %v3716, 1
        %v3929 = vrot.slane %v3718, 1
        %v3930 = vsel %vm1205, %v3928, %v3929
        %v3931 = vrot.slane %v3717, 1
        %v3932 = vrot.slane %v3719, 1
        %v3933 = vsel %vm1205, %v3931, %v3932
        %v3934 = vrot.slane %v3720, 1
        %v3935 = vsel %vm1205, %v3929, %v3934
        %v3936 = vrot.slane %v3721, 1
        %v3937 = vsel %vm1205, %v3932, %v3936
        %v3938 = vrot.slane %v3722, 1
        %v3939 = vrot.slane %v3724, 1
        %v3940 = vsel %vm1205, %v3938, %v3939
        %v3941 = vrot.slane %v3723, 1
        %v3942 = vrot.slane %v3725, 1
        %v3943 = vsel %vm1205, %v3941, %v3942
        %v3944 = vrot.slane %v3726, 1
        %v3945 = vsel %vm1205, %v3939, %v3944
        %v3946 = vrot.slane %v3727, 1
        %v3947 = vsel %vm1205, %v3942, %v3946
        %v3948 = vrot.slane %v3728, 1
        %v3949 = vrot.slane %v3730, 1
        %v3950 = vsel %vm1205, %v3948, %v3949
        %v3951 = vrot.slane %v3729, 1
        %v3952 = vrot.slane %v3731, 1
        %v3953 = vsel %vm1205, %v3951, %v3952
        %v3954 = vrot.slane %v3732, 1
        %v3955 = vsel %vm1205, %v3949, %v3954
        %v3956 = vrot.slane %v3733, 1
        %v3957 = vsel %vm1205, %v3952, %v3956
        %v3958 = vrot.slane %v3734, 1
        %v3959 = vrot.slane %v3736, 1
        %v3960 = vsel %vm1205, %v3958, %v3959
        %v3961 = vrot.slane %v3735, 1
        %v3962 = vrot.slane %v3737, 1
        %v3963 = vsel %vm1205, %v3961, %v3962
        %v3964 = vrot.slane %v3738, 1
        %v3965 = vsel %vm1205, %v3959, %v3964
        %v3966 = vrot.slane %v3739, 1
        %v3967 = vsel %vm1205, %v3962, %v3966
        %v3968 = vrot.slane %v3740, 1
        %v3969 = vrot.slane %v3742, 1
        %v3970 = vsel %vm1205, %v3968, %v3969
        %v3971 = vrot.slane %v3741, 1
        %v3972 = vrot.slane %v3743, 1
        %v3973 = vsel %vm1205, %v3971, %v3972
        %v3974 = vrot.slane %v3744, 1
        %v3975 = vsel %vm1205, %v3969, %v3974
        %v3976 = vrot.slane %v3745, 1
        %v3977 = vsel %vm1205, %v3972, %v3976
        %v3978 = vrot.slane %v3746, 1
        %v3979 = vrot.slane %v3748, 1
        %v3980 = vsel %vm1205, %v3978, %v3979
        %v3981 = vrot.slane %v3747, 1
        %v3982 = vrot.slane %v3749, 1
        %v3983 = vsel %vm1205, %v3981, %v3982
        %v3984 = vrot.slane %v3750, 1
        %v3985 = vsel %vm1205, %v3979, %v3984
        %v3986 = vrot.slane %v3751, 1
        %v3987 = vsel %vm1205, %v3982, %v3986
        %v3988 = vrot.slane %v3752, 1
        %v3989 = vrot.slane %v3754, 1
        %v3990 = vsel %vm1205, %v3988, %v3989
        %v3991 = vrot.slane %v3753, 1
        %v3992 = vrot.slane %v3755, 1
        %v3993 = vsel %vm1205, %v3991, %v3992
        %v3994 = vrot.slane %v3756, 1
        %v3995 = vsel %vm1205, %v3989, %v3994
        %v3996 = vrot.slane %v3757, 1
        %v3997 = vsel %vm1205, %v3992, %v3996
        %v3998 = vrot.slane %v3758, 1
        %v3999 = vrot.slane %v3760, 1
        %v4000 = vsel %vm1205, %v3998, %v3999
        %v4001 = vrot.slane %v3759, 1
        %v4002 = vrot.slane %v3761, 1
        %v4003 = vsel %vm1205, %v4001, %v4002
        %v4004 = vrot.slane %v3762, 1
        %v4005 = vsel %vm1205, %v3999, %v4004
        %v4006 = vrot.slane %v3763, 1
        %v4007 = vsel %vm1205, %v4002, %v4006
        %v4008 = vrot.slane %v3764, 1
        %v4009 = vrot.slane %v3766, 1
        %v4010 = vsel %vm1205, %v4008, %v4009
        %v4011 = vrot.slane %v3765, 1
        %v4012 = vrot.slane %v3767, 1
        %v4013 = vsel %vm1205, %v4011, %v4012
        %v4014 = vrot.slane %v3768, 1
        %v4015 = vsel %vm1205, %v4009, %v4014
        %v4016 = vrot.slane %v3769, 1
        %v4017 = vsel %vm1205, %v4012, %v4016
        %v4018 = vrot.slane %v3770, 1
        %v4019 = vrot.slane %v3772, 1
        %v4020 = vsel %vm1205, %v4018, %v4019
        %v4021 = vrot.slane %v3771, 1
        %v4022 = vrot.slane %v3773, 1
        %v4023 = vsel %vm1205, %v4021, %v4022
        %v4024 = vrot.slane %v3774, 1
        %v4025 = vsel %vm1205, %v4019, %v4024
        %v4026 = vrot.slane %v3775, 1
        %v4027 = vsel %vm1205, %v4022, %v4026
        %v4028 = vrot.slane %v3776, 1
        %v4029 = vrot.slane %v3778, 1
        %v4030 = vsel %vm1205, %v4028, %v4029
        %v4031 = vrot.slane %v3777, 1
        %v4032 = vrot.slane %v3779, 1
        %v4033 = vsel %vm1205, %v4031, %v4032
        %v4034 = vrot.slane %v3780, 1
        %v4035 = vsel %vm1205, %v4029, %v4034
        %v4036 = vrot.slane %v3781, 1
        %v4037 = vsel %vm1205, %v4032, %v4036
        %v4102 = vadd.f32 %v3540, %v3880
        %v4103 = vadd.f32 %v3541, %v3883
        %v4104 = vadd.f32 %v3542, %v3885
        %v4105 = vadd.f32 %v3543, %v3887
        %v4106 = vadd.f32 %v3544, %v3890
        %v4107 = vadd.f32 %v3545, %v3893
        %v4108 = vadd.f32 %v3546, %v3895
        %v4109 = vadd.f32 %v3547, %v3897
        %v4110 = vadd.f32 %v3548, %v3900
        %v4111 = vadd.f32 %v3549, %v3903
        %v4112 = vadd.f32 %v3550, %v3905
        %v4113 = vadd.f32 %v3551, %v3907
        %v4114 = vadd.f32 %v3552, %v3910
        %v4115 = vadd.f32 %v3553, %v3913
        %v4116 = vadd.f32 %v3554, %v3915
        %v4117 = vadd.f32 %v3555, %v3917
        %v4118 = vadd.f32 %v3556, %v3920
        %v4119 = vadd.f32 %v3557, %v3923
        %v4120 = vadd.f32 %v3558, %v3925
        %v4121 = vadd.f32 %v3559, %v3927
        %v4122 = vadd.f32 %v3560, %v3930
        %v4123 = vadd.f32 %v3561, %v3933
        %v4124 = vadd.f32 %v3562, %v3935
        %v4125 = vadd.f32 %v3563, %v3937
        %v4126 = vadd.f32 %v3564, %v3940
        %v4127 = vadd.f32 %v3565, %v3943
        %v4128 = vadd.f32 %v3566, %v3945
        %v4129 = vadd.f32 %v3567, %v3947
        %v4130 = vadd.f32 %v3568, %v3950
        %v4131 = vadd.f32 %v3569, %v3953
        %v4132 = vadd.f32 %v3570, %v3955
        %v4133 = vadd.f32 %v3571, %v3957
        %v4134 = vadd.f32 %v3572, %v3960
        %v4135 = vadd.f32 %v3573, %v3963
        %v4136 = vadd.f32 %v3574, %v3965
        %v4137 = vadd.f32 %v3575, %v3967
        %v4138 = vadd.f32 %v3576, %v3970
        %v4139 = vadd.f32 %v3577, %v3973
        %v4140 = vadd.f32 %v3578, %v3975
        %v4141 = vadd.f32 %v3579, %v3977
        %v4142 = vadd.f32 %v3580, %v3980
        %v4143 = vadd.f32 %v3581, %v3983
        %v4144 = vadd.f32 %v3582, %v3985
        %v4145 = vadd.f32 %v3583, %v3987
        %v4146 = vadd.f32 %v3584, %v3990
        %v4147 = vadd.f32 %v3585, %v3993
        %v4148 = vadd.f32 %v3586, %v3995
        %v4149 = vadd.f32 %v3587, %v3997
        %v4150 = vadd.f32 %v3588, %v4000
        %v4151 = vadd.f32 %v3589, %v4003
        %v4152 = vadd.f32 %v3590, %v4005
        %v4153 = vadd.f32 %v3591, %v4007
        %v4154 = vadd.f32 %v3592, %v4010
        %v4155 = vadd.f32 %v3593, %v4013
        %v4156 = vadd.f32 %v3594, %v4015
        %v4157 = vadd.f32 %v3595, %v4017
        %v4158 = vadd.f32 %v3596, %v4020
        %v4159 = vadd.f32 %v3597, %v4023
        %v4160 = vadd.f32 %v3598, %v4025
        %v4161 = vadd.f32 %v3599, %v4027
        %v4162 = vadd.f32 %v3600, %v4030
        %v4163 = vadd.f32 %v3601, %v4033
        %v4164 = vadd.f32 %v3602, %v4035
        %v4165 = vadd.f32 %v3603, %v4037
        %v4166 = vld [vmem:[%s3392] sm:$0xfc]
        %v4167 = vld [vmem:[%s3392 + $0x8] sm:$0xfc]
        %v4168 = vld [vmem:[%s3392 + $0x20] sm:$0x3]
        %v4169 = vld [vmem:[%s3392 + $0x28] sm:$0x3]
        %v4170 = vld [vmem:[%s3392 + $0x30] sm:$0xfc]
        %v4171 = vld [vmem:[%s3392 + $0x38] sm:$0xfc]
        %v4172 = vld [vmem:[%s3392 + $0x50] sm:$0x3]
        %v4173 = vld [vmem:[%s3392 + $0x58] sm:$0x3]
        %v4174 = vld [vmem:[%s3392 + $0x60] sm:$0xfc]
        %v4175 = vld [vmem:[%s3392 + $0x68] sm:$0xfc]
        %v4176 = vld [vmem:[%s3392 + $0x80] sm:$0x3]
        %v4177 = vld [vmem:[%s3392 + $0x88] sm:$0x3]
        %v4178 = vld [vmem:[%s3392 + $0x90] sm:$0xfc]
        %v4179 = vld [vmem:[%s3392 + $0x98] sm:$0xfc]
        %v4180 = vld [vmem:[%s3392 + $0xb0] sm:$0x3]
        %v4181 = vld [vmem:[%s3392 + $0xb8] sm:$0x3]
        %v4182 = vld [vmem:[%s3392 + $0xc0] sm:$0xfc]
        %v4183 = vld [vmem:[%s3392 + $0xc8] sm:$0xfc]
        %v4184 = vld [vmem:[%s3392 + $0xe0] sm:$0x3]
        %v4185 = vld [vmem:[%s3392 + $0xe8] sm:$0x3]
        %v4186 = vld [vmem:[%s3392 + $0xf0] sm:$0xfc]
        %v4187 = vld [vmem:[%s3392 + $0xf8] sm:$0xfc]
        %v4188 = vld [vmem:[%s3392 + $0x110] sm:$0x3]
        %v4189 = vld [vmem:[%s3392 + $0x118] sm:$0x3]
        %v4190 = vld [vmem:[%s3392 + $0x120] sm:$0xfc]
        %v4191 = vld [vmem:[%s3392 + $0x128] sm:$0xfc]
        %v4192 = vld [vmem:[%s3392 + $0x140] sm:$0x3]
        %v4193 = vld [vmem:[%s3392 + $0x148] sm:$0x3]
        %v4194 = vld [vmem:[%s3392 + $0x150] sm:$0xfc]
        %v4195 = vld [vmem:[%s3392 + $0x158] sm:$0xfc]
        %v4196 = vld [vmem:[%s3392 + $0x170] sm:$0x3]
        %v4197 = vld [vmem:[%s3392 + $0x178] sm:$0x3]
        %v4198 = vld [vmem:[%s3392 + $0x180] sm:$0xfc]
        %v4199 = vld [vmem:[%s3392 + $0x188] sm:$0xfc]
        %v4200 = vld [vmem:[%s3392 + $0x1a0] sm:$0x3]
        %v4201 = vld [vmem:[%s3392 + $0x1a8] sm:$0x3]
        %v4202 = vld [vmem:[%s3392 + $0x1b0] sm:$0xfc]
        %v4203 = vld [vmem:[%s3392 + $0x1b8] sm:$0xfc]
        %v4204 = vld [vmem:[%s3392 + $0x1d0] sm:$0x3]
        %v4205 = vld [vmem:[%s3392 + $0x1d8] sm:$0x3]
        %v4206 = vld [vmem:[%s3392 + $0x1e0] sm:$0xfc]
        %v4207 = vld [vmem:[%s3392 + $0x1e8] sm:$0xfc]
        %v4208 = vld [vmem:[%s3392 + $0x200] sm:$0x3]
        %v4209 = vld [vmem:[%s3392 + $0x208] sm:$0x3]
        %v4210 = vld [vmem:[%s3392 + $0x210] sm:$0xfc]
        %v4211 = vld [vmem:[%s3392 + $0x218] sm:$0xfc]
        %v4212 = vld [vmem:[%s3392 + $0x230] sm:$0x3]
        %v4213 = vld [vmem:[%s3392 + $0x238] sm:$0x3]
        %v4214 = vld [vmem:[%s3392 + $0x240] sm:$0xfc]
        %v4215 = vld [vmem:[%s3392 + $0x248] sm:$0xfc]
        %v4216 = vld [vmem:[%s3392 + $0x260] sm:$0x3]
        %v4217 = vld [vmem:[%s3392 + $0x268] sm:$0x3]
        %v4218 = vld [vmem:[%s3392 + $0x270] sm:$0xfc]
        %v4219 = vld [vmem:[%s3392 + $0x278] sm:$0xfc]
        %v4220 = vld [vmem:[%s3392 + $0x290] sm:$0x3]
        %v4221 = vld [vmem:[%s3392 + $0x298] sm:$0x3]
        %v4222 = vld [vmem:[%s3392 + $0x2a0] sm:$0xfc]
        %v4223 = vld [vmem:[%s3392 + $0x2a8] sm:$0xfc]
        %v4224 = vld [vmem:[%s3392 + $0x2c0] sm:$0x3]
        %v4225 = vld [vmem:[%s3392 + $0x2c8] sm:$0x3]
        %v4226 = vld [vmem:[%s3392 + $0x2d0] sm:$0xfc]
        %v4227 = vld [vmem:[%s3392 + $0x2d8] sm:$0xfc]
        %v4228 = vld [vmem:[%s3392 + $0x2f0] sm:$0x3]
        %v4229 = vld [vmem:[%s3392 + $0x2f8] sm:$0x3]
        %v4230 = vlaneseq
        %v4231 = vshrl.u32 %v4230, 7
        %v4232 = vsub.s32 2, %v4231
        %v4233 = vrot.slane %v782, %v4232
        %v4234 = vlaneseq
        %v4235 = vshrl.u32 %v4234, 7
        %v4236 = vsub.s32 6, %v4235
        %v4237 = vrot.slane %v782, %v4236
        %v4240 = vlaneseq
        %v4241 = vshrl.u32 %v4240, 7
        %v4242 = vsub.s32 2, %v4241
        %v4243 = vrot.slane %v4233, %v4242
        %v4244 = vlaneseq
        %v4245 = vshrl.u32 %v4244, 7
        %v4246 = vsub.s32 2, %v4245
        %v4247 = vrot.slane %v4237, %v4246
        %v4248 = vmul.f32 %v4166, %v4243
        %v4249 = vmul.f32 %v4167, %v4247
        %v4250 = vmul.f32 %v3395, %v4243
        %v4251 = vmul.f32 %v3396, %v4247
        %v4252 = vmul.f32 %v4168, %v4243
        %v4253 = vmul.f32 %v4169, %v4247
        %v4254 = vmul.f32 %v4170, %v4243
        %v4255 = vmul.f32 %v4171, %v4247
        %v4256 = vmul.f32 %v3399, %v4243
        %v4257 = vmul.f32 %v3400, %v4247
        %v4258 = vmul.f32 %v4172, %v4243
        %v4259 = vmul.f32 %v4173, %v4247
        %v4260 = vmul.f32 %v4174, %v4243
        %v4261 = vmul.f32 %v4175, %v4247
        %v4262 = vmul.f32 %v3403, %v4243
        %v4263 = vmul.f32 %v3404, %v4247
        %v4264 = vmul.f32 %v4176, %v4243
        %v4265 = vmul.f32 %v4177, %v4247
        %v4266 = vmul.f32 %v4178, %v4243
        %v4267 = vmul.f32 %v4179, %v4247
        %v4268 = vmul.f32 %v3407, %v4243
        %v4269 = vmul.f32 %v3408, %v4247
        %v4270 = vmul.f32 %v4180, %v4243
        %v4271 = vmul.f32 %v4181, %v4247
        %v4272 = vmul.f32 %v4182, %v4243
        %v4273 = vmul.f32 %v4183, %v4247
        %v4274 = vmul.f32 %v3411, %v4243
        %v4275 = vmul.f32 %v3412, %v4247
        %v4276 = vmul.f32 %v4184, %v4243
        %v4277 = vmul.f32 %v4185, %v4247
        %v4278 = vmul.f32 %v4186, %v4243
        %v4279 = vmul.f32 %v4187, %v4247
        %v4280 = vmul.f32 %v3415, %v4243
        %v4281 = vmul.f32 %v3416, %v4247
        %v4282 = vmul.f32 %v4188, %v4243
        %v4283 = vmul.f32 %v4189, %v4247
        %v4284 = vmul.f32 %v4190, %v4243
        %v4285 = vmul.f32 %v4191, %v4247
        %v4286 = vmul.f32 %v3419, %v4243
        %v4287 = vmul.f32 %v3420, %v4247
        %v4288 = vmul.f32 %v4192, %v4243
        %v4289 = vmul.f32 %v4193, %v4247
        %v4290 = vmul.f32 %v4194, %v4243
        %v4291 = vmul.f32 %v4195, %v4247
        %v4292 = vmul.f32 %v3423, %v4243
        %v4293 = vmul.f32 %v3424, %v4247
        %v4294 = vmul.f32 %v4196, %v4243
        %v4295 = vmul.f32 %v4197, %v4247
        %v4296 = vmul.f32 %v4198, %v4243
        %v4297 = vmul.f32 %v4199, %v4247
        %v4298 = vmul.f32 %v3427, %v4243
        %v4299 = vmul.f32 %v3428, %v4247
        %v4300 = vmul.f32 %v4200, %v4243
        %v4301 = vmul.f32 %v4201, %v4247
        %v4302 = vmul.f32 %v4202, %v4243
        %v4303 = vmul.f32 %v4203, %v4247
        %v4304 = vmul.f32 %v3431, %v4243
        %v4305 = vmul.f32 %v3432, %v4247
        %v4306 = vmul.f32 %v4204, %v4243
        %v4307 = vmul.f32 %v4205, %v4247
        %v4308 = vmul.f32 %v4206, %v4243
        %v4309 = vmul.f32 %v4207, %v4247
        %v4310 = vmul.f32 %v3435, %v4243
        %v4311 = vmul.f32 %v3436, %v4247
        %v4312 = vmul.f32 %v4208, %v4243
        %v4313 = vmul.f32 %v4209, %v4247
        %v4314 = vmul.f32 %v4210, %v4243
        %v4315 = vmul.f32 %v4211, %v4247
        %v4316 = vmul.f32 %v3439, %v4243
        %v4317 = vmul.f32 %v3440, %v4247
        %v4318 = vmul.f32 %v4212, %v4243
        %v4319 = vmul.f32 %v4213, %v4247
        %v4320 = vmul.f32 %v4214, %v4243
        %v4321 = vmul.f32 %v4215, %v4247
        %v4322 = vmul.f32 %v3443, %v4243
        %v4323 = vmul.f32 %v3444, %v4247
        %v4324 = vmul.f32 %v4216, %v4243
        %v4325 = vmul.f32 %v4217, %v4247
        %v4326 = vmul.f32 %v4218, %v4243
        %v4327 = vmul.f32 %v4219, %v4247
        %v4328 = vmul.f32 %v3447, %v4243
        %v4329 = vmul.f32 %v3448, %v4247
        %v4330 = vmul.f32 %v4220, %v4243
        %v4331 = vmul.f32 %v4221, %v4247
        %v4332 = vmul.f32 %v4222, %v4243
        %v4333 = vmul.f32 %v4223, %v4247
        %v4334 = vmul.f32 %v3451, %v4243
        %v4335 = vmul.f32 %v3452, %v4247
        %v4336 = vmul.f32 %v4224, %v4243
        %v4337 = vmul.f32 %v4225, %v4247
        %v4338 = vmul.f32 %v4226, %v4243
        %v4339 = vmul.f32 %v4227, %v4247
        %v4340 = vmul.f32 %v3455, %v4243
        %v4341 = vmul.f32 %v3456, %v4247
        %v4342 = vmul.f32 %v4228, %v4243
        %v4343 = vmul.f32 %v4229, %v4247
        %v4440 = vrot.slane %v4248, 2
        %v4441 = vrot.slane %v4250, 2
        %v4442 = vsel %vm1768, %v4440, %v4441
        %v4443 = vrot.slane %v4249, 2
        %v4444 = vrot.slane %v4251, 2
        %v4445 = vsel %vm1768, %v4443, %v4444
        %v4446 = vrot.slane %v4252, 2
        %v4447 = vsel %vm1768, %v4441, %v4446
        %v4448 = vrot.slane %v4253, 2
        %v4449 = vsel %vm1768, %v4444, %v4448
        %v4450 = vrot.slane %v4254, 2
        %v4451 = vrot.slane %v4256, 2
        %v4452 = vsel %vm1768, %v4450, %v4451
        %v4453 = vrot.slane %v4255, 2
        %v4454 = vrot.slane %v4257, 2
        %v4455 = vsel %vm1768, %v4453, %v4454
        %v4456 = vrot.slane %v4258, 2
        %v4457 = vsel %vm1768, %v4451, %v4456
        %v4458 = vrot.slane %v4259, 2
        %v4459 = vsel %vm1768, %v4454, %v4458
        %v4460 = vrot.slane %v4260, 2
        %v4461 = vrot.slane %v4262, 2
        %v4462 = vsel %vm1768, %v4460, %v4461
        %v4463 = vrot.slane %v4261, 2
        %v4464 = vrot.slane %v4263, 2
        %v4465 = vsel %vm1768, %v4463, %v4464
        %v4466 = vrot.slane %v4264, 2
        %v4467 = vsel %vm1768, %v4461, %v4466
        %v4468 = vrot.slane %v4265, 2
        %v4469 = vsel %vm1768, %v4464, %v4468
        %v4470 = vrot.slane %v4266, 2
        %v4471 = vrot.slane %v4268, 2
        %v4472 = vsel %vm1768, %v4470, %v4471
        %v4473 = vrot.slane %v4267, 2
        %v4474 = vrot.slane %v4269, 2
        %v4475 = vsel %vm1768, %v4473, %v4474
        %v4476 = vrot.slane %v4270, 2
        %v4477 = vsel %vm1768, %v4471, %v4476
        %v4478 = vrot.slane %v4271, 2
        %v4479 = vsel %vm1768, %v4474, %v4478
        %v4480 = vrot.slane %v4272, 2
        %v4481 = vrot.slane %v4274, 2
        %v4482 = vsel %vm1768, %v4480, %v4481
        %v4483 = vrot.slane %v4273, 2
        %v4484 = vrot.slane %v4275, 2
        %v4485 = vsel %vm1768, %v4483, %v4484
        %v4486 = vrot.slane %v4276, 2
        %v4487 = vsel %vm1768, %v4481, %v4486
        %v4488 = vrot.slane %v4277, 2
        %v4489 = vsel %vm1768, %v4484, %v4488
        %v4490 = vrot.slane %v4278, 2
        %v4491 = vrot.slane %v4280, 2
        %v4492 = vsel %vm1768, %v4490, %v4491
        %v4493 = vrot.slane %v4279, 2
        %v4494 = vrot.slane %v4281, 2
        %v4495 = vsel %vm1768, %v4493, %v4494
        %v4496 = vrot.slane %v4282, 2
        %v4497 = vsel %vm1768, %v4491, %v4496
        %v4498 = vrot.slane %v4283, 2
        %v4499 = vsel %vm1768, %v4494, %v4498
        %v4500 = vrot.slane %v4284, 2
        %v4501 = vrot.slane %v4286, 2
        %v4502 = vsel %vm1768, %v4500, %v4501
        %v4503 = vrot.slane %v4285, 2
        %v4504 = vrot.slane %v4287, 2
        %v4505 = vsel %vm1768, %v4503, %v4504
        %v4506 = vrot.slane %v4288, 2
        %v4507 = vsel %vm1768, %v4501, %v4506
        %v4508 = vrot.slane %v4289, 2
        %v4509 = vsel %vm1768, %v4504, %v4508
        %v4510 = vrot.slane %v4290, 2
        %v4511 = vrot.slane %v4292, 2
        %v4512 = vsel %vm1768, %v4510, %v4511
        %v4513 = vrot.slane %v4291, 2
        %v4514 = vrot.slane %v4293, 2
        %v4515 = vsel %vm1768, %v4513, %v4514
        %v4516 = vrot.slane %v4294, 2
        %v4517 = vsel %vm1768, %v4511, %v4516
        %v4518 = vrot.slane %v4295, 2
        %v4519 = vsel %vm1768, %v4514, %v4518
        %v4520 = vrot.slane %v4296, 2
        %v4521 = vrot.slane %v4298, 2
        %v4522 = vsel %vm1768, %v4520, %v4521
        %v4523 = vrot.slane %v4297, 2
        %v4524 = vrot.slane %v4299, 2
        %v4525 = vsel %vm1768, %v4523, %v4524
        %v4526 = vrot.slane %v4300, 2
        %v4527 = vsel %vm1768, %v4521, %v4526
        %v4528 = vrot.slane %v4301, 2
        %v4529 = vsel %vm1768, %v4524, %v4528
        %v4530 = vrot.slane %v4302, 2
        %v4531 = vrot.slane %v4304, 2
        %v4532 = vsel %vm1768, %v4530, %v4531
        %v4533 = vrot.slane %v4303, 2
        %v4534 = vrot.slane %v4305, 2
        %v4535 = vsel %vm1768, %v4533, %v4534
        %v4536 = vrot.slane %v4306, 2
        %v4537 = vsel %vm1768, %v4531, %v4536
        %v4538 = vrot.slane %v4307, 2
        %v4539 = vsel %vm1768, %v4534, %v4538
        %v4540 = vrot.slane %v4308, 2
        %v4541 = vrot.slane %v4310, 2
        %v4542 = vsel %vm1768, %v4540, %v4541
        %v4543 = vrot.slane %v4309, 2
        %v4544 = vrot.slane %v4311, 2
        %v4545 = vsel %vm1768, %v4543, %v4544
        %v4546 = vrot.slane %v4312, 2
        %v4547 = vsel %vm1768, %v4541, %v4546
        %v4548 = vrot.slane %v4313, 2
        %v4549 = vsel %vm1768, %v4544, %v4548
        %v4550 = vrot.slane %v4314, 2
        %v4551 = vrot.slane %v4316, 2
        %v4552 = vsel %vm1768, %v4550, %v4551
        %v4553 = vrot.slane %v4315, 2
        %v4554 = vrot.slane %v4317, 2
        %v4555 = vsel %vm1768, %v4553, %v4554
        %v4556 = vrot.slane %v4318, 2
        %v4557 = vsel %vm1768, %v4551, %v4556
        %v4558 = vrot.slane %v4319, 2
        %v4559 = vsel %vm1768, %v4554, %v4558
        %v4560 = vrot.slane %v4320, 2
        %v4561 = vrot.slane %v4322, 2
        %v4562 = vsel %vm1768, %v4560, %v4561
        %v4563 = vrot.slane %v4321, 2
        %v4564 = vrot.slane %v4323, 2
        %v4565 = vsel %vm1768, %v4563, %v4564
        %v4566 = vrot.slane %v4324, 2
        %v4567 = vsel %vm1768, %v4561, %v4566
        %v4568 = vrot.slane %v4325, 2
        %v4569 = vsel %vm1768, %v4564, %v4568
        %v4570 = vrot.slane %v4326, 2
        %v4571 = vrot.slane %v4328, 2
        %v4572 = vsel %vm1768, %v4570, %v4571
        %v4573 = vrot.slane %v4327, 2
        %v4574 = vrot.slane %v4329, 2
        %v4575 = vsel %vm1768, %v4573, %v4574
        %v4576 = vrot.slane %v4330, 2
        %v4577 = vsel %vm1768, %v4571, %v4576
        %v4578 = vrot.slane %v4331, 2
        %v4579 = vsel %vm1768, %v4574, %v4578
        %v4580 = vrot.slane %v4332, 2
        %v4581 = vrot.slane %v4334, 2
        %v4582 = vsel %vm1768, %v4580, %v4581
        %v4583 = vrot.slane %v4333, 2
        %v4584 = vrot.slane %v4335, 2
        %v4585 = vsel %vm1768, %v4583, %v4584
        %v4586 = vrot.slane %v4336, 2
        %v4587 = vsel %vm1768, %v4581, %v4586
        %v4588 = vrot.slane %v4337, 2
        %v4589 = vsel %vm1768, %v4584, %v4588
        %v4590 = vrot.slane %v4338, 2
        %v4591 = vrot.slane %v4340, 2
        %v4592 = vsel %vm1768, %v4590, %v4591
        %v4593 = vrot.slane %v4339, 2
        %v4594 = vrot.slane %v4341, 2
        %v4595 = vsel %vm1768, %v4593, %v4594
        %v4596 = vrot.slane %v4342, 2
        %v4597 = vsel %vm1768, %v4591, %v4596
        %v4598 = vrot.slane %v4343, 2
        %v4599 = vsel %vm1768, %v4594, %v4598
        %v4664 = vadd.f32 %v4102, %v4442
        %v4665 = vadd.f32 %v4103, %v4445
        %v4666 = vadd.f32 %v4104, %v4447
        %v4667 = vadd.f32 %v4105, %v4449
        %v4668 = vadd.f32 %v4106, %v4452
        %v4669 = vadd.f32 %v4107, %v4455
        %v4670 = vadd.f32 %v4108, %v4457
        %v4671 = vadd.f32 %v4109, %v4459
        %v4672 = vadd.f32 %v4110, %v4462
        %v4673 = vadd.f32 %v4111, %v4465
        %v4674 = vadd.f32 %v4112, %v4467
        %v4675 = vadd.f32 %v4113, %v4469
        %v4676 = vadd.f32 %v4114, %v4472
        %v4677 = vadd.f32 %v4115, %v4475
        %v4678 = vadd.f32 %v4116, %v4477
        %v4679 = vadd.f32 %v4117, %v4479
        %v4680 = vadd.f32 %v4118, %v4482
        %v4681 = vadd.f32 %v4119, %v4485
        %v4682 = vadd.f32 %v4120, %v4487
        %v4683 = vadd.f32 %v4121, %v4489
        %v4684 = vadd.f32 %v4122, %v4492
        %v4685 = vadd.f32 %v4123, %v4495
        %v4686 = vadd.f32 %v4124, %v4497
        %v4687 = vadd.f32 %v4125, %v4499
        %v4688 = vadd.f32 %v4126, %v4502
        %v4689 = vadd.f32 %v4127, %v4505
        %v4690 = vadd.f32 %v4128, %v4507
        %v4691 = vadd.f32 %v4129, %v4509
        %v4692 = vadd.f32 %v4130, %v4512
        %v4693 = vadd.f32 %v4131, %v4515
        %v4694 = vadd.f32 %v4132, %v4517
        %v4695 = vadd.f32 %v4133, %v4519
        %v4696 = vadd.f32 %v4134, %v4522
        %v4697 = vadd.f32 %v4135, %v4525
        %v4698 = vadd.f32 %v4136, %v4527
        %v4699 = vadd.f32 %v4137, %v4529
        %v4700 = vadd.f32 %v4138, %v4532
        %v4701 = vadd.f32 %v4139, %v4535
        %v4702 = vadd.f32 %v4140, %v4537
        %v4703 = vadd.f32 %v4141, %v4539
        %v4704 = vadd.f32 %v4142, %v4542
        %v4705 = vadd.f32 %v4143, %v4545
        %v4706 = vadd.f32 %v4144, %v4547
        %v4707 = vadd.f32 %v4145, %v4549
        %v4708 = vadd.f32 %v4146, %v4552
        %v4709 = vadd.f32 %v4147, %v4555
        %v4710 = vadd.f32 %v4148, %v4557
        %v4711 = vadd.f32 %v4149, %v4559
        %v4712 = vadd.f32 %v4150, %v4562
        %v4713 = vadd.f32 %v4151, %v4565
        %v4714 = vadd.f32 %v4152, %v4567
        %v4715 = vadd.f32 %v4153, %v4569
        %v4716 = vadd.f32 %v4154, %v4572
        %v4717 = vadd.f32 %v4155, %v4575
        %v4718 = vadd.f32 %v4156, %v4577
        %v4719 = vadd.f32 %v4157, %v4579
        %v4720 = vadd.f32 %v4158, %v4582
        %v4721 = vadd.f32 %v4159, %v4585
        %v4722 = vadd.f32 %v4160, %v4587
        %v4723 = vadd.f32 %v4161, %v4589
        %v4724 = vadd.f32 %v4162, %v4592
        %v4725 = vadd.f32 %v4163, %v4595
        %v4726 = vadd.f32 %v4164, %v4597
        %v4727 = vadd.f32 %v4165, %v4599
        %v4729 = vlaneseq
        %v4730 = vshrl.u32 %v4729, 7
        %v4731 = vsub.s32 0, %v4730
        %v4732 = vrot.slane %v783, %v4731
        %v4733 = vlaneseq
        %v4734 = vshrl.u32 %v4733, 7
        %v4735 = vsub.s32 1, %v4734
        %v4736 = vrot.slane %v783, %v4735
        %v4739 = vadd.f32 %v4664, %v4732
        %v4740 = vadd.f32 %v4665, %v4736
        %v4741 = vadd.f32 %v4666, %v4732
        %v4742 = vadd.f32 %v4667, %v4736
        %v4743 = vadd.f32 %v4668, %v4732
        %v4744 = vadd.f32 %v4669, %v4736
        %v4745 = vadd.f32 %v4670, %v4732
        %v4746 = vadd.f32 %v4671, %v4736
        %v4747 = vadd.f32 %v4672, %v4732
        %v4748 = vadd.f32 %v4673, %v4736
        %v4749 = vadd.f32 %v4674, %v4732
        %v4750 = vadd.f32 %v4675, %v4736
        %v4751 = vadd.f32 %v4676, %v4732
        %v4752 = vadd.f32 %v4677, %v4736
        %v4753 = vadd.f32 %v4678, %v4732
        %v4754 = vadd.f32 %v4679, %v4736
        %v4755 = vadd.f32 %v4680, %v4732
        %v4756 = vadd.f32 %v4681, %v4736
        %v4757 = vadd.f32 %v4682, %v4732
        %v4758 = vadd.f32 %v4683, %v4736
        %v4759 = vadd.f32 %v4684, %v4732
        %v4760 = vadd.f32 %v4685, %v4736
        %v4761 = vadd.f32 %v4686, %v4732
        %v4762 = vadd.f32 %v4687, %v4736
        %v4763 = vadd.f32 %v4688, %v4732
        %v4764 = vadd.f32 %v4689, %v4736
        %v4765 = vadd.f32 %v4690, %v4732
        %v4766 = vadd.f32 %v4691, %v4736
        %v4767 = vadd.f32 %v4692, %v4732
        %v4768 = vadd.f32 %v4693, %v4736
        %v4769 = vadd.f32 %v4694, %v4732
        %v4770 = vadd.f32 %v4695, %v4736
        %v4771 = vadd.f32 %v4696, %v4732
        %v4772 = vadd.f32 %v4697, %v4736
        %v4773 = vadd.f32 %v4698, %v4732
        %v4774 = vadd.f32 %v4699, %v4736
        %v4775 = vadd.f32 %v4700, %v4732
        %v4776 = vadd.f32 %v4701, %v4736
        %v4777 = vadd.f32 %v4702, %v4732
        %v4778 = vadd.f32 %v4703, %v4736
        %v4779 = vadd.f32 %v4704, %v4732
        %v4780 = vadd.f32 %v4705, %v4736
        %v4781 = vadd.f32 %v4706, %v4732
        %v4782 = vadd.f32 %v4707, %v4736
        %v4783 = vadd.f32 %v4708, %v4732
        %v4784 = vadd.f32 %v4709, %v4736
        %v4785 = vadd.f32 %v4710, %v4732
        %v4786 = vadd.f32 %v4711, %v4736
        %v4787 = vadd.f32 %v4712, %v4732
        %v4788 = vadd.f32 %v4713, %v4736
        %v4789 = vadd.f32 %v4714, %v4732
        %v4790 = vadd.f32 %v4715, %v4736
        %v4791 = vadd.f32 %v4716, %v4732
        %v4792 = vadd.f32 %v4717, %v4736
        %v4793 = vadd.f32 %v4718, %v4732
        %v4794 = vadd.f32 %v4719, %v4736
        %v4795 = vadd.f32 %v4720, %v4732
        %v4796 = vadd.f32 %v4721, %v4736
        %v4797 = vadd.f32 %v4722, %v4732
        %v4798 = vadd.f32 %v4723, %v4736
        %v4799 = vadd.f32 %v4724, %v4732
        %v4800 = vadd.f32 %v4725, %v4736
        %v4801 = vadd.f32 %v4726, %v4732
        %v4802 = vadd.f32 %v4727, %v4736
        %4803 = vst [vmem:[%s236] sm:$0xff] %v4739
        %4804 = vst [vmem:[%s236 + $0x8] sm:$0xff] %v4740
        %4805 = vst [vmem:[%s236 + $0x10] sm:$0xff] %v4741
        %4806 = vst [vmem:[%s236 + $0x18] sm:$0xff] %v4742
        %4807 = vst [vmem:[%s236 + $0x20] sm:$0xff] %v4743
        %4808 = vst [vmem:[%s236 + $0x28] sm:$0xff] %v4744
        %4809 = vst [vmem:[%s236 + $0x30] sm:$0xff] %v4745
        %4810 = vst [vmem:[%s236 + $0x38] sm:$0xff] %v4746
        %4811 = vst [vmem:[%s236 + $0x40] sm:$0xff] %v4747
        %4812 = vst [vmem:[%s236 + $0x48] sm:$0xff] %v4748
        %4813 = vst [vmem:[%s236 + $0x50] sm:$0xff] %v4749
        %4814 = vst [vmem:[%s236 + $0x58] sm:$0xff] %v4750
        %4815 = vst [vmem:[%s236 + $0x60] sm:$0xff] %v4751
        %4816 = vst [vmem:[%s236 + $0x68] sm:$0xff] %v4752
        %4817 = vst [vmem:[%s236 + $0x70] sm:$0xff] %v4753
        %4818 = vst [vmem:[%s236 + $0x78] sm:$0xff] %v4754
        %4819 = vst [vmem:[%s236 + $0x80] sm:$0xff] %v4755
        %4820 = vst [vmem:[%s236 + $0x88] sm:$0xff] %v4756
        %4821 = vst [vmem:[%s236 + $0x90] sm:$0xff] %v4757
        %4822 = vst [vmem:[%s236 + $0x98] sm:$0xff] %v4758
        %4823 = vst [vmem:[%s236 + $0xa0] sm:$0xff] %v4759
        %4824 = vst [vmem:[%s236 + $0xa8] sm:$0xff] %v4760
        %4825 = vst [vmem:[%s236 + $0xb0] sm:$0xff] %v4761
        %4826 = vst [vmem:[%s236 + $0xb8] sm:$0xff] %v4762
        %4827 = vst [vmem:[%s236 + $0xc0] sm:$0xff] %v4763
        %4828 = vst [vmem:[%s236 + $0xc8] sm:$0xff] %v4764
        %4829 = vst [vmem:[%s236 + $0xd0] sm:$0xff] %v4765
        %4830 = vst [vmem:[%s236 + $0xd8] sm:$0xff] %v4766
        %4831 = vst [vmem:[%s236 + $0xe0] sm:$0xff] %v4767
        %4832 = vst [vmem:[%s236 + $0xe8] sm:$0xff] %v4768
        %4833 = vst [vmem:[%s236 + $0xf0] sm:$0xff] %v4769
        %4834 = vst [vmem:[%s236 + $0xf8] sm:$0xff] %v4770
        %4835 = vst [vmem:[%s236 + $0x100] sm:$0xff] %v4771
        %4836 = vst [vmem:[%s236 + $0x108] sm:$0xff] %v4772
        %4837 = vst [vmem:[%s236 + $0x110] sm:$0xff] %v4773
        %4838 = vst [vmem:[%s236 + $0x118] sm:$0xff] %v4774
        %4839 = vst [vmem:[%s236 + $0x120] sm:$0xff] %v4775
        %4840 = vst [vmem:[%s236 + $0x128] sm:$0xff] %v4776
        %4841 = vst [vmem:[%s236 + $0x130] sm:$0xff] %v4777
        %4842 = vst [vmem:[%s236 + $0x138] sm:$0xff] %v4778
        %4843 = vst [vmem:[%s236 + $0x140] sm:$0xff] %v4779
        %4844 = vst [vmem:[%s236 + $0x148] sm:$0xff] %v4780
        %4845 = vst [vmem:[%s236 + $0x150] sm:$0xff] %v4781
        %4846 = vst [vmem:[%s236 + $0x158] sm:$0xff] %v4782
        %4847 = vst [vmem:[%s236 + $0x160] sm:$0xff] %v4783
        %4848 = vst [vmem:[%s236 + $0x168] sm:$0xff] %v4784
        %4849 = vst [vmem:[%s236 + $0x170] sm:$0xff] %v4785
        %4850 = vst [vmem:[%s236 + $0x178] sm:$0xff] %v4786
        %4851 = vst [vmem:[%s236 + $0x180] sm:$0xff] %v4787
        %4852 = vst [vmem:[%s236 + $0x188] sm:$0xff] %v4788
        %4853 = vst [vmem:[%s236 + $0x190] sm:$0xff] %v4789
        %4854 = vst [vmem:[%s236 + $0x198] sm:$0xff] %v4790
        %4855 = vst [vmem:[%s236 + $0x1a0] sm:$0xff] %v4791
        %4856 = vst [vmem:[%s236 + $0x1a8] sm:$0xff] %v4792
        %4857 = vst [vmem:[%s236 + $0x1b0] sm:$0xff] %v4793
        %4858 = vst [vmem:[%s236 + $0x1b8] sm:$0xff] %v4794
        %4859 = vst [vmem:[%s236 + $0x1c0] sm:$0xff] %v4795
        %4860 = vst [vmem:[%s236 + $0x1c8] sm:$0xff] %v4796
        %4861 = vst [vmem:[%s236 + $0x1d0] sm:$0xff] %v4797
        %4862 = vst [vmem:[%s236 + $0x1d8] sm:$0xff] %v4798
        %4863 = vst [vmem:[%s236 + $0x1e0] sm:$0xff] %v4799
        %4864 = vst [vmem:[%s236 + $0x1e8] sm:$0xff] %v4800
        %4865 = vst [vmem:[%s236 + $0x1f0] sm:$0xff] %v4801
        %4866 = vst [vmem:[%s236 + $0x1f8] sm:$0xff] %v4802
        %s4867 = sand.u32 %s122, 1
        %s4868 = scalar_lea.sflag [#allocation5], %s4867
        %s4869 = sand.u32 %s122, 1
        %s4870 = smul.addr %s4869, 512
        %s4871 = scalar_lea.vmem [#allocation6], %s4870
        // Predicated region
        $region37: #{dwconv.1} parent=31 // pred_check
          %p4872 = pneg %p132
        $region38: #{dwconv.1} parent=31 // pred_check_branch
          %4874 = sbr.rel (%p4872) target = $region40
        $region39: #{dwconv.1} parent=31 // pred_region
          %s4875 = smul.u32 2, %s24
          %s4877 = ssub.s32 8192, 8192
          %4878 = vsyncadd %s4868, %s4877
          %s4879 = smul.addr %s25, 64
          %s4880 = sadd.s32 %s4875, %s4879
          %s4881 = smul.addr %s4880, 128
          %s4882 = scalar_lea.hbm %s3, %s4881
          %s4883 = sshll.u32 %s4871, 4
          %s4884 = int_to_ptr.vmem [resolvable:$true] %s4883
          %4889 = dma.vmem_to_hbm [thread:$0]  %s4884, 8192, %s4882, %s4868, 256, 256, 16
        $region40: #{dwconv.1} parent=31 // pred_fallthru
          _
      $region32: #{dwconv.1} parent=5 // pred_fallthru
        _
      %p4890 = scmp.le.s32.totalorder 2, %s15
      // Predicated region
      $region41: #{dwconv.1} parent=5 // pred_check
        %p4891 = pneg %p4890
      $region42: #{dwconv.1} parent=5 // pred_check_branch
        %4893 = sbr.rel (%p4891) target = $region44
      $region43: #{dwconv.1} parent=5 // pred_region
        %s4894 = ssub.s32 %s15, 2
        // Predicated region
        $region45: #{dwconv.1} parent=43 // pred_check
          %p4895 = pneg %p138
        $region46: #{dwconv.1} parent=43 // pred_check_branch
          %4897 = sbr.rel (%p4895) target = $region48
        $region47: #{dwconv.1} parent=43 // pred_region
          %s4898 = sand.u32 %s123, 1
          %s4899 = scalar_lea.sflag [#allocation5], %s4898
          %s4900 = sand.u32 %s123, 1
          %s4901 = smul.addr %s4900, 512
          %s4902 = scalar_lea.vmem [#allocation6], %s4901
          %4903 = dma.done %s4899, 8192
        $region48: #{dwconv.1} parent=43 // pred_fallthru
          _
      $region44: #{dwconv.1} parent=5 // pred_fallthru
        _
    $region6: #{dwconv.1} parent=1 // loop_footer
      %s19 = sadd.s32 1, %s15
    $region7: #{dwconv.1} parent=1 // loop_footer_branch
      %14 = sbr.rel target = $region3
    $region8: #{dwconv.1} parent=1 // loop_exit
      _
    %4904 = vsyncpa [#allocation4], 1
    %s4905 = scalar_lea.sflag [#allocation4], 1
    %4906 = vsyncpa %s4905, 1
    %4907 = vsyncpa [#allocation5], 1
    %s4908 = scalar_lea.sflag [#allocation5], 1
    %4909 = vsyncpa %s4908, 1

</llo_original>
